<compile_context>
chip_gen: v5e
topology: v5e:2x2
jax: 0.10.0
libtpu: 0.0.40
codegen_flags: <defaults>
</compile_context>

<pallas_src>
import functools
import math

import jax
import jax.numpy as jnp
from jax.experimental import pallas as pl
from jax.experimental.pallas import tpu as pltpu

EPS = 1e-5                              # nn.BatchNorm1d default eps
_VMEM_LIMIT = 56 * 1024 * 1024          # below v7x's 64 MiB physical VMEM


# ----------------------------------------------------------------------------
# In-kernel math helpers
# ----------------------------------------------------------------------------
def _erf(x):
    # Abramowitz & Stegun 7.1.26 polynomial (|err| <= 1.5e-7); keeps exact
    # torch.nn.GELU semantics while lowering with only exp/mul/add on Mosaic.
    a1, a2, a3, a4, a5 = 0.254829592, -0.284496736, 1.421413741, -1.453152027, 1.061405429
    p = 0.3275911
    ax = jnp.abs(x)
    t = 1.0 / (1.0 + p * ax)
    poly = ((((a5 * t + a4) * t + a3) * t + a2) * t + a1) * t
    y = 1.0 - poly * jnp.exp(-ax * ax)
    return jnp.where(x >= 0.0, y, -y)


def _gelu_exact(x):
    return 0.5 * x * (1.0 + _erf(x * (1.0 / math.sqrt(2.0))))


# ----------------------------------------------------------------------------
# Spec helpers
# ----------------------------------------------------------------------------
def _const_index_map(nd):
    def im(i):
        return (0,) * nd
    return im


def _full_spec(shape):
    # Whole array resident in VMEM (weights / tiny norm params), constant block.
    return pl.BlockSpec(tuple(shape), _const_index_map(len(shape)))


def _choose_bn_tile(bn, target=64):
    # Largest divisor of bn that is <= target and is either a multiple of 8 or
    # bn itself, so batch-norm partial-stat tiles never see padding and 2-D
    # output blocks keep a sublane-aligned second-minor dim.
    for t in range(min(bn, target), 0, -1):
        if bn % t == 0 and (t % 8 == 0 or t == bn):
            return t
    return bn


# ----------------------------------------------------------------------------
# Pallas kernels
# ----------------------------------------------------------------------------
def embed_kernel(xp_ref, wp_ref, bp_ref, wpos_ref, out_ref):
    # xp: [TBN, K, P]  wp: [P, D] (bf16)  bp: [1, D]  wpos: [K, D] -> out [TBN, K, D]
    tbn, kk, p = xp_ref.shape
    d = wp_ref.shape[1]
    x2 = xp_ref[...].reshape(tbn * kk, p).astype(jnp.bfloat16)
    y = jnp.dot(x2, wp_ref[...], preferred_element_type=jnp.float32) + bp_ref[...]
    out_ref[...] = y.reshape(tbn, kk, d) + wpos_ref[...]


def make_attn_kernel(n_heads, d_k):
    def kernel(x_ref, prev_ref, scale_ref, shift_ref,
               wq_ref, bq_ref, wk_ref, bk_ref, wv_ref, bv_ref, wo_ref, bo_ref,
               src_ref, scores_ref, stat_ref):
        tbn, kk, d = x_ref.shape
        x2 = x_ref[...].reshape(tbn * kk, d)                        # [M, D] f32
        # Fold-in of the previous layer's 2nd BatchNorm (identity for layer 0).
        xn = x2 * scale_ref[...] + shift_ref[...]
        xb = xn.astype(jnp.bfloat16)

        # Flattened projections: one big MXU matmul each (1/sqrt(d_k) folded in W_Q).
        q = jnp.dot(xb, wq_ref[...], preferred_element_type=jnp.float32) + bq_ref[...]
        k = jnp.dot(xb, wk_ref[...], preferred_element_type=jnp.float32) + bk_ref[...]
        v = jnp.dot(xb, wv_ref[...], preferred_element_type=jnp.float32) + bv_ref[...]
        q3 = q.reshape(tbn, kk, d).astype(jnp.bfloat16)
        k3 = k.reshape(tbn, kk, d).astype(jnp.bfloat16)
        v3 = v.reshape(tbn, kk, d).astype(jnp.bfloat16)

        head_outs = []
        for h in range(n_heads):
            sl = slice(h * d_k, (h + 1) * d_k)
            s = jnp.einsum("bqd,bkd->bqk", q3[..., sl], k3[..., sl],
                           preferred_element_type=jnp.float32)
            s = s + prev_ref[h]                     # residual attention (prev scores)
            scores_ref[h] = s                       # pre-softmax scores to next layer
            m = jnp.max(s, axis=-1, keepdims=True)
            p = jnp.exp(s - m)
            p = p * pl.reciprocal(jnp.sum(p, axis=-1, keepdims=True), approx=True)
            head_outs.append(jnp.einsum("bqk,bkd->bqd",
                                        p.astype(jnp.bfloat16), v3[..., sl],
                                        preferred_element_type=jnp.float32))
        attn = jnp.concatenate(head_outs, axis=-1).reshape(tbn * kk, d)
        proj = jnp.dot(attn.astype(jnp.bfloat16), wo_ref[...],
                       preferred_element_type=jnp.float32) + bo_ref[...]

        src = xn + proj                              # residual uses the layer input
        src_ref[...] = src.reshape(tbn, kk, d)
        # Per-tile BatchNorm partials (sum, sum of squares) over this tile's rows.
        stat_ref[...] = jnp.concatenate(
            [jnp.sum(src, axis=0, keepdims=True),
             jnp.sum(src * src, axis=0, keepdims=True)], axis=0).reshape(1, 2, d)
    return kernel


def ffn_kernel(src_ref, scale_ref, shift_ref, w1_ref, b1_ref, w2_ref, b2_ref,
               out_ref, stat_ref):
    tbn, kk, d = src_ref.shape
    s2 = src_ref[...].reshape(tbn * kk, d)
    xn = s2 * scale_ref[...] + shift_ref[...]        # BatchNorm after attention
    h = jnp.dot(xn.astype(jnp.bfloat16), w1_ref[...],
                preferred_element_type=jnp.float32) + b1_ref[...]
    h = _gelu_exact(h)
    ff = jnp.dot(h.astype(jnp.bfloat16), w2_ref[...],
                 preferred_element_type=jnp.float32) + b2_ref[...]
    src2 = xn + ff                                   # residual uses post-norm value
    out_ref[...] = src2.reshape(tbn, kk, d)
    stat_ref[...] = jnp.concatenate(
        [jnp.sum(src2, axis=0, keepdims=True),
         jnp.sum(src2 * src2, axis=0, keepdims=True)], axis=0).reshape(1, 2, d)


def head_kernel(z_ref, scale_ref, shift_ref, w_ref, b_ref, out_ref):
    # z: [TBN, K*D] ((k,d)-ordered)  w: [K*D, T] (rows permuted to match)  -> [TBN, T]
    zn = z_ref[...] * scale_ref[...] + shift_ref[...]     # final BatchNorm folded in
    out_ref[...] = jnp.dot(zn.astype(jnp.bfloat16), w_ref[...],
                           preferred_element_type=jnp.float32) + b_ref[...]


# ----------------------------------------------------------------------------
# Glue (patchify, parameter init, batch-norm affine, full forward)
# ----------------------------------------------------------------------------
def make_patches(xt, patch_len, stride):
    # xt: [B, N, L] -> [B, K, N, P]  (same as torch create_patch / unfold)
    B, N, L = xt.shape
    K = (max(L, patch_len) - patch_len) // stride + 1
    tgt_len = patch_len + stride * (K - 1)
    s_begin = L - tgt_len
    xb = jnp.transpose(xt, (0, 2, 1))[:, s_begin:, :]                # [B, tgt_len, N]
    idx = jnp.arange(K)[:, None] * stride + jnp.arange(patch_len)[None, :]
    xp = xb[:, idx, :]                                               # [B, K, P, N]
    return jnp.transpose(xp, (0, 1, 3, 2)), K                        # [B, K, N, P]


def _bn_affine(part, g, b, count):
    # part: [n_tiles, 2, D] per-tile (sum, sum-of-squares).  Returns the affine
    # (scale, shift) implementing training-mode BatchNorm1d over the full batch.
    tot = jnp.sum(part, axis=0)
    mean = tot[0] / count
    var = jnp.maximum(tot[1] / count - mean * mean, 0.0)
    inv = jax.lax.rsqrt(var + EPS)
    scale = inv * g[0]
    shift = b[0] - mean * scale
    return scale.reshape(1, -1), shift.reshape(1, -1)


def init_params(key, patch_len, num_patch, d_model, n_heads, d_ff, n_layers, target_dim):
    def lin(k, din, dout, scale=0.02):
        kw, kb = jax.random.split(k)
        w = jax.random.normal(kw, (din, dout), jnp.float32) * scale
        b = jax.random.normal(kb, (1, dout), jnp.float32) * scale
        return w, b

    keys = jax.random.split(key, 3 + n_layers)
    params = {}
    params["wp"], params["bp"] = lin(keys[0], patch_len, d_model)          # shared W_P
    params["wpos"] = jax.random.uniform(keys[1], (num_patch, d_model),
                                        jnp.float32, -0.02, 0.02)          # pe='zeros'
    params["head_w"], params["head_b"] = lin(keys[2], d_model * num_patch, target_dim)

    layers = []
    for i in range(n_layers):
        lk = jax.random.split(keys[3 + i], 6)
        lp = {}
        lp["wq"], lp["bq"] = lin(lk[0], d_model, d_model)
        lp["wk"], lp["bk"] = lin(lk[1], d_model, d_model)
        lp["wv"], lp["bv"] = lin(lk[2], d_model, d_model)
        lp["wo"], lp["bo"] = lin(lk[3], d_model, d_model)
        lp["w1"], lp["bf1"] = lin(lk[4], d_model, d_ff)
        lp["w2"], lp["bf2"] = lin(lk[5], d_ff, d_model)
        lp["g1"] = jnp.ones((1, d_model), jnp.float32)
        lp["b1"] = jnp.zeros((1, d_model), jnp.float32)
        lp["g2"] = jnp.ones((1, d_model), jnp.float32)
        lp["b2"] = jnp.zeros((1, d_model), jnp.float32)
        layers.append(lp)
    params["layers"] = layers
    return params


def patchtst_forward(xt, params, *, patch_len=4, stride=4, n_heads=4, bn_tile=64):
    """PatchTST forward, head_type='forecast', individual=False.
    xt: [B, N, L] -> out: [B, N, target_dim]
    """
    B, N, L = xt.shape
    xb_patch, K = make_patches(xt, patch_len, stride)                # [B, K, N, P]
    xb_patch = jnp.nan_to_num(xb_patch)                              # xb_patch[isnan]=0
    D = params["wp"].shape[1]
    BN = B * N
    xp = jnp.transpose(xb_patch, (0, 2, 1, 3)).reshape(BN, K, patch_len)
    xp = xp.astype(jnp.float32)

    TBN = _choose_bn_tile(BN, bn_tile)
    NT = BN // TBN
    H, d_k = n_heads, D // n_heads
    cparams = pltpu.CompilerParams(dimension_semantics=("parallel",),
                                   vmem_limit_bytes=_VMEM_LIMIT)
    tok_spec = pl.BlockSpec((TBN, K, D), lambda i: (i, 0, 0))
    sco_spec = pl.BlockSpec((H, TBN, K, K), lambda i: (0, i, 0, 0))
    stat_spec = pl.BlockSpec((1, 2, D), lambda i: (i, 0, 0))

    # ---- patch embedding + positional encoding ----------------------------
    u = pl.pallas_call(
        embed_kernel,
        grid=(NT,),
        out_shape=jax.ShapeDtypeStruct((BN, K, D), jnp.float32),
        in_specs=[pl.BlockSpec((TBN, K, patch_len), lambda i: (i, 0, 0)),
                  _full_spec((patch_len, D)), _full_spec((1, D)), _full_spec((K, D))],
        out_specs=tok_spec,
        compiler_params=cparams,
    )(xp, params["wp"].astype(jnp.bfloat16), params["bp"], params["wpos"])

    # ---- transformer encoder (res_attention=True) --------------------------
    attn_k = make_attn_kernel(H, d_k)
    count = float(BN * K)
    scores = jnp.zeros((H, BN, K, K), jnp.float32)      # prev=None == prev=0
    scale_in = jnp.ones((1, D), jnp.float32)            # identity pre-norm for layer 0
    shift_in = jnp.zeros((1, D), jnp.float32)
    x_in = u
    qk_scale = float(d_k) ** -0.5

    for lp in params["layers"]:
        d_ff = lp["w1"].shape[1]
        wq = (lp["wq"] * qk_scale).astype(jnp.bfloat16)  # fold 1/sqrt(d_k) into W_Q
        bq = lp["bq"] * qk_scale

        x_in, scores, part = pl.pallas_call(
            attn_k,
            grid=(NT,),
            out_shape=(jax.ShapeDtypeStruct((BN, K, D), jnp.float32),
                       jax.ShapeDtypeStruct((H, BN, K, K), jnp.float32),
                       jax.ShapeDtypeStruct((NT, 2, D), jnp.float32)),
            in_specs=[tok_spec, sco_spec,
                      _full_spec((1, D)), _full_spec((1, D)),
                      _full_spec((D, D)), _full_spec((1, D)),
                      _full_spec((D, D)), _full_spec((1, D)),
                      _full_spec((D, D)), _full_spec((1, D)),
                      _full_spec((D, D)), _full_spec((1, D))],
            out_specs=(tok_spec, sco_spec, stat_spec),
            input_output_aliases={1: 1},                 # reuse prev-scores buffer
            compiler_params=cparams,
        )(x_in, scores, scale_in, shift_in,
          wq, bq,
          lp["wk"].astype(jnp.bfloat16), lp["bk"],
          lp["wv"].astype(jnp.bfloat16), lp["bv"],
          lp["wo"].astype(jnp.bfloat16), lp["bo"])

        scale1, shift1 = _bn_affine(part, lp["g1"], lp["b1"], count)

        x_in, part2 = pl.pallas_call(
            ffn_kernel,
            grid=(NT,),
            out_shape=(jax.ShapeDtypeStruct((BN, K, D), jnp.float32),
                       jax.ShapeDtypeStruct((NT, 2, D), jnp.float32)),
            in_specs=[tok_spec,
                      _full_spec((1, D)), _full_spec((1, D)),
                      _full_spec((D, d_ff)), _full_spec((1, d_ff)),
                      _full_spec((d_ff, D)), _full_spec((1, D))],
            out_specs=(tok_spec, stat_spec),
            compiler_params=cparams,
        )(x_in, scale1, shift1,
          lp["w1"].astype(jnp.bfloat16), lp["bf1"],
          lp["w2"].astype(jnp.bfloat16), lp["bf2"])

        scale_in, shift_in = _bn_affine(part2, lp["g2"], lp["b2"], count)

    # ---- PredictionHead -----------------------------------------------------
    T = params["head_w"].shape[1]
    # torch flattens [D, K] (feature d*K+k); we flatten [K, D] (a free reshape)
    # and permute the head weight rows to match, so no in-kernel transpose.
    z = x_in.reshape(BN, K * D)
    w_perm = params["head_w"].reshape(D, K, T).transpose(1, 0, 2).reshape(K * D, T)
    scale_t = jnp.tile(scale_in[0], K).reshape(1, K * D)
    shift_t = jnp.tile(shift_in[0], K).reshape(1, K * D)
    out = pl.pallas_call(
        head_kernel,
        grid=(NT,),
        out_shape=jax.ShapeDtypeStruct((BN, T), jnp.float32),
        in_specs=[pl.BlockSpec((TBN, K * D), lambda i: (i, 0)),
                  _full_spec((1, K * D)), _full_spec((1, K * D)),
                  _full_spec((K * D, T)), _full_spec((1, T))],
        out_specs=pl.BlockSpec((TBN, T), lambda i: (i, 0)),
        compiler_params=cparams,
    )(z, scale_t, shift_t, w_perm.astype(jnp.bfloat16), params["head_b"])
    return out.reshape(B, N, T)

# TODO(synk): the 'pretrain' head path (random_masking via torch.rand+argsort and
# the masked MSE loss) is stochastic / data-dependent gather; only the
# deterministic forecast path is implemented here.


# ----------------------------------------------------------------------------
if __name__ == "__main__":
    key = jax.random.PRNGKey(0)
    B, N, L = 2, 4, 32               # batch, variates (c_in), series length
    patch_len, stride = 4, 4
    d_model, n_heads, d_ff = 32, 4, 64
    n_layers, target_dim = 2, 8
    K = (max(L, patch_len) - patch_len) // stride + 1   # num_patch = 8

    kx, kp = jax.random.split(key)
    xt = jax.random.normal(kx, (B, N, L), jnp.float32)
    params = init_params(kp, patch_len, K, d_model, n_heads, d_ff, n_layers, target_dim)

    fwd = jax.jit(functools.partial(patchtst_forward, patch_len=patch_len,
                                    stride=stride, n_heads=n_heads))
    out = fwd(xt, params)
    out = jax.block_until_ready(out)
    assert out.shape == (B, N, target_dim), out.shape
    assert bool(jnp.all(jnp.isfinite(out)))
    print("KERNEL_OK")
</pallas_src>

<mosaic_0001>
module attributes {stable_mosaic.version = 11 : i64} {
  func.func @embed_kernel(%arg0: i32, %arg1: memref<8x8x4xf32, #tpu.memory_space<vmem>>, %arg2: memref<4x32xbf16, #tpu.memory_space<vmem>>, %arg3: memref<1x32xf32, #tpu.memory_space<vmem>>, %arg4: memref<8x32xf32, #tpu.memory_space<vmem>>, %arg5: memref<8x8x32xf32, #tpu.memory_space<vmem>>) attributes {dimension_semantics = [#tpu.dimension_semantics<parallel>], iteration_bounds = array<i64: 1>, scalar_prefetch = 0 : i64, scratch_operands = 0 : i64, tpu.core_type = #tpu.core_type<tc>, window_params = [{transform_indices = @transform_0, window_bounds = array<i64: 8, 8, 4>}, {pipeline_mode = #tpu.pipeline_mode<synchronous>, transform_indices = @transform_1, window_bounds = array<i64: 4, 32>}, {pipeline_mode = #tpu.pipeline_mode<synchronous>, transform_indices = @transform_2, window_bounds = array<i64: 1, 32>}, {pipeline_mode = #tpu.pipeline_mode<synchronous>, transform_indices = @transform_3, window_bounds = array<i64: 8, 32>}, {transform_indices = @transform_4, window_bounds = array<i64: 8, 8, 32>}]} {
    %c0 = arith.constant 0 : index
    %c0_0 = arith.constant 0 : index
    %c0_1 = arith.constant 0 : index
    %0 = vector.load %arg1[%c0, %c0_0, %c0_1] : memref<8x8x4xf32, #tpu.memory_space<vmem>>, vector<8x8x4xf32>
    %1 = vector.shape_cast %0 : vector<8x8x4xf32> to vector<64x4xf32>
    %2 = arith.truncf %1 : vector<64x4xf32> to vector<64x4xbf16>
    %c0_2 = arith.constant 0 : index
    %c0_3 = arith.constant 0 : index
    %3 = vector.load %arg2[%c0_2, %c0_3] : memref<4x32xbf16, #tpu.memory_space<vmem>>, vector<4x32xbf16>
    %cst = arith.constant dense<0.000000e+00> : vector<64x32xf32>
    %4 = tpu.matmul %2, %3, %cst {dimension_numbers = #tpu.dot_dimension_numbers<[1], [0], [0], [1], [0, 0, 1, 1], [], []>} : vector<64x4xbf16>, vector<4x32xbf16>, vector<64x32xf32> -> vector<64x32xf32>
    %c0_4 = arith.constant 0 : index
    %c0_5 = arith.constant 0 : index
    %5 = vector.load %arg3[%c0_4, %c0_5] : memref<1x32xf32, #tpu.memory_space<vmem>>, vector<1x32xf32>
    %6 = vector.broadcast %5 : vector<1x32xf32> to vector<64x32xf32>
    %7 = arith.addf %4, %6 : vector<64x32xf32>
    %8 = vector.shape_cast %7 : vector<64x32xf32> to vector<8x8x32xf32>
    %c0_6 = arith.constant 0 : index
    %c0_7 = arith.constant 0 : index
    %9 = vector.load %arg4[%c0_6, %c0_7] : memref<8x32xf32, #tpu.memory_space<vmem>>, vector<8x32xf32>
    %10 = vector.shape_cast %9 : vector<8x32xf32> to vector<1x8x32xf32>
    %11 = vector.broadcast %10 : vector<1x8x32xf32> to vector<8x8x32xf32>
    %12 = arith.addf %8, %11 : vector<8x8x32xf32>
    %c0_8 = arith.constant 0 : index
    %c0_9 = arith.constant 0 : index
    %c0_10 = arith.constant 0 : index
    %13 = vector.load %arg5[%c0_8, %c0_9, %c0_10] : memref<8x8x32xf32, #tpu.memory_space<vmem>>, vector<8x8x32xf32>
    tpu.vector_store %arg5[%c0_8, %c0_9, %c0_10], %12 {strides = array<i32>} : memref<8x8x32xf32, #tpu.memory_space<vmem>>, vector<8x8x32xf32>,
    return
  }
  func.func @transform_0(%arg0: i32) -> (i32, i32, i32) {
    %c0_i32 = arith.constant 0 : i32
    %c0_i32_0 = arith.constant 0 : i32
    %c0_i32_1 = arith.constant 0 : i32
    return %arg0, %c0_i32, %c0_i32_0 : i32, i32, i32
  }
  func.func @transform_1(%arg0: i32) -> (i32, i32) {
    %c0_i32 = arith.constant 0 : i32
    %c0_i32_0 = arith.constant 0 : i32
    %c0_i32_1 = arith.constant 0 : i32
    return %c0_i32, %c0_i32_0 : i32, i32
  }
  func.func @transform_2(%arg0: i32) -> (i32, i32) {
    %c0_i32 = arith.constant 0 : i32
    %c0_i32_0 = arith.constant 0 : i32
    %c0_i32_1 = arith.constant 0 : i32
    return %c0_i32, %c0_i32_0 : i32, i32
  }
  func.func @transform_3(%arg0: i32) -> (i32, i32) {
    %c0_i32 = arith.constant 0 : i32
    %c0_i32_0 = arith.constant 0 : i32
    %c0_i32_1 = arith.constant 0 : i32
    return %c0_i32, %c0_i32_0 : i32, i32
  }
  func.func @transform_4(%arg0: i32) -> (i32, i32, i32) {
    %c0_i32 = arith.constant 0 : i32
    %c0_i32_0 = arith.constant 0 : i32
    %c0_i32_1 = arith.constant 0 : i32
    return %arg0, %c0_i32, %c0_i32_0 : i32, i32, i32
  }
}

module attributes {stable_mosaic.version = 11 : i64} {
  func.func @kernel(%arg0: i32, %arg1: memref<8x8x32xf32, #tpu.memory_space<vmem>>, %arg2: memref<4x8x8x8xf32, #tpu.memory_space<vmem>>, %arg3: memref<1x32xf32, #tpu.memory_space<vmem>>, %arg4: memref<1x32xf32, #tpu.memory_space<vmem>>, %arg5: memref<32x32xbf16, #tpu.memory_space<vmem>>, %arg6: memref<1x32xf32, #tpu.memory_space<vmem>>, %arg7: memref<32x32xbf16, #tpu.memory_space<vmem>>, %arg8: memref<1x32xf32, #tpu.memory_space<vmem>>, %arg9: memref<32x32xbf16, #tpu.memory_space<vmem>>, %arg10: memref<1x32xf32, #tpu.memory_space<vmem>>, %arg11: memref<32x32xbf16, #tpu.memory_space<vmem>>, %arg12: memref<1x32xf32, #tpu.memory_space<vmem>>, %arg13: memref<8x8x32xf32, #tpu.memory_space<vmem>>, %arg14: memref<4x8x8x8xf32, #tpu.memory_space<vmem>>, %arg15: memref<1x2x32xf32, #tpu.memory_space<vmem>>) attributes {dimension_semantics = [#tpu.dimension_semantics<parallel>], iteration_bounds = array<i64: 1>, scalar_prefetch = 0 : i64, scratch_operands = 0 : i64, tpu.core_type = #tpu.core_type<tc>, window_params = [{transform_indices = @transform_0, window_bounds = array<i64: 8, 8, 32>}, {transform_indices = @transform_1, window_bounds = array<i64: 4, 8, 8, 8>}, {pipeline_mode = #tpu.pipeline_mode<synchronous>, transform_indices = @transform_2, window_bounds = array<i64: 1, 32>}, {pipeline_mode = #tpu.pipeline_mode<synchronous>, transform_indices = @transform_3, window_bounds = array<i64: 1, 32>}, {pipeline_mode = #tpu.pipeline_mode<synchronous>, transform_indices = @transform_4, window_bounds = array<i64: 32, 32>}, {pipeline_mode = #tpu.pipeline_mode<synchronous>, transform_indices = @transform_5, window_bounds = array<i64: 1, 32>}, {pipeline_mode = #tpu.pipeline_mode<synchronous>, transform_indices = @transform_6, window_bounds = array<i64: 32, 32>}, {pipeline_mode = #tpu.pipeline_mode<synchronous>, transform_indices = @transform_7, window_bounds = array<i64: 1, 32>}, {pipeline_mode = #tpu.pipeline_mode<synchronous>, transform_indices = @transform_8, window_bounds = array<i64: 32, 32>}, {pipeline_mode = #tpu.pipeline_mode<synchronous>, transform_indices = @transform_9, window_bounds = array<i64: 1, 32>}, {pipeline_mode = #tpu.pipeline_mode<synchronous>, transform_indices = @transform_10, window_bounds = array<i64: 32, 32>}, {pipeline_mode = #tpu.pipeline_mode<synchronous>, transform_indices = @transform_11, window_bounds = array<i64: 1, 32>}, {transform_indices = @transform_12, window_bounds = array<i64: 8, 8, 32>}, {transform_indices = @transform_13, window_bounds = array<i64: 4, 8, 8, 8>}, {transform_indices = @transform_14, window_bounds = array<i64: 1, 2, 32>}]} {
    %c0 = arith.constant 0 : index
    %c0_0 = arith.constant 0 : index
    %c0_1 = arith.constant 0 : index
    %0 = vector.load %arg1[%c0, %c0_0, %c0_1] : memref<8x8x32xf32, #tpu.memory_space<vmem>>, vector<8x8x32xf32>
    %1 = vector.shape_cast %0 : vector<8x8x32xf32> to vector<64x32xf32>
    %c0_2 = arith.constant 0 : index
    %c0_3 = arith.constant 0 : index
    %2 = vector.load %arg3[%c0_2, %c0_3] : memref<1x32xf32, #tpu.memory_space<vmem>>, vector<1x32xf32>
    %3 = vector.broadcast %2 : vector<1x32xf32> to vector<64x32xf32>
    %4 = arith.mulf %1, %3 : vector<64x32xf32>
    %c0_4 = arith.constant 0 : index
    %c0_5 = arith.constant 0 : index
    %5 = vector.load %arg4[%c0_4, %c0_5] : memref<1x32xf32, #tpu.memory_space<vmem>>, vector<1x32xf32>
    %6 = vector.broadcast %5 : vector<1x32xf32> to vector<64x32xf32>
    %7 = arith.addf %4, %6 : vector<64x32xf32>
    %8 = arith.truncf %7 : vector<64x32xf32> to vector<64x32xbf16>
    %c0_6 = arith.constant 0 : index
    %c0_7 = arith.constant 0 : index
    %9 = vector.load %arg5[%c0_6, %c0_7] : memref<32x32xbf16, #tpu.memory_space<vmem>>, vector<32x32xbf16>
    %cst = arith.constant dense<0.000000e+00> : vector<64x32xf32>
    %10 = tpu.matmul %8, %9, %cst {dimension_numbers = #tpu.dot_dimension_numbers<[1], [0], [0], [1], [0, 0, 1, 1], [], []>} : vector<64x32xbf16>, vector<32x32xbf16>, vector<64x32xf32> -> vector<64x32xf32>
    %c0_8 = arith.constant 0 : index
    %c0_9 = arith.constant 0 : index
    %11 = vector.load %arg6[%c0_8, %c0_9] : memref<1x32xf32, #tpu.memory_space<vmem>>, vector<1x32xf32>
    %12 = vector.broadcast %11 : vector<1x32xf32> to vector<64x32xf32>
    %13 = arith.addf %10, %12 : vector<64x32xf32>
    %c0_10 = arith.constant 0 : index
    %c0_11 = arith.constant 0 : index
    %14 = vector.load %arg7[%c0_10, %c0_11] : memref<32x32xbf16, #tpu.memory_space<vmem>>, vector<32x32xbf16>
    %cst_12 = arith.constant dense<0.000000e+00> : vector<64x32xf32>
    %15 = tpu.matmul %8, %14, %cst_12 {dimension_numbers = #tpu.dot_dimension_numbers<[1], [0], [0], [1], [0, 0, 1, 1], [], []>} : vector<64x32xbf16>, vector<32x32xbf16>, vector<64x32xf32> -> vector<64x32xf32>
    %c0_13 = arith.constant 0 : index
    %c0_14 = arith.constant 0 : index
    %16 = vector.load %arg8[%c0_13, %c0_14] : memref<1x32xf32, #tpu.memory_space<vmem>>, vector<1x32xf32>
    %17 = vector.broadcast %16 : vector<1x32xf32> to vector<64x32xf32>
    %18 = arith.addf %15, %17 : vector<64x32xf32>
    %c0_15 = arith.constant 0 : index
    %c0_16 = arith.constant 0 : index
    %19 = vector.load %arg9[%c0_15, %c0_16] : memref<32x32xbf16, #tpu.memory_space<vmem>>, vector<32x32xbf16>
    %cst_17 = arith.constant dense<0.000000e+00> : vector<64x32xf32>
    %20 = tpu.matmul %8, %19, %cst_17 {dimension_numbers = #tpu.dot_dimension_numbers<[1], [0], [0], [1], [0, 0, 1, 1], [], []>} : vector<64x32xbf16>, vector<32x32xbf16>, vector<64x32xf32> -> vector<64x32xf32>
    %c0_18 = arith.constant 0 : index
    %c0_19 = arith.constant 0 : index
    %21 = vector.load %arg10[%c0_18, %c0_19] : memref<1x32xf32, #tpu.memory_space<vmem>>, vector<1x32xf32>
    %22 = vector.broadcast %21 : vector<1x32xf32> to vector<64x32xf32>
    %23 = arith.addf %20, %22 : vector<64x32xf32>
    %24 = vector.shape_cast %13 : vector<64x32xf32> to vector<8x8x32xf32>
    %25 = arith.truncf %24 : vector<8x8x32xf32> to vector<8x8x32xbf16>
    %26 = vector.shape_cast %18 : vector<64x32xf32> to vector<8x8x32xf32>
    %27 = arith.truncf %26 : vector<8x8x32xf32> to vector<8x8x32xbf16>
    %28 = vector.shape_cast %23 : vector<64x32xf32> to vector<8x8x32xf32>
    %29 = arith.truncf %28 : vector<8x8x32xf32> to vector<8x8x32xbf16>
    %30 = vector.extract_strided_slice %25 {offsets = [0, 0, 0], sizes = [8, 8, 8], strides = [1, 1, 1]} : vector<8x8x32xbf16> to vector<8x8x8xbf16>
    %31 = vector.extract_strided_slice %27 {offsets = [0, 0, 0], sizes = [8, 8, 8], strides = [1, 1, 1]} : vector<8x8x32xbf16> to vector<8x8x8xbf16>
    "tpu.trace_start"() <{level = 10 : i32, message = "bqd,bkd->bqk"}> : () -> ()
    %cst_20 = arith.constant dense<0.000000e+00> : vector<8x8x8xf32>
    %32 = tpu.matmul %30, %31, %cst_20 {dimension_numbers = #tpu.dot_dimension_numbers<[2], [2], [1], [1], [0, 0, 0, 1, 1, 1], [0], [0]>} : vector<8x8x8xbf16>, vector<8x8x8xbf16>, vector<8x8x8xf32> -> vector<8x8x8xf32>
    "tpu.trace_stop"() : () -> ()
    %c0_21 = arith.constant 0 : index
    %c0_22 = arith.constant 0 : index
    %c0_23 = arith.constant 0 : index
    %c0_24 = arith.constant 0 : index
    %33 = vector.load %arg2[%c0_21, %c0_22, %c0_23, %c0_24] : memref<4x8x8x8xf32, #tpu.memory_space<vmem>>, vector<1x8x8x8xf32>
    %34 = vector.shape_cast %33 : vector<1x8x8x8xf32> to vector<8x8x8xf32>
    %35 = arith.addf %32, %34 : vector<8x8x8xf32>
    %c0_25 = arith.constant 0 : index
    %c0_26 = arith.constant 0 : index
    %c0_27 = arith.constant 0 : index
    %c0_28 = arith.constant 0 : index
    %36 = vector.load %arg14[%c0_25, %c0_26, %c0_27, %c0_28] : memref<4x8x8x8xf32, #tpu.memory_space<vmem>>, vector<1x8x8x8xf32>
    %37 = vector.shape_cast %36 : vector<1x8x8x8xf32> to vector<8x8x8xf32>
    %38 = vector.shape_cast %35 : vector<8x8x8xf32> to vector<1x8x8x8xf32>
    tpu.vector_store %arg14[%c0_25, %c0_26, %c0_27, %c0_28], %38 {strides = array<i32>} : memref<4x8x8x8xf32, #tpu.memory_space<vmem>>, vector<1x8x8x8xf32>,
    %cst_29 = arith.constant dense<0xFF800000> : vector<8x8xf32>
    %39 = vector.multi_reduction <maximumf>, %35, %cst_29 [2] : vector<8x8x8xf32> to vector<8x8xf32>
    %40 = vector.shape_cast %39 : vector<8x8xf32> to vector<8x8x1xf32>
    %41 = vector.broadcast %40 : vector<8x8x1xf32> to vector<8x8x8xf32>
    %42 = arith.subf %35, %41 : vector<8x8x8xf32>
    %43 = math.exp %42 : vector<8x8x8xf32>
    %cst_30 = arith.constant dense<0.000000e+00> : vector<8x8xf32>
    %44 = vector.multi_reduction <add>, %43, %cst_30 [2] : vector<8x8x8xf32> to vector<8x8xf32>
    %45 = vector.shape_cast %44 : vector<8x8xf32> to vector<8x8x1xf32>
    %46 = tpu.reciprocal %45 {approx = true} : vector<8x8x1xf32> -> vector<8x8x1xf32>
    %47 = vector.broadcast %46 : vector<8x8x1xf32> to vector<8x8x8xf32>
    %48 = arith.mulf %43, %47 : vector<8x8x8xf32>
    %49 = arith.truncf %48 : vector<8x8x8xf32> to vector<8x8x8xbf16>
    %50 = vector.extract_strided_slice %29 {offsets = [0, 0, 0], sizes = [8, 8, 8], strides = [1, 1, 1]} : vector<8x8x32xbf16> to vector<8x8x8xbf16>
    "tpu.trace_start"() <{level = 10 : i32, message = "bqk,bkd->bqd"}> : () -> ()
    %cst_31 = arith.constant dense<0.000000e+00> : vector<8x8x8xf32>
    %51 = tpu.matmul %49, %50, %cst_31 {dimension_numbers = #tpu.dot_dimension_numbers<[2], [1], [1], [2], [0, 0, 0, 1, 1, 2], [0], [0]>} : vector<8x8x8xbf16>, vector<8x8x8xbf16>, vector<8x8x8xf32> -> vector<8x8x8xf32>
    "tpu.trace_stop"() : () -> ()
    %52 = vector.extract_strided_slice %25 {offsets = [0, 0, 8], sizes = [8, 8, 8], strides = [1, 1, 1]} : vector<8x8x32xbf16> to vector<8x8x8xbf16>
    %53 = vector.extract_strided_slice %27 {offsets = [0, 0, 8], sizes = [8, 8, 8], strides = [1, 1, 1]} : vector<8x8x32xbf16> to vector<8x8x8xbf16>
    "tpu.trace_start"() <{level = 10 : i32, message = "bqd,bkd->bqk"}> : () -> ()
    %cst_32 = arith.constant dense<0.000000e+00> : vector<8x8x8xf32>
    %54 = tpu.matmul %52, %53, %cst_32 {dimension_numbers = #tpu.dot_dimension_numbers<[2], [2], [1], [1], [0, 0, 0, 1, 1, 1], [0], [0]>} : vector<8x8x8xbf16>, vector<8x8x8xbf16>, vector<8x8x8xf32> -> vector<8x8x8xf32>
    "tpu.trace_stop"() : () -> ()
    %c1 = arith.constant 1 : index
    %c0_33 = arith.constant 0 : index
    %c0_34 = arith.constant 0 : index
    %c0_35 = arith.constant 0 : index
    %55 = vector.load %arg2[%c1, %c0_33, %c0_34, %c0_35] : memref<4x8x8x8xf32, #tpu.memory_space<vmem>>, vector<1x8x8x8xf32>
    %56 = vector.shape_cast %55 : vector<1x8x8x8xf32> to vector<8x8x8xf32>
    %57 = arith.addf %54, %56 : vector<8x8x8xf32>
    %c1_36 = arith.constant 1 : index
    %c0_37 = arith.constant 0 : index
    %c0_38 = arith.constant 0 : index
    %c0_39 = arith.constant 0 : index
    %58 = vector.load %arg14[%c1_36, %c0_37, %c0_38, %c0_39] : memref<4x8x8x8xf32, #tpu.memory_space<vmem>>, vector<1x8x8x8xf32>
    %59 = vector.shape_cast %58 : vector<1x8x8x8xf32> to vector<8x8x8xf32>
    %60 = vector.shape_cast %57 : vector<8x8x8xf32> to vector<1x8x8x8xf32>
    tpu.vector_store %arg14[%c1_36, %c0_37, %c0_38, %c0_39], %60 {strides = array<i32>} : memref<4x8x8x8xf32, #tpu.memory_space<vmem>>, vector<1x8x8x8xf32>,
    %cst_40 = arith.constant dense<0xFF800000> : vector<8x8xf32>
    %61 = vector.multi_reduction <maximumf>, %57, %cst_40 [2] : vector<8x8x8xf32> to vector<8x8xf32>
    %62 = vector.shape_cast %61 : vector<8x8xf32> to vector<8x8x1xf32>
    %63 = vector.broadcast %62 : vector<8x8x1xf32> to vector<8x8x8xf32>
    %64 = arith.subf %57, %63 : vector<8x8x8xf32>
    %65 = math.exp %64 : vector<8x8x8xf32>
    %cst_41 = arith.constant dense<0.000000e+00> : vector<8x8xf32>
    %66 = vector.multi_reduction <add>, %65, %cst_41 [2] : vector<8x8x8xf32> to vector<8x8xf32>
    %67 = vector.shape_cast %66 : vector<8x8xf32> to vector<8x8x1xf32>
    %68 = tpu.reciprocal %67 {approx = true} : vector<8x8x1xf32> -> vector<8x8x1xf32>
    %69 = vector.broadcast %68 : vector<8x8x1xf32> to vector<8x8x8xf32>
    %70 = arith.mulf %65, %69 : vector<8x8x8xf32>
    %71 = arith.truncf %70 : vector<8x8x8xf32> to vector<8x8x8xbf16>
    %72 = vector.extract_strided_slice %29 {offsets = [0, 0, 8], sizes = [8, 8, 8], strides = [1, 1, 1]} : vector<8x8x32xbf16> to vector<8x8x8xbf16>
    "tpu.trace_start"() <{level = 10 : i32, message = "bqk,bkd->bqd"}> : () -> ()
    %cst_42 = arith.constant dense<0.000000e+00> : vector<8x8x8xf32>
    %73 = tpu.matmul %71, %72, %cst_42 {dimension_numbers = #tpu.dot_dimension_numbers<[2], [1], [1], [2], [0, 0, 0, 1, 1, 2], [0], [0]>} : vector<8x8x8xbf16>, vector<8x8x8xbf16>, vector<8x8x8xf32> -> vector<8x8x8xf32>
    "tpu.trace_stop"() : () -> ()
    %74 = vector.extract_strided_slice %25 {offsets = [0, 0, 16], sizes = [8, 8, 8], strides = [1, 1, 1]} : vector<8x8x32xbf16> to vector<8x8x8xbf16>
    %75 = vector.extract_strided_slice %27 {offsets = [0, 0, 16], sizes = [8, 8, 8], strides = [1, 1, 1]} : vector<8x8x32xbf16> to vector<8x8x8xbf16>
    "tpu.trace_start"() <{level = 10 : i32, message = "bqd,bkd->bqk"}> : () -> ()
    %cst_43 = arith.constant dense<0.000000e+00> : vector<8x8x8xf32>
    %76 = tpu.matmul %74, %75, %cst_43 {dimension_numbers = #tpu.dot_dimension_numbers<[2], [2], [1], [1], [0, 0, 0, 1, 1, 1], [0], [0]>} : vector<8x8x8xbf16>, vector<8x8x8xbf16>, vector<8x8x8xf32> -> vector<8x8x8xf32>
    "tpu.trace_stop"() : () -> ()
    %c2 = arith.constant 2 : index
    %c0_44 = arith.constant 0 : index
    %c0_45 = arith.constant 0 : index
    %c0_46 = arith.constant 0 : index
    %77 = vector.load %arg2[%c2, %c0_44, %c0_45, %c0_46] : memref<4x8x8x8xf32, #tpu.memory_space<vmem>>, vector<1x8x8x8xf32>
    %78 = vector.shape_cast %77 : vector<1x8x8x8xf32> to vector<8x8x8xf32>
    %79 = arith.addf %76, %78 : vector<8x8x8xf32>
    %c2_47 = arith.constant 2 : index
    %c0_48 = arith.constant 0 : index
    %c0_49 = arith.constant 0 : index
    %c0_50 = arith.constant 0 : index
    %80 = vector.load %arg14[%c2_47, %c0_48, %c0_49, %c0_50] : memref<4x8x8x8xf32, #tpu.memory_space<vmem>>, vector<1x8x8x8xf32>
    %81 = vector.shape_cast %80 : vector<1x8x8x8xf32> to vector<8x8x8xf32>
    %82 = vector.shape_cast %79 : vector<8x8x8xf32> to vector<1x8x8x8xf32>
    tpu.vector_store %arg14[%c2_47, %c0_48, %c0_49, %c0_50], %82 {strides = array<i32>} : memref<4x8x8x8xf32, #tpu.memory_space<vmem>>, vector<1x8x8x8xf32>,
    %cst_51 = arith.constant dense<0xFF800000> : vector<8x8xf32>
    %83 = vector.multi_reduction <maximumf>, %79, %cst_51 [2] : vector<8x8x8xf32> to vector<8x8xf32>
    %84 = vector.shape_cast %83 : vector<8x8xf32> to vector<8x8x1xf32>
    %85 = vector.broadcast %84 : vector<8x8x1xf32> to vector<8x8x8xf32>
    %86 = arith.subf %79, %85 : vector<8x8x8xf32>
    %87 = math.exp %86 : vector<8x8x8xf32>
    %cst_52 = arith.constant dense<0.000000e+00> : vector<8x8xf32>
    %88 = vector.multi_reduction <add>, %87, %cst_52 [2] : vector<8x8x8xf32> to vector<8x8xf32>
    %89 = vector.shape_cast %88 : vector<8x8xf32> to vector<8x8x1xf32>
    %90 = tpu.reciprocal %89 {approx = true} : vector<8x8x1xf32> -> vector<8x8x1xf32>
    %91 = vector.broadcast %90 : vector<8x8x1xf32> to vector<8x8x8xf32>
    %92 = arith.mulf %87, %91 : vector<8x8x8xf32>
    %93 = arith.truncf %92 : vector<8x8x8xf32> to vector<8x8x8xbf16>
    %94 = vector.extract_strided_slice %29 {offsets = [0, 0, 16], sizes = [8, 8, 8], strides = [1, 1, 1]} : vector<8x8x32xbf16> to vector<8x8x8xbf16>
    "tpu.trace_start"() <{level = 10 : i32, message = "bqk,bkd->bqd"}> : () -> ()
    %cst_53 = arith.constant dense<0.000000e+00> : vector<8x8x8xf32>
    %95 = tpu.matmul %93, %94, %cst_53 {dimension_numbers = #tpu.dot_dimension_numbers<[2], [1], [1], [2], [0, 0, 0, 1, 1, 2], [0], [0]>} : vector<8x8x8xbf16>, vector<8x8x8xbf16>, vector<8x8x8xf32> -> vector<8x8x8xf32>
    "tpu.trace_stop"() : () -> ()
    %96 = vector.extract_strided_slice %25 {offsets = [0, 0, 24], sizes = [8, 8, 8], strides = [1, 1, 1]} : vector<8x8x32xbf16> to vector<8x8x8xbf16>
    %97 = vector.extract_strided_slice %27 {offsets = [0, 0, 24], sizes = [8, 8, 8], strides = [1, 1, 1]} : vector<8x8x32xbf16> to vector<8x8x8xbf16>
    "tpu.trace_start"() <{level = 10 : i32, message = "bqd,bkd->bqk"}> : () -> ()
    %cst_54 = arith.constant dense<0.000000e+00> : vector<8x8x8xf32>
    %98 = tpu.matmul %96, %97, %cst_54 {dimension_numbers = #tpu.dot_dimension_numbers<[2], [2], [1], [1], [0, 0, 0, 1, 1, 1], [0], [0]>} : vector<8x8x8xbf16>, vector<8x8x8xbf16>, vector<8x8x8xf32> -> vector<8x8x8xf32>
    "tpu.trace_stop"() : () -> ()
    %c3 = arith.constant 3 : index
    %c0_55 = arith.constant 0 : index
    %c0_56 = arith.constant 0 : index
    %c0_57 = arith.constant 0 : index
    %99 = vector.load %arg2[%c3, %c0_55, %c0_56, %c0_57] : memref<4x8x8x8xf32, #tpu.memory_space<vmem>>, vector<1x8x8x8xf32>
    %100 = vector.shape_cast %99 : vector<1x8x8x8xf32> to vector<8x8x8xf32>
    %101 = arith.addf %98, %100 : vector<8x8x8xf32>
    %c3_58 = arith.constant 3 : index
    %c0_59 = arith.constant 0 : index
    %c0_60 = arith.constant 0 : index
    %c0_61 = arith.constant 0 : index
    %102 = vector.load %arg14[%c3_58, %c0_59, %c0_60, %c0_61] : memref<4x8x8x8xf32, #tpu.memory_space<vmem>>, vector<1x8x8x8xf32>
    %103 = vector.shape_cast %102 : vector<1x8x8x8xf32> to vector<8x8x8xf32>
    %104 = vector.shape_cast %101 : vector<8x8x8xf32> to vector<1x8x8x8xf32>
    tpu.vector_store %arg14[%c3_58, %c0_59, %c0_60, %c0_61], %104 {strides = array<i32>} : memref<4x8x8x8xf32, #tpu.memory_space<vmem>>, vector<1x8x8x8xf32>,
    %cst_62 = arith.constant dense<0xFF800000> : vector<8x8xf32>
    %105 = vector.multi_reduction <maximumf>, %101, %cst_62 [2] : vector<8x8x8xf32> to vector<8x8xf32>
    %106 = vector.shape_cast %105 : vector<8x8xf32> to vector<8x8x1xf32>
    %107 = vector.broadcast %106 : vector<8x8x1xf32> to vector<8x8x8xf32>
    %108 = arith.subf %101, %107 : vector<8x8x8xf32>
    %109 = math.exp %108 : vector<8x8x8xf32>
    %cst_63 = arith.constant dense<0.000000e+00> : vector<8x8xf32>
    %110 = vector.multi_reduction <add>, %109, %cst_63 [2] : vector<8x8x8xf32> to vector<8x8xf32>
    %111 = vector.shape_cast %110 : vector<8x8xf32> to vector<8x8x1xf32>
    %112 = tpu.reciprocal %111 {approx = true} : vector<8x8x1xf32> -> vector<8x8x1xf32>
    %113 = vector.broadcast %112 : vector<8x8x1xf32> to vector<8x8x8xf32>
    %114 = arith.mulf %109, %113 : vector<8x8x8xf32>
    %115 = arith.truncf %114 : vector<8x8x8xf32> to vector<8x8x8xbf16>
    %116 = vector.extract_strided_slice %29 {offsets = [0, 0, 24], sizes = [8, 8, 8], strides = [1, 1, 1]} : vector<8x8x32xbf16> to vector<8x8x8xbf16>
    "tpu.trace_start"() <{level = 10 : i32, message = "bqk,bkd->bqd"}> : () -> ()
    %cst_64 = arith.constant dense<0.000000e+00> : vector<8x8x8xf32>
    %117 = tpu.matmul %115, %116, %cst_64 {dimension_numbers = #tpu.dot_dimension_numbers<[2], [1], [1], [2], [0, 0, 0, 1, 1, 2], [0], [0]>} : vector<8x8x8xbf16>, vector<8x8x8xbf16>, vector<8x8x8xf32> -> vector<8x8x8xf32>
    "tpu.trace_stop"() : () -> ()
    %118 = tpu.concatenate %51, %73, %95, %117 in 2 : vector<8x8x8xf32>, vector<8x8x8xf32>, vector<8x8x8xf32>, vector<8x8x8xf32> -> vector<8x8x32xf32>
    %119 = vector.shape_cast %118 : vector<8x8x32xf32> to vector<64x32xf32>
    %120 = arith.truncf %119 : vector<64x32xf32> to vector<64x32xbf16>
    %c0_65 = arith.constant 0 : index
    %c0_66 = arith.constant 0 : index
    %121 = vector.load %arg11[%c0_65, %c0_66] : memref<32x32xbf16, #tpu.memory_space<vmem>>, vector<32x32xbf16>
    %cst_67 = arith.constant dense<0.000000e+00> : vector<64x32xf32>
    %122 = tpu.matmul %120, %121, %cst_67 {dimension_numbers = #tpu.dot_dimension_numbers<[1], [0], [0], [1], [0, 0, 1, 1], [], []>} : vector<64x32xbf16>, vector<32x32xbf16>, vector<64x32xf32> -> vector<64x32xf32>
    %c0_68 = arith.constant 0 : index
    %c0_69 = arith.constant 0 : index
    %123 = vector.load %arg12[%c0_68, %c0_69] : memref<1x32xf32, #tpu.memory_space<vmem>>, vector<1x32xf32>
    %124 = vector.broadcast %123 : vector<1x32xf32> to vector<64x32xf32>
    %125 = arith.addf %122, %124 : vector<64x32xf32>
    %126 = arith.addf %7, %125 : vector<64x32xf32>
    %127 = vector.shape_cast %126 : vector<64x32xf32> to vector<8x8x32xf32>
    %c0_70 = arith.constant 0 : index
    %c0_71 = arith.constant 0 : index
    %c0_72 = arith.constant 0 : index
    %128 = vector.load %arg13[%c0_70, %c0_71, %c0_72] : memref<8x8x32xf32, #tpu.memory_space<vmem>>, vector<8x8x32xf32>
    tpu.vector_store %arg13[%c0_70, %c0_71, %c0_72], %127 {strides = array<i32>} : memref<8x8x32xf32, #tpu.memory_space<vmem>>, vector<8x8x32xf32>,
    %cst_73 = arith.constant dense<0.000000e+00> : vector<32xf32>
    %129 = vector.multi_reduction <add>, %126, %cst_73 [0] : vector<64x32xf32> to vector<32xf32>
    %130 = vector.shape_cast %129 : vector<32xf32> to vector<1x32xf32>
    %131 = arith.mulf %126, %126 : vector<64x32xf32>
    %cst_74 = arith.constant dense<0.000000e+00> : vector<32xf32>
    %132 = vector.multi_reduction <add>, %131, %cst_74 [0] : vector<64x32xf32> to vector<32xf32>
    %133 = vector.shape_cast %132 : vector<32xf32> to vector<1x32xf32>
    %134 = tpu.concatenate %130, %133 in 0 : vector<1x32xf32>, vector<1x32xf32> -> vector<2x32xf32>
    %135 = vector.shape_cast %134 : vector<2x32xf32> to vector<1x2x32xf32>
    %c0_75 = arith.constant 0 : index
    %c0_76 = arith.constant 0 : index
    %c0_77 = arith.constant 0 : index
    %136 = vector.load %arg15[%c0_75, %c0_76, %c0_77] : memref<1x2x32xf32, #tpu.memory_space<vmem>>, vector<1x2x32xf32>
    tpu.vector_store %arg15[%c0_75, %c0_76, %c0_77], %135 {strides = array<i32>} : memref<1x2x32xf32, #tpu.memory_space<vmem>>, vector<1x2x32xf32>,
    return
  }
  func.func @transform_0(%arg0: i32) -> (i32, i32, i32) {
    %c0_i32 = arith.constant 0 : i32
    %c0_i32_0 = arith.constant 0 : i32
    %c0_i32_1 = arith.constant 0 : i32
    return %arg0, %c0_i32, %c0_i32_0 : i32, i32, i32
  }
  func.func @transform_1(%arg0: i32) -> (i32, i32, i32, i32) {
    %c0_i32 = arith.constant 0 : i32
    %c0_i32_0 = arith.constant 0 : i32
    %c0_i32_1 = arith.constant 0 : i32
    %c0_i32_2 = arith.constant 0 : i32
    return %c0_i32, %arg0, %c0_i32_0, %c0_i32_1 : i32, i32, i32, i32
  }
  func.func @transform_2(%arg0: i32) -> (i32, i32) {
    %c0_i32 = arith.constant 0 : i32
    %c0_i32_0 = arith.constant 0 : i32
    %c0_i32_1 = arith.constant 0 : i32
    return %c0_i32, %c0_i32_0 : i32, i32
  }
  func.func @transform_3(%arg0: i32) -> (i32, i32) {
    %c0_i32 = arith.constant 0 : i32
    %c0_i32_0 = arith.constant 0 : i32
    %c0_i32_1 = arith.constant 0 : i32
    return %c0_i32, %c0_i32_0 : i32, i32
  }
  func.func @transform_4(%arg0: i32) -> (i32, i32) {
    %c0_i32 = arith.constant 0 : i32
    %c0_i32_0 = arith.constant 0 : i32
    %c0_i32_1 = arith.constant 0 : i32
    return %c0_i32, %c0_i32_0 : i32, i32
  }
  func.func @transform_5(%arg0: i32) -> (i32, i32) {
    %c0_i32 = arith.constant 0 : i32
    %c0_i32_0 = arith.constant 0 : i32
    %c0_i32_1 = arith.constant 0 : i32
    return %c0_i32, %c0_i32_0 : i32, i32
  }
  func.func @transform_6(%arg0: i32) -> (i32, i32) {
    %c0_i32 = arith.constant 0 : i32
    %c0_i32_0 = arith.constant 0 : i32
    %c0_i32_1 = arith.constant 0 : i32
    return %c0_i32, %c0_i32_0 : i32, i32
  }
  func.func @transform_7(%arg0: i32) -> (i32, i32) {
    %c0_i32 = arith.constant 0 : i32
    %c0_i32_0 = arith.constant 0 : i32
    %c0_i32_1 = arith.constant 0 : i32
    return %c0_i32, %c0_i32_0 : i32, i32
  }
  func.func @transform_8(%arg0: i32) -> (i32, i32) {
    %c0_i32 = arith.constant 0 : i32
    %c0_i32_0 = arith.constant 0 : i32
    %c0_i32_1 = arith.constant 0 : i32
    return %c0_i32, %c0_i32_0 : i32, i32
  }
  func.func @transform_9(%arg0: i32) -> (i32, i32) {
    %c0_i32 = arith.constant 0 : i32
    %c0_i32_0 = arith.constant 0 : i32
    %c0_i32_1 = arith.constant 0 : i32
    return %c0_i32, %c0_i32_0 : i32, i32
  }
  func.func @transform_10(%arg0: i32) -> (i32, i32) {
    %c0_i32 = arith.constant 0 : i32
    %c0_i32_0 = arith.constant 0 : i32
    %c0_i32_1 = arith.constant 0 : i32
    return %c0_i32, %c0_i32_0 : i32, i32
  }
  func.func @transform_11(%arg0: i32) -> (i32, i32) {
    %c0_i32 = arith.constant 0 : i32
    %c0_i32_0 = arith.constant 0 : i32
    %c0_i32_1 = arith.constant 0 : i32
    return %c0_i32, %c0_i32_0 : i32, i32
  }
  func.func @transform_12(%arg0: i32) -> (i32, i32, i32) {
    %c0_i32 = arith.constant 0 : i32
    %c0_i32_0 = arith.constant 0 : i32
    %c0_i32_1 = arith.constant 0 : i32
    return %arg0, %c0_i32, %c0_i32_0 : i32, i32, i32
  }
  func.func @transform_13(%arg0: i32) -> (i32, i32, i32, i32) {
    %c0_i32 = arith.constant 0 : i32
    %c0_i32_0 = arith.constant 0 : i32
    %c0_i32_1 = arith.constant 0 : i32
    %c0_i32_2 = arith.constant 0 : i32
    return %c0_i32, %arg0, %c0_i32_0, %c0_i32_1 : i32, i32, i32, i32
  }
  func.func @transform_14(%arg0: i32) -> (i32, i32, i32) {
    %c0_i32 = arith.constant 0 : i32
    %c0_i32_0 = arith.constant 0 : i32
    %c0_i32_1 = arith.constant 0 : i32
    return %arg0, %c0_i32, %c0_i32_0 : i32, i32, i32
  }
}

module attributes {stable_mosaic.version = 11 : i64} {
  func.func @ffn_kernel(%arg0: i32, %arg1: memref<8x8x32xf32, #tpu.memory_space<vmem>>, %arg2: memref<1x32xf32, #tpu.memory_space<vmem>>, %arg3: memref<1x32xf32, #tpu.memory_space<vmem>>, %arg4: memref<32x64xbf16, #tpu.memory_space<vmem>>, %arg5: memref<1x64xf32, #tpu.memory_space<vmem>>, %arg6: memref<64x32xbf16, #tpu.memory_space<vmem>>, %arg7: memref<1x32xf32, #tpu.memory_space<vmem>>, %arg8: memref<8x8x32xf32, #tpu.memory_space<vmem>>, %arg9: memref<1x2x32xf32, #tpu.memory_space<vmem>>) attributes {dimension_semantics = [#tpu.dimension_semantics<parallel>], iteration_bounds = array<i64: 1>, scalar_prefetch = 0 : i64, scratch_operands = 0 : i64, tpu.core_type = #tpu.core_type<tc>, window_params = [{transform_indices = @transform_0, window_bounds = array<i64: 8, 8, 32>}, {pipeline_mode = #tpu.pipeline_mode<synchronous>, transform_indices = @transform_1, window_bounds = array<i64: 1, 32>}, {pipeline_mode = #tpu.pipeline_mode<synchronous>, transform_indices = @transform_2, window_bounds = array<i64: 1, 32>}, {pipeline_mode = #tpu.pipeline_mode<synchronous>, transform_indices = @transform_3, window_bounds = array<i64: 32, 64>}, {pipeline_mode = #tpu.pipeline_mode<synchronous>, transform_indices = @transform_4, window_bounds = array<i64: 1, 64>}, {pipeline_mode = #tpu.pipeline_mode<synchronous>, transform_indices = @transform_5, window_bounds = array<i64: 64, 32>}, {pipeline_mode = #tpu.pipeline_mode<synchronous>, transform_indices = @transform_6, window_bounds = array<i64: 1, 32>}, {transform_indices = @transform_7, window_bounds = array<i64: 8, 8, 32>}, {transform_indices = @transform_8, window_bounds = array<i64: 1, 2, 32>}]} {
    %c0 = arith.constant 0 : index
    %c0_0 = arith.constant 0 : index
    %c0_1 = arith.constant 0 : index
    %0 = vector.load %arg1[%c0, %c0_0, %c0_1] : memref<8x8x32xf32, #tpu.memory_space<vmem>>, vector<8x8x32xf32>
    %1 = vector.shape_cast %0 : vector<8x8x32xf32> to vector<64x32xf32>
    %c0_2 = arith.constant 0 : index
    %c0_3 = arith.constant 0 : index
    %2 = vector.load %arg2[%c0_2, %c0_3] : memref<1x32xf32, #tpu.memory_space<vmem>>, vector<1x32xf32>
    %3 = vector.broadcast %2 : vector<1x32xf32> to vector<64x32xf32>
    %4 = arith.mulf %1, %3 : vector<64x32xf32>
    %c0_4 = arith.constant 0 : index
    %c0_5 = arith.constant 0 : index
    %5 = vector.load %arg3[%c0_4, %c0_5] : memref<1x32xf32, #tpu.memory_space<vmem>>, vector<1x32xf32>
    %6 = vector.broadcast %5 : vector<1x32xf32> to vector<64x32xf32>
    %7 = arith.addf %4, %6 : vector<64x32xf32>
    %8 = arith.truncf %7 : vector<64x32xf32> to vector<64x32xbf16>
    %c0_6 = arith.constant 0 : index
    %c0_7 = arith.constant 0 : index
    %9 = vector.load %arg4[%c0_6, %c0_7] : memref<32x64xbf16, #tpu.memory_space<vmem>>, vector<32x64xbf16>
    %cst = arith.constant dense<0.000000e+00> : vector<64x64xf32>
    %10 = tpu.matmul %8, %9, %cst {dimension_numbers = #tpu.dot_dimension_numbers<[1], [0], [0], [1], [0, 0, 1, 1], [], []>} : vector<64x32xbf16>, vector<32x64xbf16>, vector<64x64xf32> -> vector<64x64xf32>
    %c0_8 = arith.constant 0 : index
    %c0_9 = arith.constant 0 : index
    %11 = vector.load %arg5[%c0_8, %c0_9] : memref<1x64xf32, #tpu.memory_space<vmem>>, vector<1x64xf32>
    %12 = vector.broadcast %11 : vector<1x64xf32> to vector<64x64xf32>
    %13 = arith.addf %10, %12 : vector<64x64xf32>
    %cst_10 = arith.constant 5.000000e-01 : f32
    %14 = vector.broadcast %cst_10 : f32 to vector<64x64xf32>
    %15 = arith.mulf %14, %13 : vector<64x64xf32>
    %cst_11 = arith.constant 0.707106769 : f32
    %16 = vector.broadcast %cst_11 : f32 to vector<64x64xf32>
    %17 = arith.mulf %13, %16 : vector<64x64xf32>
    %18 = math.absf %17 : vector<64x64xf32>
    %cst_12 = arith.constant 0.327591091 : f32
    %19 = vector.broadcast %cst_12 : f32 to vector<64x64xf32>
    %20 = arith.mulf %19, %18 : vector<64x64xf32>
    %cst_13 = arith.constant 1.000000e+00 : f32
    %21 = vector.broadcast %cst_13 : f32 to vector<64x64xf32>
    %22 = arith.addf %21, %20 : vector<64x64xf32>
    %cst_14 = arith.constant 1.000000e+00 : f32
    %23 = vector.broadcast %cst_14 : f32 to vector<64x64xf32>
    %24 = arith.divf %23, %22 : vector<64x64xf32>
    %cst_15 = arith.constant 1.06140542 : f32
    %25 = vector.broadcast %cst_15 : f32 to vector<64x64xf32>
    %26 = arith.mulf %25, %24 : vector<64x64xf32>
    %cst_16 = arith.constant -1.45315206 : f32
    %27 = vector.broadcast %cst_16 : f32 to vector<64x64xf32>
    %28 = arith.addf %26, %27 : vector<64x64xf32>
    %29 = arith.mulf %28, %24 : vector<64x64xf32>
    %cst_17 = arith.constant 1.42141378 : f32
    %30 = vector.broadcast %cst_17 : f32 to vector<64x64xf32>
    %31 = arith.addf %29, %30 : vector<64x64xf32>
    %32 = arith.mulf %31, %24 : vector<64x64xf32>
    %cst_18 = arith.constant -0.284496725 : f32
    %33 = vector.broadcast %cst_18 : f32 to vector<64x64xf32>
    %34 = arith.addf %32, %33 : vector<64x64xf32>
    %35 = arith.mulf %34, %24 : vector<64x64xf32>
    %cst_19 = arith.constant 0.254829586 : f32
    %36 = vector.broadcast %cst_19 : f32 to vector<64x64xf32>
    %37 = arith.addf %35, %36 : vector<64x64xf32>
    %38 = arith.mulf %37, %24 : vector<64x64xf32>
    %cst_20 = arith.constant 0.000000e+00 : f32
    %39 = vector.broadcast %cst_20 : f32 to vector<64x64xf32>
    %40 = arith.subf %39, %18 : vector<64x64xf32>
    %41 = arith.mulf %40, %18 : vector<64x64xf32>
    %42 = math.exp %41 : vector<64x64xf32>
    %43 = arith.mulf %38, %42 : vector<64x64xf32>
    %cst_21 = arith.constant 1.000000e+00 : f32
    %44 = vector.broadcast %cst_21 : f32 to vector<64x64xf32>
    %45 = arith.subf %44, %43 : vector<64x64xf32>
    %cst_22 = arith.constant 0.000000e+00 : f32
    %46 = vector.broadcast %cst_22 : f32 to vector<64x64xf32>
    %47 = arith.cmpf oge, %17, %46 : vector<64x64xf32>
    %cst_23 = arith.constant 0.000000e+00 : f32
    %48 = vector.broadcast %cst_23 : f32 to vector<64x64xf32>
    %49 = arith.subf %48, %45 : vector<64x64xf32>
    %50 = arith.select %47, %45, %49 : vector<64x64xi1>, vector<64x64xf32>
    %cst_24 = arith.constant 1.000000e+00 : f32
    %51 = vector.broadcast %cst_24 : f32 to vector<64x64xf32>
    %52 = arith.addf %51, %50 : vector<64x64xf32>
    %53 = arith.mulf %15, %52 : vector<64x64xf32>
    %54 = arith.truncf %53 : vector<64x64xf32> to vector<64x64xbf16>
    %c0_25 = arith.constant 0 : index
    %c0_26 = arith.constant 0 : index
    %55 = vector.load %arg6[%c0_25, %c0_26] : memref<64x32xbf16, #tpu.memory_space<vmem>>, vector<64x32xbf16>
    %cst_27 = arith.constant dense<0.000000e+00> : vector<64x32xf32>
    %56 = tpu.matmul %54, %55, %cst_27 {dimension_numbers = #tpu.dot_dimension_numbers<[1], [0], [0], [1], [0, 0, 1, 1], [], []>} : vector<64x64xbf16>, vector<64x32xbf16>, vector<64x32xf32> -> vector<64x32xf32>
    %c0_28 = arith.constant 0 : index
    %c0_29 = arith.constant 0 : index
    %57 = vector.load %arg7[%c0_28, %c0_29] : memref<1x32xf32, #tpu.memory_space<vmem>>, vector<1x32xf32>
    %58 = vector.broadcast %57 : vector<1x32xf32> to vector<64x32xf32>
    %59 = arith.addf %56, %58 : vector<64x32xf32>
    %60 = arith.addf %7, %59 : vector<64x32xf32>
    %61 = vector.shape_cast %60 : vector<64x32xf32> to vector<8x8x32xf32>
    %c0_30 = arith.constant 0 : index
    %c0_31 = arith.constant 0 : index
    %c0_32 = arith.constant 0 : index
    %62 = vector.load %arg8[%c0_30, %c0_31, %c0_32] : memref<8x8x32xf32, #tpu.memory_space<vmem>>, vector<8x8x32xf32>
    tpu.vector_store %arg8[%c0_30, %c0_31, %c0_32], %61 {strides = array<i32>} : memref<8x8x32xf32, #tpu.memory_space<vmem>>, vector<8x8x32xf32>,
    %cst_33 = arith.constant dense<0.000000e+00> : vector<32xf32>
    %63 = vector.multi_reduction <add>, %60, %cst_33 [0] : vector<64x32xf32> to vector<32xf32>
    %64 = vector.shape_cast %63 : vector<32xf32> to vector<1x32xf32>
    %65 = arith.mulf %60, %60 : vector<64x32xf32>
    %cst_34 = arith.constant dense<0.000000e+00> : vector<32xf32>
    %66 = vector.multi_reduction <add>, %65, %cst_34 [0] : vector<64x32xf32> to vector<32xf32>
    %67 = vector.shape_cast %66 : vector<32xf32> to vector<1x32xf32>
    %68 = tpu.concatenate %64, %67 in 0 : vector<1x32xf32>, vector<1x32xf32> -> vector<2x32xf32>
    %69 = vector.shape_cast %68 : vector<2x32xf32> to vector<1x2x32xf32>
    %c0_35 = arith.constant 0 : index
    %c0_36 = arith.constant 0 : index
    %c0_37 = arith.constant 0 : index
    %70 = vector.load %arg9[%c0_35, %c0_36, %c0_37] : memref<1x2x32xf32, #tpu.memory_space<vmem>>, vector<1x2x32xf32>
    tpu.vector_store %arg9[%c0_35, %c0_36, %c0_37], %69 {strides = array<i32>} : memref<1x2x32xf32, #tpu.memory_space<vmem>>, vector<1x2x32xf32>,
    return
  }
  func.func @transform_0(%arg0: i32) -> (i32, i32, i32) {
    %c0_i32 = arith.constant 0 : i32
    %c0_i32_0 = arith.constant 0 : i32
    %c0_i32_1 = arith.constant 0 : i32
    return %arg0, %c0_i32, %c0_i32_0 : i32, i32, i32
  }
  func.func @transform_1(%arg0: i32) -> (i32, i32) {
    %c0_i32 = arith.constant 0 : i32
    %c0_i32_0 = arith.constant 0 : i32
    %c0_i32_1 = arith.constant 0 : i32
    return %c0_i32, %c0_i32_0 : i32, i32
  }
  func.func @transform_2(%arg0: i32) -> (i32, i32) {
    %c0_i32 = arith.constant 0 : i32
    %c0_i32_0 = arith.constant 0 : i32
    %c0_i32_1 = arith.constant 0 : i32
    return %c0_i32, %c0_i32_0 : i32, i32
  }
  func.func @transform_3(%arg0: i32) -> (i32, i32) {
    %c0_i32 = arith.constant 0 : i32
    %c0_i32_0 = arith.constant 0 : i32
    %c0_i32_1 = arith.constant 0 : i32
    return %c0_i32, %c0_i32_0 : i32, i32
  }
  func.func @transform_4(%arg0: i32) -> (i32, i32) {
    %c0_i32 = arith.constant 0 : i32
    %c0_i32_0 = arith.constant 0 : i32
    %c0_i32_1 = arith.constant 0 : i32
    return %c0_i32, %c0_i32_0 : i32, i32
  }
  func.func @transform_5(%arg0: i32) -> (i32, i32) {
    %c0_i32 = arith.constant 0 : i32
    %c0_i32_0 = arith.constant 0 : i32
    %c0_i32_1 = arith.constant 0 : i32
    return %c0_i32, %c0_i32_0 : i32, i32
  }
  func.func @transform_6(%arg0: i32) -> (i32, i32) {
    %c0_i32 = arith.constant 0 : i32
    %c0_i32_0 = arith.constant 0 : i32
    %c0_i32_1 = arith.constant 0 : i32
    return %c0_i32, %c0_i32_0 : i32, i32
  }
  func.func @transform_7(%arg0: i32) -> (i32, i32, i32) {
    %c0_i32 = arith.constant 0 : i32
    %c0_i32_0 = arith.constant 0 : i32
    %c0_i32_1 = arith.constant 0 : i32
    return %arg0, %c0_i32, %c0_i32_0 : i32, i32, i32
  }
  func.func @transform_8(%arg0: i32) -> (i32, i32, i32) {
    %c0_i32 = arith.constant 0 : i32
    %c0_i32_0 = arith.constant 0 : i32
    %c0_i32_1 = arith.constant 0 : i32
    return %arg0, %c0_i32, %c0_i32_0 : i32, i32, i32
  }
}

module attributes {stable_mosaic.version = 11 : i64} {
  func.func @head_kernel(%arg0: i32, %arg1: memref<8x256xf32, #tpu.memory_space<vmem>>, %arg2: memref<1x256xf32, #tpu.memory_space<vmem>>, %arg3: memref<1x256xf32, #tpu.memory_space<vmem>>, %arg4: memref<256x8xbf16, #tpu.memory_space<vmem>>, %arg5: memref<1x8xf32, #tpu.memory_space<vmem>>, %arg6: memref<8x8xf32, #tpu.memory_space<vmem>>) attributes {dimension_semantics = [#tpu.dimension_semantics<parallel>], iteration_bounds = array<i64: 1>, scalar_prefetch = 0 : i64, scratch_operands = 0 : i64, tpu.core_type = #tpu.core_type<tc>, window_params = [{transform_indices = @transform_0, window_bounds = array<i64: 8, 256>}, {pipeline_mode = #tpu.pipeline_mode<synchronous>, transform_indices = @transform_1, window_bounds = array<i64: 1, 256>}, {pipeline_mode = #tpu.pipeline_mode<synchronous>, transform_indices = @transform_2, window_bounds = array<i64: 1, 256>}, {pipeline_mode = #tpu.pipeline_mode<synchronous>, transform_indices = @transform_3, window_bounds = array<i64: 256, 8>}, {pipeline_mode = #tpu.pipeline_mode<synchronous>, transform_indices = @transform_4, window_bounds = array<i64: 1, 8>}, {transform_indices = @transform_5, window_bounds = array<i64: 8, 8>}]} {
    %c0 = arith.constant 0 : index
    %c0_0 = arith.constant 0 : index
    %0 = vector.load %arg1[%c0, %c0_0] : memref<8x256xf32, #tpu.memory_space<vmem>>, vector<8x256xf32>
    %c0_1 = arith.constant 0 : index
    %c0_2 = arith.constant 0 : index
    %1 = vector.load %arg2[%c0_1, %c0_2] : memref<1x256xf32, #tpu.memory_space<vmem>>, vector<1x256xf32>
    %2 = vector.broadcast %1 : vector<1x256xf32> to vector<8x256xf32>
    %3 = arith.mulf %0, %2 : vector<8x256xf32>
    %c0_3 = arith.constant 0 : index
    %c0_4 = arith.constant 0 : index
    %4 = vector.load %arg3[%c0_3, %c0_4] : memref<1x256xf32, #tpu.memory_space<vmem>>, vector<1x256xf32>
    %5 = vector.broadcast %4 : vector<1x256xf32> to vector<8x256xf32>
    %6 = arith.addf %3, %5 : vector<8x256xf32>
    %7 = arith.truncf %6 : vector<8x256xf32> to vector<8x256xbf16>
    %c0_5 = arith.constant 0 : index
    %c0_6 = arith.constant 0 : index
    %8 = vector.load %arg4[%c0_5, %c0_6] : memref<256x8xbf16, #tpu.memory_space<vmem>>, vector<256x8xbf16>
    %cst = arith.constant dense<0.000000e+00> : vector<8x8xf32>
    %9 = tpu.matmul %7, %8, %cst {dimension_numbers = #tpu.dot_dimension_numbers<[1], [0], [0], [1], [0, 0, 1, 1], [], []>} : vector<8x256xbf16>, vector<256x8xbf16>, vector<8x8xf32> -> vector<8x8xf32>
    %c0_7 = arith.constant 0 : index
    %c0_8 = arith.constant 0 : index
    %10 = vector.load %arg5[%c0_7, %c0_8] : memref<1x8xf32, #tpu.memory_space<vmem>>, vector<1x8xf32>
    %11 = vector.broadcast %10 : vector<1x8xf32> to vector<8x8xf32>
    %12 = arith.addf %9, %11 : vector<8x8xf32>
    %c0_9 = arith.constant 0 : index
    %c0_10 = arith.constant 0 : index
    %13 = vector.load %arg6[%c0_9, %c0_10] : memref<8x8xf32, #tpu.memory_space<vmem>>, vector<8x8xf32>
    tpu.vector_store %arg6[%c0_9, %c0_10], %12 {strides = array<i32>} : memref<8x8xf32, #tpu.memory_space<vmem>>, vector<8x8xf32>,
    return
  }
  func.func @transform_0(%arg0: i32) -> (i32, i32) {
    %c0_i32 = arith.constant 0 : i32
    %c0_i32_0 = arith.constant 0 : i32
    return %arg0, %c0_i32 : i32, i32
  }
  func.func @transform_1(%arg0: i32) -> (i32, i32) {
    %c0_i32 = arith.constant 0 : i32
    %c0_i32_0 = arith.constant 0 : i32
    %c0_i32_1 = arith.constant 0 : i32
    return %c0_i32, %c0_i32_0 : i32, i32
  }
  func.func @transform_2(%arg0: i32) -> (i32, i32) {
    %c0_i32 = arith.constant 0 : i32
    %c0_i32_0 = arith.constant 0 : i32
    %c0_i32_1 = arith.constant 0 : i32
    return %c0_i32, %c0_i32_0 : i32, i32
  }
  func.func @transform_3(%arg0: i32) -> (i32, i32) {
    %c0_i32 = arith.constant 0 : i32
    %c0_i32_0 = arith.constant 0 : i32
    %c0_i32_1 = arith.constant 0 : i32
    return %c0_i32, %c0_i32_0 : i32, i32
  }
  func.func @transform_4(%arg0: i32) -> (i32, i32) {
    %c0_i32 = arith.constant 0 : i32
    %c0_i32_0 = arith.constant 0 : i32
    %c0_i32_1 = arith.constant 0 : i32
    return %c0_i32, %c0_i32_0 : i32, i32
  }
  func.func @transform_5(%arg0: i32) -> (i32, i32) {
    %c0_i32 = arith.constant 0 : i32
    %c0_i32_0 = arith.constant 0 : i32
    return %arg0, %c0_i32 : i32, i32
  }
}

</mosaic_0001>

<llo_original>
// kernel: tile.10
$region0: #{tile.10}
  #allocation0 [shape = 's32[1]{0}', space=sflag, size = 0x4, scoped, tag = 'scoped memory for tile.10']
  %s0 = inlined_call_operand.vmem [shape: f32[32], index: 0, kind: input, shape index: {}]
  %s1 = inlined_call_operand.vmem [shape: f32[8,32], index: 1, kind: output, shape index: {}]
  // Predicated region
  $region2: #{tile.10} parent=0 // pred_check
    _
  $region3: #{tile.10} parent=0 // pred_check_branch
    %3 = sbr.rel (0) target = $region5
  $region4: #{tile.10} parent=0 // pred_region
    _
  $region5: #{tile.10} parent=0 // pred_fallthru
    _
  %v4 = vld [vmem:[%s0] ss:$0 sm:$0xff]
  %5 = vst [vmem:[%s1] sm:$0xff] %v4

// kernel: tile.11
$region0: #{tile.11}
  %s0 = inlined_call_operand.vmem [shape: f32[8,32], index: 0, kind: input, shape index: {}]
  %s1 = inlined_call_operand.vmem [shape: f32[1,256], index: 1, kind: output, shape index: {}]
  $region1: #{tile.11} parent=0
    #allocation0 [shape = 'u8[8192]{0}', space=vmem, size = 0x2000, scoped, tag = 'scoped mem for output reshape']
    %s2 = smov 3
    %v3 = vld [vmem:[%s0] ss:$4 sm:%s2]
    %vm4 = vcmask 261120
    %5 = vst.msk [vmem:[#allocation0] ss:$8 sm:$0x3] %vm4, %v3
    %s6 = scalar_lea.vmem %s0, 3
    %s7 = smov 3
    %v8 = vld [vmem:[%s6] ss:$4 sm:%s7]
    %9 = vrot.lane.b32.xlu0 %v8, 96
    %v10 = vpop.permute.xlu0 %9
    %vm11 = vcmask 1048320
    %12 = vst.msk [vmem:[#allocation0] ss:$8 sm:$0x3] %vm11, %v10
    %s13 = scalar_lea.vmem %s0, 2
    %s14 = smov 3
    %v15 = vld [vmem:[%s13] ss:$4 sm:%s14]
    %16 = vrot.lane.b32.xlu0 %v15, 64
    %v17 = vpop.permute.xlu0 %16
    %vm18 = vcmask 785920
    %19 = vst.msk [vmem:[#allocation0] ss:$8 sm:$0x3] %vm18, %v17
    %s20 = scalar_lea.vmem %s0, 1
    %s21 = smov 3
    %v22 = vld [vmem:[%s20] ss:$4 sm:%s21]
    %23 = vrot.lane.b32.xlu0 %v22, 32
    %v24 = vpop.permute.xlu0 %23
    %vm25 = vcmask 523520
    %26 = vst.msk [vmem:[#allocation0] ss:$8 sm:$0x3] %vm25, %v24
    %s28 = ssub.s32 2, 1
    %v29 = vld [vmem:[#allocation0] sm:%s28]
    %s31 = ssub.s32 2, 1
    %32 = vst [vmem:[%s1] sm:%s31] %v29
    %s33 = scalar_lea.vmem [#allocation0], 8
    %v34 = vld [vmem:[%s33] sm:%s28]
    %s36 = ssub.s32 2, 1
    %s37 = scalar_lea.vmem %s1, 1
    %38 = vst [vmem:[%s37] sm:%s36] %v34

// kernel: patchtst_forward.6
$region0: #{patchtst_forward.6}
  #allocation0 [shape = 'u32[]', space=smem, size = 0x4, offset = 0x4, fixed_abs, tag = 'smem constant byte address 0x4 - core index']
  #allocation1 [shape = 'u32[72,128]{1,0:T(1,128)}', space=vmem, size = 0x9000, scoped, tag = 'internal scratch']
  %s0 = inlined_call_operand.vmem [shape: f32[8,8,4], index: 0, kind: input, shape index: {}]
  %s1 = inlined_call_operand.vmem [shape: bf16[4,32], index: 1, kind: input, shape index: {}]
  %s2 = inlined_call_operand.vmem [shape: f32[1,32], index: 2, kind: input, shape index: {}]
  %s3 = inlined_call_operand.vmem [shape: f32[8,32], index: 3, kind: input, shape index: {}]
  %s4 = inlined_call_operand.vmem [shape: f32[8,8,32], index: 4, kind: output, shape index: {}]
  %s5 = sld [smem:[#allocation0]]
  $region26: #{patchtst_forward.6} parent=0
    _
  %s7 = ssub.s32 1, %s5
  %s8 = scalar_select 0, %s7, %s5
  // Predicated region
  $region2: #{patchtst_forward.6} parent=0 // pred_check
    _
  $region3: #{patchtst_forward.6} parent=0 // pred_check_branch
    %10 = sbr.rel (0) target = $region5
  $region4: #{patchtst_forward.6} parent=0 // pred_region
    _
  $region5: #{patchtst_forward.6} parent=0 // pred_fallthru
    _
  // Predicated region
  $region6: #{patchtst_forward.6} parent=0 // pred_check
    _
  $region7: #{patchtst_forward.6} parent=0 // pred_check_branch
    %12 = sbr.rel (0) target = $region9
  $region8: #{patchtst_forward.6} parent=0 // pred_region
    _
  $region9: #{patchtst_forward.6} parent=0 // pred_fallthru
    _
  // Predicated region
  $region10: #{patchtst_forward.6} parent=0 // pred_check
    _
  $region11: #{patchtst_forward.6} parent=0 // pred_check_branch
    %14 = sbr.rel (0) target = $region13
  $region12: #{patchtst_forward.6} parent=0 // pred_region
    _
  $region13: #{patchtst_forward.6} parent=0 // pred_fallthru
    _
  // Predicated region
  $region14: #{patchtst_forward.6} parent=0 // pred_check
    _
  $region15: #{patchtst_forward.6} parent=0 // pred_check_branch
    %16 = sbr.rel (0) target = $region17
  $region16: #{patchtst_forward.6} parent=0 // pred_region
    _
  $region17: #{patchtst_forward.6} parent=0 // pred_fallthru
    _
  %v18 = vld [vmem:[%s0] sm:$0xff]
  %v19 = vld [vmem:[%s0 + $0x8] sm:$0xff]
  %v20 = vld [vmem:[%s0 + $0x10] sm:$0xff]
  %v21 = vld [vmem:[%s0 + $0x18] sm:$0xff]
  %v22 = vld [vmem:[%s0 + $0x20] sm:$0xff]
  %v23 = vld [vmem:[%s0 + $0x28] sm:$0xff]
  %v24 = vld [vmem:[%s0 + $0x30] sm:$0xff]
  %v25 = vld [vmem:[%s0 + $0x38] sm:$0xff]
  %v26 = vpack.c.bf16 %v19, %v18
  %v27 = vpack.c.bf16 %v21, %v20
  %v28 = vpack.c.bf16 %v23, %v22
  %v29 = vpack.c.bf16 %v25, %v24
  %v30 = vld [vmem:[%s1] sm:$0x3]
  %v31 = vld [vmem:[%s2] sm:$0x1]
  %v33 = vperm.slane %v31, 0
  %vm35 = vcmask 31744
  %v37 = vsel %vm35, %v26, 0
  %v40 = vsel %vm35, %v27, 0
  %v43 = vsel %vm35, %v28, 0
  %v46 = vsel %vm35, %v29, 0
  %vm48 = vcmask 1041408
  %v50 = vsel %vm48, %v30, 0
  %52 = vmatpush.bf16.msra.mxu0 0
  %53 = vmatpush.bf16.msra.mxu0 0
  %54 = vmatpush.bf16.msra.mxu0 0
  %55 = vmatpush.bf16.msra.mxu0 0
  %56 = vmatpush.bf16.msra.mxu0 0
  %57 = vmatpush.bf16.msra.mxu0 0
  %58 = vmatpush.bf16.msra.mxu0 0
  %59 = vmatpush.bf16.msra.mxu0 %v50
  %60 = vmatmul.bf16.gmra.mxu0 %v37
  %v61 = vpop.f32.mrf.mxu0
  %v62 = vadd.f32 %v33, %v61
  %v63 = vpop.f32.mrf.mxu0
  %v64 = vadd.f32 %v33, %v63
  %65 = vmatmul.bf16.gmra.mxu0 %v40
  %v66 = vpop.f32.mrf.mxu0
  %v67 = vadd.f32 %v33, %v66
  %v68 = vpop.f32.mrf.mxu0
  %v69 = vadd.f32 %v33, %v68
  %70 = vmatmul.bf16.gmra.mxu0 %v43
  %v71 = vpop.f32.mrf.mxu0
  %v72 = vadd.f32 %v33, %v71
  %v73 = vpop.f32.mrf.mxu0
  %v74 = vadd.f32 %v33, %v73
  %75 = vmatmul.bf16.gmra.mxu0 %v46
  %v76 = vpop.f32.mrf.mxu0
  %v77 = vadd.f32 %v33, %v76
  %v78 = vpop.f32.mrf.mxu0
  %v79 = vadd.f32 %v33, %v78
  %80 = vdwg.mxu0
  %v81 = vld [vmem:[%s3] sm:$0xff]
  %v82 = vadd.f32 %v62, %v81
  %v83 = vadd.f32 %v64, %v81
  %v84 = vadd.f32 %v67, %v81
  %v85 = vadd.f32 %v69, %v81
  %v86 = vadd.f32 %v72, %v81
  %v87 = vadd.f32 %v74, %v81
  %v88 = vadd.f32 %v77, %v81
  %v89 = vadd.f32 %v79, %v81
  %vm90 = vcmask 261120
  %91 = vst.msk [vmem:[%s4] sm:$0xff] %vm90, %v82
  %92 = vst.msk [vmem:[%s4 + $0x8] sm:$0xff] %vm90, %v83
  %93 = vst.msk [vmem:[%s4 + $0x10] sm:$0xff] %vm90, %v84
  %94 = vst.msk [vmem:[%s4 + $0x18] sm:$0xff] %vm90, %v85
  %95 = vst.msk [vmem:[%s4 + $0x20] sm:$0xff] %vm90, %v86
  %96 = vst.msk [vmem:[%s4 + $0x28] sm:$0xff] %vm90, %v87
  %97 = vst.msk [vmem:[%s4 + $0x30] sm:$0xff] %vm90, %v88
  %98 = vst.msk [vmem:[%s4 + $0x38] sm:$0xff] %vm90, %v89
  // Predicated region
  $region18: #{patchtst_forward.6} parent=0 // pred_check
    _
  $region19: #{patchtst_forward.6} parent=0 // pred_check_branch
    %100 = sbr.rel (0) target = $region21
  $region20: #{patchtst_forward.6} parent=0 // pred_region
    _
  $region21: #{patchtst_forward.6} parent=0 // pred_fallthru
    _
  // Predicated region
  $region22: #{patchtst_forward.6} parent=0 // pred_check
    _
  $region23: #{patchtst_forward.6} parent=0 // pred_check_branch
    %102 = sbr.rel (0) target = $region25
  $region24: #{patchtst_forward.6} parent=0 // pred_region
    _
  $region25: #{patchtst_forward.6} parent=0 // pred_fallthru
    _

// kernel: patchtst_forward.8
$region0: #{patchtst_forward.8}
  #allocation0 [shape = 'u32[]', space=smem, size = 0x4, offset = 0x4, fixed_abs, tag = 'smem constant byte address 0x4 - core index']
  #allocation1 [shape = 'u32[72,128]{1,0:T(1,128)}', space=vmem, size = 0x9000, scoped, tag = 'internal scratch']
  %s0 = inlined_call_operand.vmem [shape: f32[8,8,32], index: 0, kind: input, shape index: {}]
  %s1 = inlined_call_operand.vmem [shape: f32[1,32], index: 1, kind: input, shape index: {}]
  %s2 = inlined_call_operand.vmem [shape: f32[1,32], index: 2, kind: input, shape index: {}]
  %s3 = inlined_call_operand.vmem [shape: bf16[32,64], index: 3, kind: input, shape index: {}]
  %s4 = inlined_call_operand.vmem [shape: f32[1,64], index: 4, kind: input, shape index: {}]
  %s5 = inlined_call_operand.vmem [shape: bf16[64,32], index: 5, kind: input, shape index: {}]
  %s6 = inlined_call_operand.vmem [shape: f32[1,32], index: 6, kind: input, shape index: {}]
  %s7 = inlined_call_operand.vmem [shape: f32[8,8,32], index: 7, kind: output, shape index: {0}]
  %s8 = inlined_call_operand.vmem [shape: f32[1,2,32], index: 8, kind: output, shape index: {1}]
  %9 = xla_tuple %s7, %s8
  %s10 = sld [smem:[#allocation0]]
  $region46: #{patchtst_forward.8} parent=0
    _
  %s12 = ssub.s32 1, %s10
  %s13 = scalar_select 0, %s12, %s10
  // Predicated region
  $region2: #{patchtst_forward.8} parent=0 // pred_check
    _
  $region3: #{patchtst_forward.8} parent=0 // pred_check_branch
    %15 = sbr.rel (0) target = $region5
  $region4: #{patchtst_forward.8} parent=0 // pred_region
    _
  $region5: #{patchtst_forward.8} parent=0 // pred_fallthru
    _
  // Predicated region
  $region6: #{patchtst_forward.8} parent=0 // pred_check
    _
  $region7: #{patchtst_forward.8} parent=0 // pred_check_branch
    %17 = sbr.rel (0) target = $region9
  $region8: #{patchtst_forward.8} parent=0 // pred_region
    _
  $region9: #{patchtst_forward.8} parent=0 // pred_fallthru
    _
  // Predicated region
  $region10: #{patchtst_forward.8} parent=0 // pred_check
    _
  $region11: #{patchtst_forward.8} parent=0 // pred_check_branch
    %19 = sbr.rel (0) target = $region13
  $region12: #{patchtst_forward.8} parent=0 // pred_region
    _
  $region13: #{patchtst_forward.8} parent=0 // pred_fallthru
    _
  // Predicated region
  $region14: #{patchtst_forward.8} parent=0 // pred_check
    _
  $region15: #{patchtst_forward.8} parent=0 // pred_check_branch
    %21 = sbr.rel (0) target = $region17
  $region16: #{patchtst_forward.8} parent=0 // pred_region
    _
  $region17: #{patchtst_forward.8} parent=0 // pred_fallthru
    _
  // Predicated region
  $region18: #{patchtst_forward.8} parent=0 // pred_check
    _
  $region19: #{patchtst_forward.8} parent=0 // pred_check_branch
    %23 = sbr.rel (0) target = $region21
  $region20: #{patchtst_forward.8} parent=0 // pred_region
    _
  $region21: #{patchtst_forward.8} parent=0 // pred_fallthru
    _
  // Predicated region
  $region22: #{patchtst_forward.8} parent=0 // pred_check
    _
  $region23: #{patchtst_forward.8} parent=0 // pred_check_branch
    %25 = sbr.rel (0) target = $region25
  $region24: #{patchtst_forward.8} parent=0 // pred_region
    _
  $region25: #{patchtst_forward.8} parent=0 // pred_fallthru
    _
  // Predicated region
  $region26: #{patchtst_forward.8} parent=0 // pred_check
    _
  $region27: #{patchtst_forward.8} parent=0 // pred_check_branch
    %27 = sbr.rel (0) target = $region29
  $region28: #{patchtst_forward.8} parent=0 // pred_region
    _
  $region29: #{patchtst_forward.8} parent=0 // pred_fallthru
    _
  %v29 = vld [vmem:[%s0] sm:$0xff]
  %v30 = vld [vmem:[%s0 + $0x8] sm:$0xff]
  %v31 = vld [vmem:[%s0 + $0x10] sm:$0xff]
  %v32 = vld [vmem:[%s0 + $0x18] sm:$0xff]
  %v33 = vld [vmem:[%s0 + $0x20] sm:$0xff]
  %v34 = vld [vmem:[%s0 + $0x28] sm:$0xff]
  %v35 = vld [vmem:[%s0 + $0x30] sm:$0xff]
  %v36 = vld [vmem:[%s0 + $0x38] sm:$0xff]
  %v37 = vld [vmem:[%s1] sm:$0x1]
  %v39 = vperm.slane %v37, 0
  %v41 = vmul.f32 %v29, %v39
  %v42 = vmul.f32 %v30, %v39
  %v43 = vmul.f32 %v31, %v39
  %v44 = vmul.f32 %v32, %v39
  %v45 = vmul.f32 %v33, %v39
  %v46 = vmul.f32 %v34, %v39
  %v47 = vmul.f32 %v35, %v39
  %v48 = vmul.f32 %v36, %v39
  %v49 = vld [vmem:[%s2] sm:$0x1]
  %v51 = vperm.slane %v49, 0
  %v53 = vadd.f32 %v41, %v51
  %v54 = vadd.f32 %v42, %v51
  %v55 = vadd.f32 %v43, %v51
  %v56 = vadd.f32 %v44, %v51
  %v57 = vadd.f32 %v45, %v51
  %v58 = vadd.f32 %v46, %v51
  %v59 = vadd.f32 %v47, %v51
  %v60 = vadd.f32 %v48, %v51
  %v61 = vpack.c.bf16 %v54, %v53
  %v62 = vpack.c.bf16 %v56, %v55
  %v63 = vpack.c.bf16 %v58, %v57
  %v64 = vpack.c.bf16 %v60, %v59
  %v65 = vld [vmem:[%s3] sm:$0xf]
  %v66 = vld [vmem:[%s3 + $0x4] sm:$0xf]
  %v67 = vld [vmem:[%s3 + $0x8] sm:$0xf]
  %v68 = vld [vmem:[%s3 + $0xc] sm:$0xf]
  %v69 = vld [vmem:[%s4] sm:$0x1]
  %v71 = vperm.slane %v69, 0
  %v77 = vunpack.c.l.b16 %v65
  %v78 = vunpack.c.l.b16 %v66
  %v79 = vunpack.c.l.b16 %v67
  %v80 = vunpack.c.l.b16 %v68
  %v81 = vpack.c.b16 %v78, %v77
  %v82 = vpack.c.b16 %v80, %v79
  %vm85 = vcmask 261120
  %v87 = vsel %vm85, %v61, 0
  %v90 = vsel %vm85, %v62, 0
  %v93 = vsel %vm85, %v63, 0
  %v96 = vsel %vm85, %v64, 0
  %98 = vmatpush.bf16.msra.mxu0 0
  %99 = vmatpush.bf16.msra.mxu0 0
  %100 = vmatpush.bf16.msra.mxu0 0
  %101 = vmatpush.bf16.msra.mxu0 0
  %102 = vmatpush.bf16.msra.mxu0 0
  %103 = vmatpush.bf16.msra.mxu0 0
  %104 = vmatpush.bf16.msra.mxu0 %v82
  %105 = vmatpush.bf16.msra.mxu0 %v81
  %106 = vmatmul.bf16.gmra.mxu0 %v87
  %v107 = vpop.f32.mrf.mxu0
  %v108 = vadd.f32 %v71, %v107
  %v109 = vpop.f32.mrf.mxu0
  %v110 = vadd.f32 %v71, %v109
  %111 = vmatmul.bf16.gmra.mxu0 %v90
  %v112 = vpop.f32.mrf.mxu0
  %v113 = vadd.f32 %v71, %v112
  %v114 = vpop.f32.mrf.mxu0
  %v115 = vadd.f32 %v71, %v114
  %116 = vmatmul.bf16.gmra.mxu0 %v93
  %v117 = vpop.f32.mrf.mxu0
  %v118 = vadd.f32 %v71, %v117
  %v119 = vpop.f32.mrf.mxu0
  %v120 = vadd.f32 %v71, %v119
  %121 = vmatmul.bf16.gmra.mxu0 %v96
  %v122 = vpop.f32.mrf.mxu0
  %v123 = vadd.f32 %v71, %v122
  %v124 = vpop.f32.mrf.mxu0
  %v125 = vadd.f32 %v71, %v124
  %126 = vdwg.mxu0
  %v127 = vmul.f32 %v108, 0.5
  %v128 = vmul.f32 %v110, 0.5
  %v129 = vmul.f32 %v113, 0.5
  %v130 = vmul.f32 %v115, 0.5
  %v131 = vmul.f32 %v118, 0.5
  %v132 = vmul.f32 %v120, 0.5
  %v133 = vmul.f32 %v123, 0.5
  %v134 = vmul.f32 %v125, 0.5
  %v135 = vmul.f32 %v108, 0.70710677
  %v136 = vmul.f32 %v110, 0.70710677
  %v137 = vmul.f32 %v113, 0.70710677
  %v138 = vmul.f32 %v115, 0.70710677
  %v139 = vmul.f32 %v118, 0.70710677
  %v140 = vmul.f32 %v120, 0.70710677
  %v141 = vmul.f32 %v123, 0.70710677
  %v142 = vmul.f32 %v125, 0.70710677
  %v143 = vand.u32 2147483647, %v135
  %v144 = vand.u32 2147483647, %v136
  %v145 = vand.u32 2147483647, %v137
  %v146 = vand.u32 2147483647, %v138
  %v147 = vand.u32 2147483647, %v139
  %v148 = vand.u32 2147483647, %v140
  %v149 = vand.u32 2147483647, %v141
  %v150 = vand.u32 2147483647, %v142
  %v151 = vmul.f32 %v143, 0.3275911
  %v152 = vmul.f32 %v144, 0.3275911
  %v153 = vmul.f32 %v145, 0.3275911
  %v154 = vmul.f32 %v146, 0.3275911
  %v155 = vmul.f32 %v147, 0.3275911
  %v156 = vmul.f32 %v148, 0.3275911
  %v157 = vmul.f32 %v149, 0.3275911
  %v158 = vmul.f32 %v150, 0.3275911
  %v159 = vadd.f32 %v151, 1.0
  %v160 = vadd.f32 %v152, 1.0
  %v161 = vadd.f32 %v153, 1.0
  %v162 = vadd.f32 %v154, 1.0
  %v163 = vadd.f32 %v155, 1.0
  %v164 = vadd.f32 %v156, 1.0
  %v165 = vadd.f32 %v157, 1.0
  %v166 = vadd.f32 %v158, 1.0
  %v167 = vrcp.pop %v159
  %v168 = vmul.f32 %v159, %v167
  %v169 = vsub.f32 1.0, %v168
  %v170 = vmul.f32 %v167, %v169
  %v171 = vadd.f32 %v167, %v170
  %vm172 = vweird.f32 %v159
  %vm173 = vweird.f32 %v167
  %vm174 = vmor %vm172, %vm173
  %v175 = vsel %vm174, %v167, %v171
  %v176 = vand.u32 2147483647, %v159
  %vm177 = vcmp.eq.f32.partialorder %v176, 8.507059e+37
  %v178 = vand.u32 %v159, 2147483648
  %v179 = vor.u32 1.1754944e-38, %v178
  %v180 = vsel %vm177, %v179, %v175
  %v181 = vmul.f32 1.0, %v180
  %v182 = vrcp.pop %v160
  %v183 = vmul.f32 %v160, %v182
  %v184 = vsub.f32 1.0, %v183
  %v185 = vmul.f32 %v182, %v184
  %v186 = vadd.f32 %v182, %v185
  %vm187 = vweird.f32 %v160
  %vm188 = vweird.f32 %v182
  %vm189 = vmor %vm187, %vm188
  %v190 = vsel %vm189, %v182, %v186
  %v191 = vand.u32 2147483647, %v160
  %vm192 = vcmp.eq.f32.partialorder %v191, 8.507059e+37
  %v193 = vand.u32 %v160, 2147483648
  %v194 = vor.u32 1.1754944e-38, %v193
  %v195 = vsel %vm192, %v194, %v190
  %v196 = vmul.f32 1.0, %v195
  %v197 = vrcp.pop %v161
  %v198 = vmul.f32 %v161, %v197
  %v199 = vsub.f32 1.0, %v198
  %v200 = vmul.f32 %v197, %v199
  %v201 = vadd.f32 %v197, %v200
  %vm202 = vweird.f32 %v161
  %vm203 = vweird.f32 %v197
  %vm204 = vmor %vm202, %vm203
  %v205 = vsel %vm204, %v197, %v201
  %v206 = vand.u32 2147483647, %v161
  %vm207 = vcmp.eq.f32.partialorder %v206, 8.507059e+37
  %v208 = vand.u32 %v161, 2147483648
  %v209 = vor.u32 1.1754944e-38, %v208
  %v210 = vsel %vm207, %v209, %v205
  %v211 = vmul.f32 1.0, %v210
  %v212 = vrcp.pop %v162
  %v213 = vmul.f32 %v162, %v212
  %v214 = vsub.f32 1.0, %v213
  %v215 = vmul.f32 %v212, %v214
  %v216 = vadd.f32 %v212, %v215
  %vm217 = vweird.f32 %v162
  %vm218 = vweird.f32 %v212
  %vm219 = vmor %vm217, %vm218
  %v220 = vsel %vm219, %v212, %v216
  %v221 = vand.u32 2147483647, %v162
  %vm222 = vcmp.eq.f32.partialorder %v221, 8.507059e+37
  %v223 = vand.u32 %v162, 2147483648
  %v224 = vor.u32 1.1754944e-38, %v223
  %v225 = vsel %vm222, %v224, %v220
  %v226 = vmul.f32 1.0, %v225
  %v227 = vrcp.pop %v163
  %v228 = vmul.f32 %v163, %v227
  %v229 = vsub.f32 1.0, %v228
  %v230 = vmul.f32 %v227, %v229
  %v231 = vadd.f32 %v227, %v230
  %vm232 = vweird.f32 %v163
  %vm233 = vweird.f32 %v227
  %vm234 = vmor %vm232, %vm233
  %v235 = vsel %vm234, %v227, %v231
  %v236 = vand.u32 2147483647, %v163
  %vm237 = vcmp.eq.f32.partialorder %v236, 8.507059e+37
  %v238 = vand.u32 %v163, 2147483648
  %v239 = vor.u32 1.1754944e-38, %v238
  %v240 = vsel %vm237, %v239, %v235
  %v241 = vmul.f32 1.0, %v240
  %v242 = vrcp.pop %v164
  %v243 = vmul.f32 %v164, %v242
  %v244 = vsub.f32 1.0, %v243
  %v245 = vmul.f32 %v242, %v244
  %v246 = vadd.f32 %v242, %v245
  %vm247 = vweird.f32 %v164
  %vm248 = vweird.f32 %v242
  %vm249 = vmor %vm247, %vm248
  %v250 = vsel %vm249, %v242, %v246
  %v251 = vand.u32 2147483647, %v164
  %vm252 = vcmp.eq.f32.partialorder %v251, 8.507059e+37
  %v253 = vand.u32 %v164, 2147483648
  %v254 = vor.u32 1.1754944e-38, %v253
  %v255 = vsel %vm252, %v254, %v250
  %v256 = vmul.f32 1.0, %v255
  %v257 = vrcp.pop %v165
  %v258 = vmul.f32 %v165, %v257
  %v259 = vsub.f32 1.0, %v258
  %v260 = vmul.f32 %v257, %v259
  %v261 = vadd.f32 %v257, %v260
  %vm262 = vweird.f32 %v165
  %vm263 = vweird.f32 %v257
  %vm264 = vmor %vm262, %vm263
  %v265 = vsel %vm264, %v257, %v261
  %v266 = vand.u32 2147483647, %v165
  %vm267 = vcmp.eq.f32.partialorder %v266, 8.507059e+37
  %v268 = vand.u32 %v165, 2147483648
  %v269 = vor.u32 1.1754944e-38, %v268
  %v270 = vsel %vm267, %v269, %v265
  %v271 = vmul.f32 1.0, %v270
  %v272 = vrcp.pop %v166
  %v273 = vmul.f32 %v166, %v272
  %v274 = vsub.f32 1.0, %v273
  %v275 = vmul.f32 %v272, %v274
  %v276 = vadd.f32 %v272, %v275
  %vm277 = vweird.f32 %v166
  %vm278 = vweird.f32 %v272
  %vm279 = vmor %vm277, %vm278
  %v280 = vsel %vm279, %v272, %v276
  %v281 = vand.u32 2147483647, %v166
  %vm282 = vcmp.eq.f32.partialorder %v281, 8.507059e+37
  %v283 = vand.u32 %v166, 2147483648
  %v284 = vor.u32 1.1754944e-38, %v283
  %v285 = vsel %vm282, %v284, %v280
  %v286 = vmul.f32 1.0, %v285
  %v287 = vmul.f32 %v181, 1.0614054
  %v288 = vmul.f32 %v196, 1.0614054
  %v289 = vmul.f32 %v211, 1.0614054
  %v290 = vmul.f32 %v226, 1.0614054
  %v291 = vmul.f32 %v241, 1.0614054
  %v292 = vmul.f32 %v256, 1.0614054
  %v293 = vmul.f32 %v271, 1.0614054
  %v294 = vmul.f32 %v286, 1.0614054
  %v295 = vadd.f32 %v287, -1.4531521
  %v296 = vadd.f32 %v288, -1.4531521
  %v297 = vadd.f32 %v289, -1.4531521
  %v298 = vadd.f32 %v290, -1.4531521
  %v299 = vadd.f32 %v291, -1.4531521
  %v300 = vadd.f32 %v292, -1.4531521
  %v301 = vadd.f32 %v293, -1.4531521
  %v302 = vadd.f32 %v294, -1.4531521
  %v303 = vmul.f32 %v295, %v181
  %v304 = vmul.f32 %v296, %v196
  %v305 = vmul.f32 %v297, %v211
  %v306 = vmul.f32 %v298, %v226
  %v307 = vmul.f32 %v299, %v241
  %v308 = vmul.f32 %v300, %v256
  %v309 = vmul.f32 %v301, %v271
  %v310 = vmul.f32 %v302, %v286
  %v311 = vadd.f32 %v303, 1.4214138
  %v312 = vadd.f32 %v304, 1.4214138
  %v313 = vadd.f32 %v305, 1.4214138
  %v314 = vadd.f32 %v306, 1.4214138
  %v315 = vadd.f32 %v307, 1.4214138
  %v316 = vadd.f32 %v308, 1.4214138
  %v317 = vadd.f32 %v309, 1.4214138
  %v318 = vadd.f32 %v310, 1.4214138
  %v319 = vmul.f32 %v311, %v181
  %v320 = vmul.f32 %v312, %v196
  %v321 = vmul.f32 %v313, %v211
  %v322 = vmul.f32 %v314, %v226
  %v323 = vmul.f32 %v315, %v241
  %v324 = vmul.f32 %v316, %v256
  %v325 = vmul.f32 %v317, %v271
  %v326 = vmul.f32 %v318, %v286
  %v327 = vadd.f32 %v319, -0.28449672
  %v328 = vadd.f32 %v320, -0.28449672
  %v329 = vadd.f32 %v321, -0.28449672
  %v330 = vadd.f32 %v322, -0.28449672
  %v331 = vadd.f32 %v323, -0.28449672
  %v332 = vadd.f32 %v324, -0.28449672
  %v333 = vadd.f32 %v325, -0.28449672
  %v334 = vadd.f32 %v326, -0.28449672
  %v335 = vmul.f32 %v327, %v181
  %v336 = vmul.f32 %v328, %v196
  %v337 = vmul.f32 %v329, %v211
  %v338 = vmul.f32 %v330, %v226
  %v339 = vmul.f32 %v331, %v241
  %v340 = vmul.f32 %v332, %v256
  %v341 = vmul.f32 %v333, %v271
  %v342 = vmul.f32 %v334, %v286
  %v343 = vadd.f32 %v335, 0.2548296
  %v344 = vadd.f32 %v336, 0.2548296
  %v345 = vadd.f32 %v337, 0.2548296
  %v346 = vadd.f32 %v338, 0.2548296
  %v347 = vadd.f32 %v339, 0.2548296
  %v348 = vadd.f32 %v340, 0.2548296
  %v349 = vadd.f32 %v341, 0.2548296
  %v350 = vadd.f32 %v342, 0.2548296
  %v351 = vmul.f32 %v343, %v181
  %v352 = vmul.f32 %v344, %v196
  %v353 = vmul.f32 %v345, %v211
  %v354 = vmul.f32 %v346, %v226
  %v355 = vmul.f32 %v347, %v241
  %v356 = vmul.f32 %v348, %v256
  %v357 = vmul.f32 %v349, %v271
  %v358 = vmul.f32 %v350, %v286
  %v359 = vsub.f32 0.0, %v143
  %v360 = vsub.f32 0.0, %v144
  %v361 = vsub.f32 0.0, %v145
  %v362 = vsub.f32 0.0, %v146
  %v363 = vsub.f32 0.0, %v147
  %v364 = vsub.f32 0.0, %v148
  %v365 = vsub.f32 0.0, %v149
  %v366 = vsub.f32 0.0, %v150
  %v367 = vmul.f32 %v359, %v143
  %v368 = vmul.f32 %v360, %v144
  %v369 = vmul.f32 %v361, %v145
  %v370 = vmul.f32 %v362, %v146
  %v371 = vmul.f32 %v363, %v147
  %v372 = vmul.f32 %v364, %v148
  %v373 = vmul.f32 %v365, %v149
  %v374 = vmul.f32 %v366, %v150
  %v375 = vmul.f32 %v367, 1.442695
  %v376 = vpow.pop %v375
  %v377 = vmul.f32 %v368, 1.442695
  %v378 = vpow.pop %v377
  %v379 = vmul.f32 %v369, 1.442695
  %v380 = vpow.pop %v379
  %v381 = vmul.f32 %v370, 1.442695
  %v382 = vpow.pop %v381
  %v383 = vmul.f32 %v371, 1.442695
  %v384 = vpow.pop %v383
  %v385 = vmul.f32 %v372, 1.442695
  %v386 = vpow.pop %v385
  %v387 = vmul.f32 %v373, 1.442695
  %v388 = vpow.pop %v387
  %v389 = vmul.f32 %v374, 1.442695
  %v390 = vpow.pop %v389
  %v391 = vmul.f32 %v351, %v376
  %v392 = vmul.f32 %v352, %v378
  %v393 = vmul.f32 %v353, %v380
  %v394 = vmul.f32 %v354, %v382
  %v395 = vmul.f32 %v355, %v384
  %v396 = vmul.f32 %v356, %v386
  %v397 = vmul.f32 %v357, %v388
  %v398 = vmul.f32 %v358, %v390
  %v399 = vsub.f32 1.0, %v391
  %v400 = vsub.f32 1.0, %v392
  %v401 = vsub.f32 1.0, %v393
  %v402 = vsub.f32 1.0, %v394
  %v403 = vsub.f32 1.0, %v395
  %v404 = vsub.f32 1.0, %v396
  %v405 = vsub.f32 1.0, %v397
  %v406 = vsub.f32 1.0, %v398
  %vm407 = vcmp.ge.f32.partialorder %v135, 0.0
  %vm408 = vcmp.ge.f32.partialorder %v136, 0.0
  %vm409 = vcmp.ge.f32.partialorder %v137, 0.0
  %vm410 = vcmp.ge.f32.partialorder %v138, 0.0
  %vm411 = vcmp.ge.f32.partialorder %v139, 0.0
  %vm412 = vcmp.ge.f32.partialorder %v140, 0.0
  %vm413 = vcmp.ge.f32.partialorder %v141, 0.0
  %vm414 = vcmp.ge.f32.partialorder %v142, 0.0
  %v415 = vsub.f32 0.0, %v399
  %v416 = vsub.f32 0.0, %v400
  %v417 = vsub.f32 0.0, %v401
  %v418 = vsub.f32 0.0, %v402
  %v419 = vsub.f32 0.0, %v403
  %v420 = vsub.f32 0.0, %v404
  %v421 = vsub.f32 0.0, %v405
  %v422 = vsub.f32 0.0, %v406
  %v423 = vsel %vm407, %v399, %v415
  %v424 = vsel %vm408, %v400, %v416
  %v425 = vsel %vm409, %v401, %v417
  %v426 = vsel %vm410, %v402, %v418
  %v427 = vsel %vm411, %v403, %v419
  %v428 = vsel %vm412, %v404, %v420
  %v429 = vsel %vm413, %v405, %v421
  %v430 = vsel %vm414, %v406, %v422
  %v431 = vadd.f32 %v423, 1.0
  %v432 = vadd.f32 %v424, 1.0
  %v433 = vadd.f32 %v425, 1.0
  %v434 = vadd.f32 %v426, 1.0
  %v435 = vadd.f32 %v427, 1.0
  %v436 = vadd.f32 %v428, 1.0
  %v437 = vadd.f32 %v429, 1.0
  %v438 = vadd.f32 %v430, 1.0
  %v439 = vmul.f32 %v127, %v431
  %v440 = vmul.f32 %v128, %v432
  %v441 = vmul.f32 %v129, %v433
  %v442 = vmul.f32 %v130, %v434
  %v443 = vmul.f32 %v131, %v435
  %v444 = vmul.f32 %v132, %v436
  %v445 = vmul.f32 %v133, %v437
  %v446 = vmul.f32 %v134, %v438
  %v447 = vpack.c.bf16 %v440, %v439
  %v448 = vpack.c.bf16 %v442, %v441
  %v449 = vpack.c.bf16 %v444, %v443
  %v450 = vpack.c.bf16 %v446, %v445
  %v451 = vld [vmem:[%s5] sm:$0xf]
  %v452 = vld [vmem:[%s5 + $0x4] sm:$0xf]
  %v453 = vld [vmem:[%s5 + $0x8] sm:$0xf]
  %v454 = vld [vmem:[%s5 + $0xc] sm:$0xf]
  %v455 = vld [vmem:[%s5 + $0x10] sm:$0xf]
  %v456 = vld [vmem:[%s5 + $0x14] sm:$0xf]
  %v457 = vld [vmem:[%s5 + $0x18] sm:$0xf]
  %v458 = vld [vmem:[%s5 + $0x1c] sm:$0xf]
  %v459 = vld [vmem:[%s6] sm:$0x1]
  %v461 = vperm.slane %v459, 0
  %v471 = vunpack.c.l.b16 %v451
  %v472 = vunpack.c.l.b16 %v452
  %v473 = vunpack.c.l.b16 %v453
  %v474 = vunpack.c.l.b16 %v454
  %v475 = vunpack.c.l.b16 %v455
  %v476 = vunpack.c.l.b16 %v456
  %v477 = vunpack.c.l.b16 %v457
  %v478 = vunpack.c.l.b16 %v458
  %v479 = vpack.c.b16 %v472, %v471
  %v480 = vpack.c.b16 %v474, %v473
  %v481 = vpack.c.b16 %v476, %v475
  %v482 = vpack.c.b16 %v478, %v477
  %vm487 = vcmask 523264
  %v489 = vsel %vm487, %v447, 0
  %v492 = vsel %vm487, %v448, 0
  %v495 = vsel %vm487, %v449, 0
  %v498 = vsel %vm487, %v450, 0
  %500 = vmatpush.bf16.msra.mxu0 0
  %501 = vmatpush.bf16.msra.mxu0 0
  %502 = vmatpush.bf16.msra.mxu0 0
  %503 = vmatpush.bf16.msra.mxu0 0
  %504 = vmatpush.bf16.msra.mxu0 %v482
  %505 = vmatpush.bf16.msra.mxu0 %v481
  %506 = vmatpush.bf16.msra.mxu0 %v480
  %507 = vmatpush.bf16.msra.mxu0 %v479
  %508 = vmatmul.bf16.gmra.mxu0 %v489
  %v509 = vpop.f32.mrf.mxu0
  %v510 = vadd.f32 %v461, %v509
  %v511 = vpop.f32.mrf.mxu0
  %v512 = vadd.f32 %v461, %v511
  %513 = vmatmul.bf16.gmra.mxu0 %v492
  %v514 = vpop.f32.mrf.mxu0
  %v515 = vadd.f32 %v461, %v514
  %v516 = vpop.f32.mrf.mxu0
  %v517 = vadd.f32 %v461, %v516
  %518 = vmatmul.bf16.gmra.mxu0 %v495
  %v519 = vpop.f32.mrf.mxu0
  %v520 = vadd.f32 %v461, %v519
  %v521 = vpop.f32.mrf.mxu0
  %v522 = vadd.f32 %v461, %v521
  %523 = vmatmul.bf16.gmra.mxu0 %v498
  %v524 = vpop.f32.mrf.mxu0
  %v525 = vadd.f32 %v461, %v524
  %v526 = vpop.f32.mrf.mxu0
  %v527 = vadd.f32 %v461, %v526
  %528 = vdwg.mxu0
  %v529 = vadd.f32 %v53, %v510
  %v530 = vadd.f32 %v54, %v512
  %v531 = vadd.f32 %v55, %v515
  %v532 = vadd.f32 %v56, %v517
  %v533 = vadd.f32 %v57, %v520
  %v534 = vadd.f32 %v58, %v522
  %v535 = vadd.f32 %v59, %v525
  %v536 = vadd.f32 %v60, %v527
  %537 = vst.msk [vmem:[%s7] sm:$0xff] %vm85, %v529
  %538 = vst.msk [vmem:[%s7 + $0x8] sm:$0xff] %vm85, %v530
  %539 = vst.msk [vmem:[%s7 + $0x10] sm:$0xff] %vm85, %v531
  %540 = vst.msk [vmem:[%s7 + $0x18] sm:$0xff] %vm85, %v532
  %541 = vst.msk [vmem:[%s7 + $0x20] sm:$0xff] %vm85, %v533
  %542 = vst.msk [vmem:[%s7 + $0x28] sm:$0xff] %vm85, %v534
  %543 = vst.msk [vmem:[%s7 + $0x30] sm:$0xff] %vm85, %v535
  %544 = vst.msk [vmem:[%s7 + $0x38] sm:$0xff] %vm85, %v536
  %v545 = vsel %vm85, %v529, 0.0
  %v546 = vsel %vm85, %v530, 0.0
  %v547 = vadd.f32 %v545, %v546
  %v548 = vsel %vm85, %v531, 0.0
  %v549 = vadd.f32 %v547, %v548
  %v550 = vsel %vm85, %v532, 0.0
  %v551 = vadd.f32 %v549, %v550
  %v552 = vsel %vm85, %v533, 0.0
  %v553 = vadd.f32 %v551, %v552
  %v554 = vsel %vm85, %v534, 0.0
  %v555 = vadd.f32 %v553, %v554
  %v556 = vsel %vm85, %v535, 0.0
  %v557 = vadd.f32 %v555, %v556
  %v558 = vsel %vm85, %v536, 0.0
  %v559 = vadd.f32 %v557, %v558
  %v560 = vrot.slane %v559, 4
  %v561 = vadd.f32 %v559, %v560
  %v562 = vrot.slane %v561, 2
  %v563 = vadd.f32 %v561, %v562
  %v564 = vrot.slane %v563, 1
  %v565 = vadd.f32 %v563, %v564
  %v566 = vmul.f32 %v529, %v529
  %v567 = vmul.f32 %v530, %v530
  %v568 = vmul.f32 %v531, %v531
  %v569 = vmul.f32 %v532, %v532
  %v570 = vmul.f32 %v533, %v533
  %v571 = vmul.f32 %v534, %v534
  %v572 = vmul.f32 %v535, %v535
  %v573 = vmul.f32 %v536, %v536
  %v574 = vsel %vm85, %v566, 0.0
  %v575 = vsel %vm85, %v567, 0.0
  %v576 = vadd.f32 %v574, %v575
  %v577 = vsel %vm85, %v568, 0.0
  %v578 = vadd.f32 %v576, %v577
  %v579 = vsel %vm85, %v569, 0.0
  %v580 = vadd.f32 %v578, %v579
  %v581 = vsel %vm85, %v570, 0.0
  %v582 = vadd.f32 %v580, %v581
  %v583 = vsel %vm85, %v571, 0.0
  %v584 = vadd.f32 %v582, %v583
  %v585 = vsel %vm85, %v572, 0.0
  %v586 = vadd.f32 %v584, %v585
  %v587 = vsel %vm85, %v573, 0.0
  %v588 = vadd.f32 %v586, %v587
  %v589 = vrot.slane %v588, 4
  %v590 = vadd.f32 %v588, %v589
  %v591 = vrot.slane %v590, 2
  %v592 = vadd.f32 %v590, %v591
  %v593 = vrot.slane %v592, 1
  %v594 = vadd.f32 %v592, %v593
  %vm595 = vcmask 1040384
  %v596 = vsel %vm595, %v565, %v594
  %vm597 = vcmask 254976
  %598 = vst.msk [vmem:[%s8] sm:$0x3] %vm597, %v596
  // Predicated region
  $region30: #{patchtst_forward.8} parent=0 // pred_check
    _
  $region31: #{patchtst_forward.8} parent=0 // pred_check_branch
    %600 = sbr.rel (0) target = $region33
  $region32: #{patchtst_forward.8} parent=0 // pred_region
    _
  $region33: #{patchtst_forward.8} parent=0 // pred_fallthru
    _
  // Predicated region
  $region34: #{patchtst_forward.8} parent=0 // pred_check
    _
  $region35: #{patchtst_forward.8} parent=0 // pred_check_branch
    %602 = sbr.rel (0) target = $region37
  $region36: #{patchtst_forward.8} parent=0 // pred_region
    _
  $region37: #{patchtst_forward.8} parent=0 // pred_fallthru
    _
  // Predicated region
  $region38: #{patchtst_forward.8} parent=0 // pred_check
    _
  $region39: #{patchtst_forward.8} parent=0 // pred_check_branch
    %604 = sbr.rel (0) target = $region41
  $region40: #{patchtst_forward.8} parent=0 // pred_region
    _
  $region41: #{patchtst_forward.8} parent=0 // pred_fallthru
    _
  // Predicated region
  $region42: #{patchtst_forward.8} parent=0 // pred_check
    _
  $region43: #{patchtst_forward.8} parent=0 // pred_check_branch
    %606 = sbr.rel (0) target = $region45
  $region44: #{patchtst_forward.8} parent=0 // pred_region
    _
  $region45: #{patchtst_forward.8} parent=0 // pred_fallthru
    _

// kernel: patchtst_forward.11
$region0: #{patchtst_forward.11}
  #allocation0 [shape = 'u32[]', space=smem, size = 0x4, offset = 0x4, fixed_abs, tag = 'smem constant byte address 0x4 - core index']
  #allocation1 [shape = 'u32[72,128]{1,0:T(1,128)}', space=vmem, size = 0x9000, scoped, tag = 'internal scratch']
  %s0 = inlined_call_operand.vmem [shape: f32[8,256], index: 0, kind: input, shape index: {}]
  %s1 = inlined_call_operand.vmem [shape: f32[1,256], index: 1, kind: input, shape index: {}]
  %s2 = inlined_call_operand.vmem [shape: f32[1,256], index: 2, kind: input, shape index: {}]
  %s3 = inlined_call_operand.vmem [shape: bf16[256,8], index: 3, kind: input, shape index: {}]
  %s4 = inlined_call_operand.vmem [shape: f32[1,8], index: 4, kind: input, shape index: {}]
  %s5 = inlined_call_operand.hbm [shape: f32[8,8], index: 5, kind: output, shape index: {}]
  %s6 = sld [smem:[#allocation0]]
  $region30: #{patchtst_forward.11} parent=0
    _
  %s8 = ssub.s32 1, %s6
  %s9 = scalar_select 0, %s8, %s6
  $region1: #{patchtst_forward.11} parent=0
    #allocation2 [shape = 'u8[4096]{0}', space=vmem, size = 0x1000, scoped, tag = 'output window, operand 0, single buffered']
    #allocation3 [shape = 's32[1]{0}', space=sflag, size = 0x4, scoped, tag = 'scoped memory for patchtst_forward.11']
    %10 = vsyncpa [#allocation3], 0
    // Predicated region
    $region2: #{patchtst_forward.11} parent=1 // pred_check
      _
    $region3: #{patchtst_forward.11} parent=1 // pred_check_branch
      %12 = sbr.rel (0) target = $region5
    $region4: #{patchtst_forward.11} parent=1 // pred_region
      _
    $region5: #{patchtst_forward.11} parent=1 // pred_fallthru
      _
    // Predicated region
    $region6: #{patchtst_forward.11} parent=1 // pred_check
      _
    $region7: #{patchtst_forward.11} parent=1 // pred_check_branch
      %14 = sbr.rel (0) target = $region9
    $region8: #{patchtst_forward.11} parent=1 // pred_region
      _
    $region9: #{patchtst_forward.11} parent=1 // pred_fallthru
      _
    // Predicated region
    $region10: #{patchtst_forward.11} parent=1 // pred_check
      _
    $region11: #{patchtst_forward.11} parent=1 // pred_check_branch
      %16 = sbr.rel (0) target = $region13
    $region12: #{patchtst_forward.11} parent=1 // pred_region
      _
    $region13: #{patchtst_forward.11} parent=1 // pred_fallthru
      _
    // Predicated region
    $region14: #{patchtst_forward.11} parent=1 // pred_check
      _
    $region15: #{patchtst_forward.11} parent=1 // pred_check_branch
      %18 = sbr.rel (0) target = $region17
    $region16: #{patchtst_forward.11} parent=1 // pred_region
      _
    $region17: #{patchtst_forward.11} parent=1 // pred_fallthru
      _
    // Predicated region
    $region18: #{patchtst_forward.11} parent=1 // pred_check
      _
    $region19: #{patchtst_forward.11} parent=1 // pred_check_branch
      %20 = sbr.rel (0) target = $region21
    $region20: #{patchtst_forward.11} parent=1 // pred_region
      _
    $region21: #{patchtst_forward.11} parent=1 // pred_fallthru
      _
    %v21 = vld [vmem:[%s0] sm:$0xff]
    %v22 = vld [vmem:[%s0 + $0x8] sm:$0xff]
    %v23 = vld [vmem:[%s1] sm:$0x3]
    %v25 = vperm.slane %v23, 0
    %v26 = vperm.slane %v23, 1
    %v29 = vmul.f32 %v21, %v25
    %v30 = vmul.f32 %v22, %v26
    %v31 = vld [vmem:[%s2] sm:$0x3]
    %v33 = vperm.slane %v31, 0
    %v34 = vperm.slane %v31, 1
    %v37 = vadd.f32 %v29, %v33
    %v38 = vadd.f32 %v30, %v34
    %v39 = vpack.c.bf16 %v37, %v37
    %v40 = vpack.c.bf16 %v38, %v38
    %v41 = vld [vmem:[%s3] sm:$0xf]
    %v42 = vld [vmem:[%s3 + $0x4] sm:$0xf]
    %v43 = vld [vmem:[%s3 + $0x8] sm:$0xf]
    %v44 = vld [vmem:[%s3 + $0xc] sm:$0xf]
    %v45 = vld [vmem:[%s3 + $0x10] sm:$0xf]
    %v46 = vld [vmem:[%s3 + $0x14] sm:$0xf]
    %v47 = vld [vmem:[%s3 + $0x18] sm:$0xf]
    %v48 = vld [vmem:[%s3 + $0x1c] sm:$0xf]
    %v49 = vld [vmem:[%s3 + $0x20] sm:$0xf]
    %v50 = vld [vmem:[%s3 + $0x24] sm:$0xf]
    %v51 = vld [vmem:[%s3 + $0x28] sm:$0xf]
    %v52 = vld [vmem:[%s3 + $0x2c] sm:$0xf]
    %v53 = vld [vmem:[%s3 + $0x30] sm:$0xf]
    %v54 = vld [vmem:[%s3 + $0x34] sm:$0xf]
    %v55 = vld [vmem:[%s3 + $0x38] sm:$0xf]
    %v56 = vld [vmem:[%s3 + $0x3c] sm:$0xf]
    %v57 = vld [vmem:[%s3 + $0x40] sm:$0xf]
    %v58 = vld [vmem:[%s3 + $0x44] sm:$0xf]
    %v59 = vld [vmem:[%s3 + $0x48] sm:$0xf]
    %v60 = vld [vmem:[%s3 + $0x4c] sm:$0xf]
    %v61 = vld [vmem:[%s3 + $0x50] sm:$0xf]
    %v62 = vld [vmem:[%s3 + $0x54] sm:$0xf]
    %v63 = vld [vmem:[%s3 + $0x58] sm:$0xf]
    %v64 = vld [vmem:[%s3 + $0x5c] sm:$0xf]
    %v65 = vld [vmem:[%s3 + $0x60] sm:$0xf]
    %v66 = vld [vmem:[%s3 + $0x64] sm:$0xf]
    %v67 = vld [vmem:[%s3 + $0x68] sm:$0xf]
    %v68 = vld [vmem:[%s3 + $0x6c] sm:$0xf]
    %v69 = vld [vmem:[%s3 + $0x70] sm:$0xf]
    %v70 = vld [vmem:[%s3 + $0x74] sm:$0xf]
    %v71 = vld [vmem:[%s3 + $0x78] sm:$0xf]
    %v72 = vld [vmem:[%s3 + $0x7c] sm:$0xf]
    %v73 = vld [vmem:[%s4] sm:$0x1]
    %v75 = vperm.slane %v73, 0
    %v109 = vunpack.c.l.b16 %v41
    %v110 = vunpack.c.l.b16 %v42
    %v111 = vunpack.c.l.b16 %v43
    %v112 = vunpack.c.l.b16 %v44
    %v113 = vunpack.c.l.b16 %v45
    %v114 = vunpack.c.l.b16 %v46
    %v115 = vunpack.c.l.b16 %v47
    %v116 = vunpack.c.l.b16 %v48
    %v117 = vunpack.c.l.b16 %v49
    %v118 = vunpack.c.l.b16 %v50
    %v119 = vunpack.c.l.b16 %v51
    %v120 = vunpack.c.l.b16 %v52
    %v121 = vunpack.c.l.b16 %v53
    %v122 = vunpack.c.l.b16 %v54
    %v123 = vunpack.c.l.b16 %v55
    %v124 = vunpack.c.l.b16 %v56
    %v125 = vunpack.c.l.b16 %v57
    %v126 = vunpack.c.l.b16 %v58
    %v127 = vunpack.c.l.b16 %v59
    %v128 = vunpack.c.l.b16 %v60
    %v129 = vunpack.c.l.b16 %v61
    %v130 = vunpack.c.l.b16 %v62
    %v131 = vunpack.c.l.b16 %v63
    %v132 = vunpack.c.l.b16 %v64
    %v133 = vunpack.c.l.b16 %v65
    %v134 = vunpack.c.l.b16 %v66
    %v135 = vunpack.c.l.b16 %v67
    %v136 = vunpack.c.l.b16 %v68
    %v137 = vunpack.c.l.b16 %v69
    %v138 = vunpack.c.l.b16 %v70
    %v139 = vunpack.c.l.b16 %v71
    %v140 = vunpack.c.l.b16 %v72
    %v141 = vpack.c.b16 %v110, %v109
    %v142 = vpack.c.b16 %v112, %v111
    %v143 = vpack.c.b16 %v114, %v113
    %v144 = vpack.c.b16 %v116, %v115
    %v145 = vpack.c.b16 %v118, %v117
    %v146 = vpack.c.b16 %v120, %v119
    %v147 = vpack.c.b16 %v122, %v121
    %v148 = vpack.c.b16 %v124, %v123
    %v149 = vpack.c.b16 %v126, %v125
    %v150 = vpack.c.b16 %v128, %v127
    %v151 = vpack.c.b16 %v130, %v129
    %v152 = vpack.c.b16 %v132, %v131
    %v153 = vpack.c.b16 %v134, %v133
    %v154 = vpack.c.b16 %v136, %v135
    %v155 = vpack.c.b16 %v138, %v137
    %v156 = vpack.c.b16 %v140, %v139
    %173 = vmatpush.bf16.msra.mxu0 %v148
    %174 = vmatpush.bf16.msra.mxu0 %v147
    %175 = vmatpush.bf16.msra.mxu0 %v146
    %176 = vmatpush.bf16.msra.mxu0 %v145
    %177 = vmatpush.bf16.msra.mxu0 %v144
    %178 = vmatpush.bf16.msra.mxu0 %v143
    %179 = vmatpush.bf16.msra.mxu0 %v142
    %180 = vmatpush.bf16.msra.mxu0 %v141
    %181 = vmatmul.bf16.gmra.mxu0 %v39
    %v182 = vpop.f32.mrf.mxu0
    %v183 = vadd.f32 %v75, %v182
    %v184 = vpop.f32.mrf.mxu0
    %185 = vdwg.mxu0
    %186 = vmatpush.bf16.msra.mxu0 %v156
    %187 = vmatpush.bf16.msra.mxu0 %v155
    %188 = vmatpush.bf16.msra.mxu0 %v154
    %189 = vmatpush.bf16.msra.mxu0 %v153
    %190 = vmatpush.bf16.msra.mxu0 %v152
    %191 = vmatpush.bf16.msra.mxu0 %v151
    %192 = vmatpush.bf16.msra.mxu0 %v150
    %193 = vmatpush.bf16.msra.mxu0 %v149
    %194 = vmatmul.bf16.gmra.mxu0 %v40
    %v195 = vpop.f32.mrf.mxu0
    %v196 = vadd.f32 %v183, %v195
    %v197 = vpop.f32.mrf.mxu0
    %198 = vdwg.mxu0
    %vm199 = vcmask 64512
    %200 = vst.msk [vmem:[#allocation2] sm:$0xff] %vm199, %v196
    // Predicated region
    $region22: #{patchtst_forward.11} parent=1 // pred_check
      _
    $region23: #{patchtst_forward.11} parent=1 // pred_check_branch
      %202 = sbr.rel (0) target = $region25
    $region24: #{patchtst_forward.11} parent=1 // pred_region
      %204 = vsyncadd [#allocation3], 0
      %s206 = sshll.u32 [#allocation2], 4
      %s207 = int_to_ptr.vmem [resolvable:$true] %s206
      %s208 = sshll.u32 %s5, 4
      %s209 = int_to_ptr.hbm [resolvable:$true] %s208
      %211 = dma.vmem_to_hbm [thread:$0]  %s207, 128, %s209, [#allocation3]
    $region25: #{patchtst_forward.11} parent=1 // pred_fallthru
      _
    // Predicated region
    $region26: #{patchtst_forward.11} parent=1 // pred_check
      _
    $region27: #{patchtst_forward.11} parent=1 // pred_check_branch
      %213 = sbr.rel (0) target = $region29
    $region28: #{patchtst_forward.11} parent=1 // pred_region
      %215 = dma.done [#allocation3], 128
    $region29: #{patchtst_forward.11} parent=1 // pred_fallthru
      _
    %216 = vsyncpa [#allocation3], 1

// kernel: patchtst_forward.7
$region0: #{patchtst_forward.7}
  #allocation0 [shape = 'u32[]', space=smem, size = 0x4, offset = 0x4, fixed_abs, tag = 'smem constant byte address 0x4 - core index']
  #allocation1 [shape = 'u32[72,128]{1,0:T(1,128)}', space=vmem, size = 0x9000, scoped, tag = 'internal scratch']
  %s0 = inlined_call_operand.vmem [shape: f32[8,8,32], index: 0, kind: input, shape index: {}]
  %s1 = inlined_call_operand.vmem [shape: f32[4,8,8,8], index: 1, kind: input, shape index: {}, may-alias: {1,13}]
  %s2 = inlined_call_operand.vmem [shape: f32[1,32], index: 2, kind: input, shape index: {}]
  %s3 = inlined_call_operand.vmem [shape: f32[1,32], index: 3, kind: input, shape index: {}]
  %s4 = inlined_call_operand.vmem [shape: bf16[32,32], index: 4, kind: input, shape index: {}]
  %s5 = inlined_call_operand.vmem [shape: f32[1,32], index: 5, kind: input, shape index: {}]
  %s6 = inlined_call_operand.vmem [shape: bf16[32,32], index: 6, kind: input, shape index: {}]
  %s7 = inlined_call_operand.vmem [shape: f32[1,32], index: 7, kind: input, shape index: {}]
  %s8 = inlined_call_operand.vmem [shape: bf16[32,32], index: 8, kind: input, shape index: {}]
  %s9 = inlined_call_operand.vmem [shape: f32[1,32], index: 9, kind: input, shape index: {}]
  %s10 = inlined_call_operand.vmem [shape: bf16[32,32], index: 10, kind: input, shape index: {}]
  %s11 = inlined_call_operand.vmem [shape: f32[1,32], index: 11, kind: input, shape index: {}]
  %s12 = inlined_call_operand.vmem [shape: f32[8,8,32], index: 12, kind: output, shape index: {0}]
  %s13 = inlined_call_operand.vmem [shape: f32[4,8,8,8], index: 13, kind: output, shape index: {1}, may-alias: {1,13}]
  %s14 = inlined_call_operand.vmem [shape: f32[1,2,32], index: 14, kind: output, shape index: {2}]
  %15 = xla_tuple %s12, %s13, %s14
  %s16 = sld [smem:[#allocation0]]
  $region74: #{patchtst_forward.7} parent=0
    _
  %s18 = ssub.s32 1, %s16
  %s19 = scalar_select 0, %s18, %s16
  // Predicated region
  $region2: #{patchtst_forward.7} parent=0 // pred_check
    _
  $region3: #{patchtst_forward.7} parent=0 // pred_check_branch
    %21 = sbr.rel (0) target = $region5
  $region4: #{patchtst_forward.7} parent=0 // pred_region
    _
  $region5: #{patchtst_forward.7} parent=0 // pred_fallthru
    _
  // Predicated region
  $region6: #{patchtst_forward.7} parent=0 // pred_check
    _
  $region7: #{patchtst_forward.7} parent=0 // pred_check_branch
    %23 = sbr.rel (0) target = $region9
  $region8: #{patchtst_forward.7} parent=0 // pred_region
    _
  $region9: #{patchtst_forward.7} parent=0 // pred_fallthru
    _
  // Predicated region
  $region10: #{patchtst_forward.7} parent=0 // pred_check
    _
  $region11: #{patchtst_forward.7} parent=0 // pred_check_branch
    %25 = sbr.rel (0) target = $region13
  $region12: #{patchtst_forward.7} parent=0 // pred_region
    _
  $region13: #{patchtst_forward.7} parent=0 // pred_fallthru
    _
  // Predicated region
  $region14: #{patchtst_forward.7} parent=0 // pred_check
    _
  $region15: #{patchtst_forward.7} parent=0 // pred_check_branch
    %27 = sbr.rel (0) target = $region17
  $region16: #{patchtst_forward.7} parent=0 // pred_region
    _
  $region17: #{patchtst_forward.7} parent=0 // pred_fallthru
    _
  // Predicated region
  $region18: #{patchtst_forward.7} parent=0 // pred_check
    _
  $region19: #{patchtst_forward.7} parent=0 // pred_check_branch
    %29 = sbr.rel (0) target = $region21
  $region20: #{patchtst_forward.7} parent=0 // pred_region
    _
  $region21: #{patchtst_forward.7} parent=0 // pred_fallthru
    _
  // Predicated region
  $region22: #{patchtst_forward.7} parent=0 // pred_check
    _
  $region23: #{patchtst_forward.7} parent=0 // pred_check_branch
    %31 = sbr.rel (0) target = $region25
  $region24: #{patchtst_forward.7} parent=0 // pred_region
    _
  $region25: #{patchtst_forward.7} parent=0 // pred_fallthru
    _
  // Predicated region
  $region26: #{patchtst_forward.7} parent=0 // pred_check
    _
  $region27: #{patchtst_forward.7} parent=0 // pred_check_branch
    %33 = sbr.rel (0) target = $region29
  $region28: #{patchtst_forward.7} parent=0 // pred_region
    _
  $region29: #{patchtst_forward.7} parent=0 // pred_fallthru
    _
  // Predicated region
  $region30: #{patchtst_forward.7} parent=0 // pred_check
    _
  $region31: #{patchtst_forward.7} parent=0 // pred_check_branch
    %35 = sbr.rel (0) target = $region33
  $region32: #{patchtst_forward.7} parent=0 // pred_region
    _
  $region33: #{patchtst_forward.7} parent=0 // pred_fallthru
    _
  // Predicated region
  $region34: #{patchtst_forward.7} parent=0 // pred_check
    _
  $region35: #{patchtst_forward.7} parent=0 // pred_check_branch
    %37 = sbr.rel (0) target = $region37
  $region36: #{patchtst_forward.7} parent=0 // pred_region
    _
  $region37: #{patchtst_forward.7} parent=0 // pred_fallthru
    _
  // Predicated region
  $region38: #{patchtst_forward.7} parent=0 // pred_check
    _
  $region39: #{patchtst_forward.7} parent=0 // pred_check_branch
    %39 = sbr.rel (0) target = $region41
  $region40: #{patchtst_forward.7} parent=0 // pred_region
    _
  $region41: #{patchtst_forward.7} parent=0 // pred_fallthru
    _
  // Predicated region
  $region42: #{patchtst_forward.7} parent=0 // pred_check
    _
  $region43: #{patchtst_forward.7} parent=0 // pred_check_branch
    %41 = sbr.rel (0) target = $region45
  $region44: #{patchtst_forward.7} parent=0 // pred_region
    _
  $region45: #{patchtst_forward.7} parent=0 // pred_fallthru
    _
  // Predicated region
  $region46: #{patchtst_forward.7} parent=0 // pred_check
    _
  $region47: #{patchtst_forward.7} parent=0 // pred_check_branch
    %43 = sbr.rel (0) target = $region49
  $region48: #{patchtst_forward.7} parent=0 // pred_region
    _
  $region49: #{patchtst_forward.7} parent=0 // pred_fallthru
    _
  %v45 = vld [vmem:[%s0] sm:$0xff]
  %v46 = vld [vmem:[%s0 + $0x8] sm:$0xff]
  %v47 = vld [vmem:[%s0 + $0x10] sm:$0xff]
  %v48 = vld [vmem:[%s0 + $0x18] sm:$0xff]
  %v49 = vld [vmem:[%s0 + $0x20] sm:$0xff]
  %v50 = vld [vmem:[%s0 + $0x28] sm:$0xff]
  %v51 = vld [vmem:[%s0 + $0x30] sm:$0xff]
  %v52 = vld [vmem:[%s0 + $0x38] sm:$0xff]
  %v53 = vld [vmem:[%s2] sm:$0x1]
  %v55 = vperm.slane %v53, 0
  %v57 = vmul.f32 %v45, %v55
  %v58 = vmul.f32 %v46, %v55
  %v59 = vmul.f32 %v47, %v55
  %v60 = vmul.f32 %v48, %v55
  %v61 = vmul.f32 %v49, %v55
  %v62 = vmul.f32 %v50, %v55
  %v63 = vmul.f32 %v51, %v55
  %v64 = vmul.f32 %v52, %v55
  %v65 = vld [vmem:[%s3] sm:$0x1]
  %v67 = vperm.slane %v65, 0
  %v69 = vadd.f32 %v57, %v67
  %v70 = vadd.f32 %v58, %v67
  %v71 = vadd.f32 %v59, %v67
  %v72 = vadd.f32 %v60, %v67
  %v73 = vadd.f32 %v61, %v67
  %v74 = vadd.f32 %v62, %v67
  %v75 = vadd.f32 %v63, %v67
  %v76 = vadd.f32 %v64, %v67
  %v77 = vpack.c.bf16 %v70, %v69
  %v78 = vpack.c.bf16 %v72, %v71
  %v79 = vpack.c.bf16 %v74, %v73
  %v80 = vpack.c.bf16 %v76, %v75
  %v81 = vld [vmem:[%s4] sm:$0xf]
  %v82 = vld [vmem:[%s4 + $0x4] sm:$0xf]
  %v83 = vld [vmem:[%s4 + $0x8] sm:$0xf]
  %v84 = vld [vmem:[%s4 + $0xc] sm:$0xf]
  %v85 = vld [vmem:[%s5] sm:$0x1]
  %v87 = vperm.slane %v85, 0
  %v93 = vunpack.c.l.b16 %v81
  %v94 = vunpack.c.l.b16 %v82
  %v95 = vunpack.c.l.b16 %v83
  %v96 = vunpack.c.l.b16 %v84
  %v97 = vpack.c.b16 %v94, %v93
  %v98 = vpack.c.b16 %v96, %v95
  %vm101 = vcmask 261120
  %v103 = vsel %vm101, %v77, 0
  %v106 = vsel %vm101, %v78, 0
  %v109 = vsel %vm101, %v79, 0
  %v112 = vsel %vm101, %v80, 0
  %114 = vmatpush.bf16.msra.mxu0 0
  %115 = vmatpush.bf16.msra.mxu0 0
  %116 = vmatpush.bf16.msra.mxu0 0
  %117 = vmatpush.bf16.msra.mxu0 0
  %118 = vmatpush.bf16.msra.mxu0 0
  %119 = vmatpush.bf16.msra.mxu0 0
  %120 = vmatpush.bf16.msra.mxu0 %v98
  %121 = vmatpush.bf16.msra.mxu0 %v97
  %122 = vmatmul.bf16.gmra.mxu0 %v103
  %v123 = vpop.f32.mrf.mxu0
  %v124 = vadd.f32 %v87, %v123
  %v125 = vpop.f32.mrf.mxu0
  %v126 = vadd.f32 %v87, %v125
  %127 = vmatmul.bf16.gmra.mxu0 %v106
  %v128 = vpop.f32.mrf.mxu0
  %v129 = vadd.f32 %v87, %v128
  %v130 = vpop.f32.mrf.mxu0
  %v131 = vadd.f32 %v87, %v130
  %132 = vmatmul.bf16.gmra.mxu0 %v109
  %v133 = vpop.f32.mrf.mxu0
  %v134 = vadd.f32 %v87, %v133
  %v135 = vpop.f32.mrf.mxu0
  %v136 = vadd.f32 %v87, %v135
  %137 = vmatmul.bf16.gmra.mxu0 %v112
  %v138 = vpop.f32.mrf.mxu0
  %v139 = vadd.f32 %v87, %v138
  %v140 = vpop.f32.mrf.mxu0
  %v141 = vadd.f32 %v87, %v140
  %142 = vdwg.mxu0
  %v143 = vld [vmem:[%s6] sm:$0xf]
  %v144 = vld [vmem:[%s6 + $0x4] sm:$0xf]
  %v145 = vld [vmem:[%s6 + $0x8] sm:$0xf]
  %v146 = vld [vmem:[%s6 + $0xc] sm:$0xf]
  %v147 = vld [vmem:[%s7] sm:$0x1]
  %v149 = vperm.slane %v147, 0
  %v155 = vunpack.c.l.b16 %v143
  %v156 = vunpack.c.l.b16 %v144
  %v157 = vunpack.c.l.b16 %v145
  %v158 = vunpack.c.l.b16 %v146
  %v159 = vpack.c.b16 %v156, %v155
  %v160 = vpack.c.b16 %v158, %v157
  %163 = vmatpush.bf16.msra.mxu0 0
  %164 = vmatpush.bf16.msra.mxu0 0
  %165 = vmatpush.bf16.msra.mxu0 0
  %166 = vmatpush.bf16.msra.mxu0 0
  %167 = vmatpush.bf16.msra.mxu0 0
  %168 = vmatpush.bf16.msra.mxu0 0
  %169 = vmatpush.bf16.msra.mxu0 %v160
  %170 = vmatpush.bf16.msra.mxu0 %v159
  %171 = vmatmul.bf16.gmra.mxu0 %v103
  %v172 = vpop.f32.mrf.mxu0
  %v173 = vadd.f32 %v149, %v172
  %v174 = vpop.f32.mrf.mxu0
  %v175 = vadd.f32 %v149, %v174
  %176 = vmatmul.bf16.gmra.mxu0 %v106
  %v177 = vpop.f32.mrf.mxu0
  %v178 = vadd.f32 %v149, %v177
  %v179 = vpop.f32.mrf.mxu0
  %v180 = vadd.f32 %v149, %v179
  %181 = vmatmul.bf16.gmra.mxu0 %v109
  %v182 = vpop.f32.mrf.mxu0
  %v183 = vadd.f32 %v149, %v182
  %v184 = vpop.f32.mrf.mxu0
  %v185 = vadd.f32 %v149, %v184
  %186 = vmatmul.bf16.gmra.mxu0 %v112
  %v187 = vpop.f32.mrf.mxu0
  %v188 = vadd.f32 %v149, %v187
  %v189 = vpop.f32.mrf.mxu0
  %v190 = vadd.f32 %v149, %v189
  %191 = vdwg.mxu0
  %v192 = vld [vmem:[%s8] sm:$0xf]
  %v193 = vld [vmem:[%s8 + $0x4] sm:$0xf]
  %v194 = vld [vmem:[%s8 + $0x8] sm:$0xf]
  %v195 = vld [vmem:[%s8 + $0xc] sm:$0xf]
  %v196 = vld [vmem:[%s9] sm:$0x1]
  %v198 = vperm.slane %v196, 0
  %v204 = vunpack.c.l.b16 %v192
  %v205 = vunpack.c.l.b16 %v193
  %v206 = vunpack.c.l.b16 %v194
  %v207 = vunpack.c.l.b16 %v195
  %v208 = vpack.c.b16 %v205, %v204
  %v209 = vpack.c.b16 %v207, %v206
  %212 = vmatpush.bf16.msra.mxu0 0
  %213 = vmatpush.bf16.msra.mxu0 0
  %214 = vmatpush.bf16.msra.mxu0 0
  %215 = vmatpush.bf16.msra.mxu0 0
  %216 = vmatpush.bf16.msra.mxu0 0
  %217 = vmatpush.bf16.msra.mxu0 0
  %218 = vmatpush.bf16.msra.mxu0 %v209
  %219 = vmatpush.bf16.msra.mxu0 %v208
  %220 = vmatmul.bf16.gmra.mxu0 %v103
  %v221 = vpop.f32.mrf.mxu0
  %v222 = vadd.f32 %v198, %v221
  %v223 = vpop.f32.mrf.mxu0
  %v224 = vadd.f32 %v198, %v223
  %225 = vmatmul.bf16.gmra.mxu0 %v106
  %v226 = vpop.f32.mrf.mxu0
  %v227 = vadd.f32 %v198, %v226
  %v228 = vpop.f32.mrf.mxu0
  %v229 = vadd.f32 %v198, %v228
  %230 = vmatmul.bf16.gmra.mxu0 %v109
  %v231 = vpop.f32.mrf.mxu0
  %v232 = vadd.f32 %v198, %v231
  %v233 = vpop.f32.mrf.mxu0
  %v234 = vadd.f32 %v198, %v233
  %235 = vmatmul.bf16.gmra.mxu0 %v112
  %v236 = vpop.f32.mrf.mxu0
  %v237 = vadd.f32 %v198, %v236
  %v238 = vpop.f32.mrf.mxu0
  %v239 = vadd.f32 %v198, %v238
  %240 = vdwg.mxu0
  %v241 = vpack.c.bf16 %v124, %v124
  %v242 = vpack.c.bf16 %v126, %v126
  %v243 = vpack.c.bf16 %v129, %v129
  %v244 = vpack.c.bf16 %v131, %v131
  %v245 = vpack.c.bf16 %v134, %v134
  %v246 = vpack.c.bf16 %v136, %v136
  %v247 = vpack.c.bf16 %v139, %v139
  %v248 = vpack.c.bf16 %v141, %v141
  %v249 = vpack.c.bf16 %v173, %v173
  %v250 = vpack.c.bf16 %v175, %v175
  %v251 = vpack.c.bf16 %v178, %v178
  %v252 = vpack.c.bf16 %v180, %v180
  %v253 = vpack.c.bf16 %v183, %v183
  %v254 = vpack.c.bf16 %v185, %v185
  %v255 = vpack.c.bf16 %v188, %v188
  %v256 = vpack.c.bf16 %v190, %v190
  %v257 = vpack.c.bf16 %v222, %v222
  %v258 = vpack.c.bf16 %v224, %v224
  %v259 = vpack.c.bf16 %v227, %v227
  %v260 = vpack.c.bf16 %v229, %v229
  %v261 = vpack.c.bf16 %v232, %v232
  %v262 = vpack.c.bf16 %v234, %v234
  %v263 = vpack.c.bf16 %v237, %v237
  %v264 = vpack.c.bf16 %v239, %v239
  %v265 = vld [vmem:[%s1] sm:$0xff]
  %v266 = vld [vmem:[%s1 + $0x8] sm:$0xff]
  %v267 = vld [vmem:[%s1 + $0x10] sm:$0xff]
  %v268 = vld [vmem:[%s1 + $0x18] sm:$0xff]
  %v269 = vld [vmem:[%s1 + $0x20] sm:$0xff]
  %v270 = vld [vmem:[%s1 + $0x28] sm:$0xff]
  %v271 = vld [vmem:[%s1 + $0x30] sm:$0xff]
  %v272 = vld [vmem:[%s1 + $0x38] sm:$0xff]
  %vm273 = vcmask 64512
  %v275 = vsel %vm273, %v241, 0
  %v278 = vsel %vm273, %v249, 0
  %280 = vmatpush.bf16.xpose.msra.mxu0 0
  %281 = vmatpush.bf16.xpose.msra.mxu0 0
  %282 = vmatpush.bf16.xpose.msra.mxu0 0
  %283 = vmatpush.bf16.xpose.msra.mxu0 0
  %284 = vmatpush.bf16.xpose.msra.mxu0 0
  %285 = vmatpush.bf16.xpose.msra.mxu0 0
  %286 = vmatpush.bf16.xpose.msra.mxu0 0
  %287 = vmatpush.bf16.xpose.msra.mxu0 %v278
  %288 = vmatmul.bf16.gmra.mxu0 %v275
  %v289 = vpop.f32.mrf.mxu0
  %v290 = vadd.f32 %v265, %v289
  %v291 = vpop.f32.mrf.mxu0
  %292 = vdwg.mxu0
  %v294 = vsel %vm273, %v242, 0
  %v297 = vsel %vm273, %v250, 0
  %299 = vmatpush.bf16.xpose.msra.mxu0 0
  %300 = vmatpush.bf16.xpose.msra.mxu0 0
  %301 = vmatpush.bf16.xpose.msra.mxu0 0
  %302 = vmatpush.bf16.xpose.msra.mxu0 0
  %303 = vmatpush.bf16.xpose.msra.mxu0 0
  %304 = vmatpush.bf16.xpose.msra.mxu0 0
  %305 = vmatpush.bf16.xpose.msra.mxu0 0
  %306 = vmatpush.bf16.xpose.msra.mxu0 %v297
  %307 = vmatmul.bf16.gmra.mxu0 %v294
  %v308 = vpop.f32.mrf.mxu0
  %v309 = vadd.f32 %v266, %v308
  %v310 = vpop.f32.mrf.mxu0
  %311 = vdwg.mxu0
  %v313 = vsel %vm273, %v243, 0
  %v316 = vsel %vm273, %v251, 0
  %318 = vmatpush.bf16.xpose.msra.mxu0 0
  %319 = vmatpush.bf16.xpose.msra.mxu0 0
  %320 = vmatpush.bf16.xpose.msra.mxu0 0
  %321 = vmatpush.bf16.xpose.msra.mxu0 0
  %322 = vmatpush.bf16.xpose.msra.mxu0 0
  %323 = vmatpush.bf16.xpose.msra.mxu0 0
  %324 = vmatpush.bf16.xpose.msra.mxu0 0
  %325 = vmatpush.bf16.xpose.msra.mxu0 %v316
  %326 = vmatmul.bf16.gmra.mxu0 %v313
  %v327 = vpop.f32.mrf.mxu0
  %v328 = vadd.f32 %v267, %v327
  %v329 = vpop.f32.mrf.mxu0
  %330 = vdwg.mxu0
  %v332 = vsel %vm273, %v244, 0
  %v335 = vsel %vm273, %v252, 0
  %337 = vmatpush.bf16.xpose.msra.mxu0 0
  %338 = vmatpush.bf16.xpose.msra.mxu0 0
  %339 = vmatpush.bf16.xpose.msra.mxu0 0
  %340 = vmatpush.bf16.xpose.msra.mxu0 0
  %341 = vmatpush.bf16.xpose.msra.mxu0 0
  %342 = vmatpush.bf16.xpose.msra.mxu0 0
  %343 = vmatpush.bf16.xpose.msra.mxu0 0
  %344 = vmatpush.bf16.xpose.msra.mxu0 %v335
  %345 = vmatmul.bf16.gmra.mxu0 %v332
  %v346 = vpop.f32.mrf.mxu0
  %v347 = vadd.f32 %v268, %v346
  %v348 = vpop.f32.mrf.mxu0
  %349 = vdwg.mxu0
  %v351 = vsel %vm273, %v245, 0
  %v354 = vsel %vm273, %v253, 0
  %356 = vmatpush.bf16.xpose.msra.mxu0 0
  %357 = vmatpush.bf16.xpose.msra.mxu0 0
  %358 = vmatpush.bf16.xpose.msra.mxu0 0
  %359 = vmatpush.bf16.xpose.msra.mxu0 0
  %360 = vmatpush.bf16.xpose.msra.mxu0 0
  %361 = vmatpush.bf16.xpose.msra.mxu0 0
  %362 = vmatpush.bf16.xpose.msra.mxu0 0
  %363 = vmatpush.bf16.xpose.msra.mxu0 %v354
  %364 = vmatmul.bf16.gmra.mxu0 %v351
  %v365 = vpop.f32.mrf.mxu0
  %v366 = vadd.f32 %v269, %v365
  %v367 = vpop.f32.mrf.mxu0
  %368 = vdwg.mxu0
  %v370 = vsel %vm273, %v246, 0
  %v373 = vsel %vm273, %v254, 0
  %375 = vmatpush.bf16.xpose.msra.mxu0 0
  %376 = vmatpush.bf16.xpose.msra.mxu0 0
  %377 = vmatpush.bf16.xpose.msra.mxu0 0
  %378 = vmatpush.bf16.xpose.msra.mxu0 0
  %379 = vmatpush.bf16.xpose.msra.mxu0 0
  %380 = vmatpush.bf16.xpose.msra.mxu0 0
  %381 = vmatpush.bf16.xpose.msra.mxu0 0
  %382 = vmatpush.bf16.xpose.msra.mxu0 %v373
  %383 = vmatmul.bf16.gmra.mxu0 %v370
  %v384 = vpop.f32.mrf.mxu0
  %v385 = vadd.f32 %v270, %v384
  %v386 = vpop.f32.mrf.mxu0
  %387 = vdwg.mxu0
  %v389 = vsel %vm273, %v247, 0
  %v392 = vsel %vm273, %v255, 0
  %394 = vmatpush.bf16.xpose.msra.mxu0 0
  %395 = vmatpush.bf16.xpose.msra.mxu0 0
  %396 = vmatpush.bf16.xpose.msra.mxu0 0
  %397 = vmatpush.bf16.xpose.msra.mxu0 0
  %398 = vmatpush.bf16.xpose.msra.mxu0 0
  %399 = vmatpush.bf16.xpose.msra.mxu0 0
  %400 = vmatpush.bf16.xpose.msra.mxu0 0
  %401 = vmatpush.bf16.xpose.msra.mxu0 %v392
  %402 = vmatmul.bf16.gmra.mxu0 %v389
  %v403 = vpop.f32.mrf.mxu0
  %v404 = vadd.f32 %v271, %v403
  %v405 = vpop.f32.mrf.mxu0
  %406 = vdwg.mxu0
  %v408 = vsel %vm273, %v248, 0
  %v411 = vsel %vm273, %v256, 0
  %413 = vmatpush.bf16.xpose.msra.mxu0 0
  %414 = vmatpush.bf16.xpose.msra.mxu0 0
  %415 = vmatpush.bf16.xpose.msra.mxu0 0
  %416 = vmatpush.bf16.xpose.msra.mxu0 0
  %417 = vmatpush.bf16.xpose.msra.mxu0 0
  %418 = vmatpush.bf16.xpose.msra.mxu0 0
  %419 = vmatpush.bf16.xpose.msra.mxu0 0
  %420 = vmatpush.bf16.xpose.msra.mxu0 %v411
  %421 = vmatmul.bf16.gmra.mxu0 %v408
  %v422 = vpop.f32.mrf.mxu0
  %v423 = vadd.f32 %v272, %v422
  %v424 = vpop.f32.mrf.mxu0
  %425 = vdwg.mxu0
  %426 = vst.msk [vmem:[%s13] sm:$0xff] %vm273, %v290
  %427 = vst.msk [vmem:[%s13 + $0x8] sm:$0xff] %vm273, %v309
  %428 = vst.msk [vmem:[%s13 + $0x10] sm:$0xff] %vm273, %v328
  %429 = vst.msk [vmem:[%s13 + $0x18] sm:$0xff] %vm273, %v347
  %430 = vst.msk [vmem:[%s13 + $0x20] sm:$0xff] %vm273, %v366
  %431 = vst.msk [vmem:[%s13 + $0x28] sm:$0xff] %vm273, %v385
  %432 = vst.msk [vmem:[%s13 + $0x30] sm:$0xff] %vm273, %v404
  %433 = vst.msk [vmem:[%s13 + $0x38] sm:$0xff] %vm273, %v423
  %v434 = vsel %vm273, %v290, -inf
  %435 = vmax.xlane.f32.xlu0 %v434
  %v436 = vpop.xlane.xlu0 %435
  %v437 = vsel %vm273, %v309, -inf
  %438 = vmax.xlane.f32.xlu0 %v437
  %v439 = vpop.xlane.xlu0 %438
  %v440 = vsel %vm273, %v328, -inf
  %441 = vmax.xlane.f32.xlu0 %v440
  %v442 = vpop.xlane.xlu0 %441
  %v443 = vsel %vm273, %v347, -inf
  %444 = vmax.xlane.f32.xlu0 %v443
  %v445 = vpop.xlane.xlu0 %444
  %v446 = vsel %vm273, %v366, -inf
  %447 = vmax.xlane.f32.xlu0 %v446
  %v448 = vpop.xlane.xlu0 %447
  %v449 = vsel %vm273, %v385, -inf
  %450 = vmax.xlane.f32.xlu0 %v449
  %v451 = vpop.xlane.xlu0 %450
  %v452 = vsel %vm273, %v404, -inf
  %453 = vmax.xlane.f32.xlu0 %v452
  %v454 = vpop.xlane.xlu0 %453
  %v455 = vsel %vm273, %v423, -inf
  %456 = vmax.xlane.f32.xlu0 %v455
  %v457 = vpop.xlane.xlu0 %456
  %v458 = vsub.f32 %v290, %v436
  %v459 = vsub.f32 %v309, %v439
  %v460 = vsub.f32 %v328, %v442
  %v461 = vsub.f32 %v347, %v445
  %v462 = vsub.f32 %v366, %v448
  %v463 = vsub.f32 %v385, %v451
  %v464 = vsub.f32 %v404, %v454
  %v465 = vsub.f32 %v423, %v457
  %v466 = vmul.f32 %v458, 1.442695
  %v467 = vpow.pop %v466
  %v468 = vmul.f32 %v459, 1.442695
  %v469 = vpow.pop %v468
  %v470 = vmul.f32 %v460, 1.442695
  %v471 = vpow.pop %v470
  %v472 = vmul.f32 %v461, 1.442695
  %v473 = vpow.pop %v472
  %v474 = vmul.f32 %v462, 1.442695
  %v475 = vpow.pop %v474
  %v476 = vmul.f32 %v463, 1.442695
  %v477 = vpow.pop %v476
  %v478 = vmul.f32 %v464, 1.442695
  %v479 = vpow.pop %v478
  %v480 = vmul.f32 %v465, 1.442695
  %v481 = vpow.pop %v480
  %v482 = vsel %vm273, %v467, 0.0
  %483 = vadd.xlane.f32.xlu0 %v482
  %v484 = vpop.xlane.xlu0 %483
  %v485 = vsel %vm273, %v469, 0.0
  %486 = vadd.xlane.f32.xlu0 %v485
  %v487 = vpop.xlane.xlu0 %486
  %v488 = vsel %vm273, %v471, 0.0
  %489 = vadd.xlane.f32.xlu0 %v488
  %v490 = vpop.xlane.xlu0 %489
  %v491 = vsel %vm273, %v473, 0.0
  %492 = vadd.xlane.f32.xlu0 %v491
  %v493 = vpop.xlane.xlu0 %492
  %v494 = vsel %vm273, %v475, 0.0
  %495 = vadd.xlane.f32.xlu0 %v494
  %v496 = vpop.xlane.xlu0 %495
  %v497 = vsel %vm273, %v477, 0.0
  %498 = vadd.xlane.f32.xlu0 %v497
  %v499 = vpop.xlane.xlu0 %498
  %v500 = vsel %vm273, %v479, 0.0
  %501 = vadd.xlane.f32.xlu0 %v500
  %v502 = vpop.xlane.xlu0 %501
  %v503 = vsel %vm273, %v481, 0.0
  %504 = vadd.xlane.f32.xlu0 %v503
  %v505 = vpop.xlane.xlu0 %504
  %v506 = vrcp.pop %v484
  %v507 = vrcp.pop %v487
  %v508 = vrcp.pop %v490
  %v509 = vrcp.pop %v493
  %v510 = vrcp.pop %v496
  %v511 = vrcp.pop %v499
  %v512 = vrcp.pop %v502
  %v513 = vrcp.pop %v505
  %v514 = vmul.f32 %v467, %v506
  %v515 = vmul.f32 %v469, %v507
  %v516 = vmul.f32 %v471, %v508
  %v517 = vmul.f32 %v473, %v509
  %v518 = vmul.f32 %v475, %v510
  %v519 = vmul.f32 %v477, %v511
  %v520 = vmul.f32 %v479, %v512
  %v521 = vmul.f32 %v481, %v513
  %v522 = vpack.c.bf16 %v514, %v514
  %v523 = vpack.c.bf16 %v515, %v515
  %v524 = vpack.c.bf16 %v516, %v516
  %v525 = vpack.c.bf16 %v517, %v517
  %v526 = vpack.c.bf16 %v518, %v518
  %v527 = vpack.c.bf16 %v519, %v519
  %v528 = vpack.c.bf16 %v520, %v520
  %v529 = vpack.c.bf16 %v521, %v521
  %v531 = vsel %vm273, %v522, 0
  %vm533 = vcmask 1043456
  %v535 = vsel %vm533, %v257, 0
  %537 = vmatpush.bf16.msra.mxu0 0
  %538 = vmatpush.bf16.msra.mxu0 0
  %539 = vmatpush.bf16.msra.mxu0 0
  %540 = vmatpush.bf16.msra.mxu0 0
  %541 = vmatpush.bf16.msra.mxu0 0
  %542 = vmatpush.bf16.msra.mxu0 0
  %543 = vmatpush.bf16.msra.mxu0 0
  %544 = vmatpush.bf16.msra.mxu0 %v535
  %545 = vmatmul.bf16.gmra.mxu0 %v531
  %v546 = vpop.f32.mrf.mxu0
  %v547 = vadd.f32 0.0, %v546
  %v548 = vpop.f32.mrf.mxu0
  %549 = vdwg.mxu0
  %v551 = vsel %vm273, %v523, 0
  %v554 = vsel %vm533, %v258, 0
  %556 = vmatpush.bf16.msra.mxu0 0
  %557 = vmatpush.bf16.msra.mxu0 0
  %558 = vmatpush.bf16.msra.mxu0 0
  %559 = vmatpush.bf16.msra.mxu0 0
  %560 = vmatpush.bf16.msra.mxu0 0
  %561 = vmatpush.bf16.msra.mxu0 0
  %562 = vmatpush.bf16.msra.mxu0 0
  %563 = vmatpush.bf16.msra.mxu0 %v554
  %564 = vmatmul.bf16.gmra.mxu0 %v551
  %v565 = vpop.f32.mrf.mxu0
  %v566 = vadd.f32 0.0, %v565
  %v567 = vpop.f32.mrf.mxu0
  %568 = vdwg.mxu0
  %v570 = vsel %vm273, %v524, 0
  %v573 = vsel %vm533, %v259, 0
  %575 = vmatpush.bf16.msra.mxu0 0
  %576 = vmatpush.bf16.msra.mxu0 0
  %577 = vmatpush.bf16.msra.mxu0 0
  %578 = vmatpush.bf16.msra.mxu0 0
  %579 = vmatpush.bf16.msra.mxu0 0
  %580 = vmatpush.bf16.msra.mxu0 0
  %581 = vmatpush.bf16.msra.mxu0 0
  %582 = vmatpush.bf16.msra.mxu0 %v573
  %583 = vmatmul.bf16.gmra.mxu0 %v570
  %v584 = vpop.f32.mrf.mxu0
  %v585 = vadd.f32 0.0, %v584
  %v586 = vpop.f32.mrf.mxu0
  %587 = vdwg.mxu0
  %v589 = vsel %vm273, %v525, 0
  %v592 = vsel %vm533, %v260, 0
  %594 = vmatpush.bf16.msra.mxu0 0
  %595 = vmatpush.bf16.msra.mxu0 0
  %596 = vmatpush.bf16.msra.mxu0 0
  %597 = vmatpush.bf16.msra.mxu0 0
  %598 = vmatpush.bf16.msra.mxu0 0
  %599 = vmatpush.bf16.msra.mxu0 0
  %600 = vmatpush.bf16.msra.mxu0 0
  %601 = vmatpush.bf16.msra.mxu0 %v592
  %602 = vmatmul.bf16.gmra.mxu0 %v589
  %v603 = vpop.f32.mrf.mxu0
  %v604 = vadd.f32 0.0, %v603
  %v605 = vpop.f32.mrf.mxu0
  %606 = vdwg.mxu0
  %v608 = vsel %vm273, %v526, 0
  %v611 = vsel %vm533, %v261, 0
  %613 = vmatpush.bf16.msra.mxu0 0
  %614 = vmatpush.bf16.msra.mxu0 0
  %615 = vmatpush.bf16.msra.mxu0 0
  %616 = vmatpush.bf16.msra.mxu0 0
  %617 = vmatpush.bf16.msra.mxu0 0
  %618 = vmatpush.bf16.msra.mxu0 0
  %619 = vmatpush.bf16.msra.mxu0 0
  %620 = vmatpush.bf16.msra.mxu0 %v611
  %621 = vmatmul.bf16.gmra.mxu0 %v608
  %v622 = vpop.f32.mrf.mxu0
  %v623 = vadd.f32 0.0, %v622
  %v624 = vpop.f32.mrf.mxu0
  %625 = vdwg.mxu0
  %v627 = vsel %vm273, %v527, 0
  %v630 = vsel %vm533, %v262, 0
  %632 = vmatpush.bf16.msra.mxu0 0
  %633 = vmatpush.bf16.msra.mxu0 0
  %634 = vmatpush.bf16.msra.mxu0 0
  %635 = vmatpush.bf16.msra.mxu0 0
  %636 = vmatpush.bf16.msra.mxu0 0
  %637 = vmatpush.bf16.msra.mxu0 0
  %638 = vmatpush.bf16.msra.mxu0 0
  %639 = vmatpush.bf16.msra.mxu0 %v630
  %640 = vmatmul.bf16.gmra.mxu0 %v627
  %v641 = vpop.f32.mrf.mxu0
  %v642 = vadd.f32 0.0, %v641
  %v643 = vpop.f32.mrf.mxu0
  %644 = vdwg.mxu0
  %v646 = vsel %vm273, %v528, 0
  %v649 = vsel %vm533, %v263, 0
  %651 = vmatpush.bf16.msra.mxu0 0
  %652 = vmatpush.bf16.msra.mxu0 0
  %653 = vmatpush.bf16.msra.mxu0 0
  %654 = vmatpush.bf16.msra.mxu0 0
  %655 = vmatpush.bf16.msra.mxu0 0
  %656 = vmatpush.bf16.msra.mxu0 0
  %657 = vmatpush.bf16.msra.mxu0 0
  %658 = vmatpush.bf16.msra.mxu0 %v649
  %659 = vmatmul.bf16.gmra.mxu0 %v646
  %v660 = vpop.f32.mrf.mxu0
  %v661 = vadd.f32 0.0, %v660
  %v662 = vpop.f32.mrf.mxu0
  %663 = vdwg.mxu0
  %v665 = vsel %vm273, %v529, 0
  %v668 = vsel %vm533, %v264, 0
  %670 = vmatpush.bf16.msra.mxu0 0
  %671 = vmatpush.bf16.msra.mxu0 0
  %672 = vmatpush.bf16.msra.mxu0 0
  %673 = vmatpush.bf16.msra.mxu0 0
  %674 = vmatpush.bf16.msra.mxu0 0
  %675 = vmatpush.bf16.msra.mxu0 0
  %676 = vmatpush.bf16.msra.mxu0 0
  %677 = vmatpush.bf16.msra.mxu0 %v668
  %678 = vmatmul.bf16.gmra.mxu0 %v665
  %v679 = vpop.f32.mrf.mxu0
  %v680 = vadd.f32 0.0, %v679
  %v681 = vpop.f32.mrf.mxu0
  %682 = vdwg.mxu0
  %s683 = scalar_lea.vmem %s1, 64
  %v684 = vld [vmem:[%s683] sm:$0xff]
  %v685 = vld [vmem:[%s683 + $0x8] sm:$0xff]
  %v686 = vld [vmem:[%s683 + $0x10] sm:$0xff]
  %v687 = vld [vmem:[%s683 + $0x18] sm:$0xff]
  %v688 = vld [vmem:[%s683 + $0x20] sm:$0xff]
  %v689 = vld [vmem:[%s683 + $0x28] sm:$0xff]
  %v690 = vld [vmem:[%s683 + $0x30] sm:$0xff]
  %v691 = vld [vmem:[%s683 + $0x38] sm:$0xff]
  %v693 = vunpack.c.l.b16 %v241
  %v694 = vpack.c.b16 %v693, %v693
  %695 = vrot.lane.b32.xlu0 %v694, 120
  %v696 = vpop.permute.xlu0 %695
  %v698 = vunpack.c.l.b16 %v249
  %v699 = vpack.c.b16 %v698, %v698
  %700 = vrot.lane.b32.xlu0 %v699, 120
  %v701 = vpop.permute.xlu0 %700
  %v703 = vsel %vm273, %v696, 0
  %v706 = vsel %vm273, %v701, 0
  %708 = vmatpush.bf16.xpose.msra.mxu0 0
  %709 = vmatpush.bf16.xpose.msra.mxu0 0
  %710 = vmatpush.bf16.xpose.msra.mxu0 0
  %711 = vmatpush.bf16.xpose.msra.mxu0 0
  %712 = vmatpush.bf16.xpose.msra.mxu0 0
  %713 = vmatpush.bf16.xpose.msra.mxu0 0
  %714 = vmatpush.bf16.xpose.msra.mxu0 0
  %715 = vmatpush.bf16.xpose.msra.mxu0 %v706
  %716 = vmatmul.bf16.gmra.mxu0 %v703
  %v717 = vpop.f32.mrf.mxu0
  %v718 = vadd.f32 %v684, %v717
  %v719 = vpop.f32.mrf.mxu0
  %720 = vdwg.mxu0
  %v722 = vunpack.c.l.b16 %v242
  %v723 = vpack.c.b16 %v722, %v722
  %724 = vrot.lane.b32.xlu0 %v723, 120
  %v725 = vpop.permute.xlu0 %724
  %v727 = vunpack.c.l.b16 %v250
  %v728 = vpack.c.b16 %v727, %v727
  %729 = vrot.lane.b32.xlu0 %v728, 120
  %v730 = vpop.permute.xlu0 %729
  %v732 = vsel %vm273, %v725, 0
  %v735 = vsel %vm273, %v730, 0
  %737 = vmatpush.bf16.xpose.msra.mxu0 0
  %738 = vmatpush.bf16.xpose.msra.mxu0 0
  %739 = vmatpush.bf16.xpose.msra.mxu0 0
  %740 = vmatpush.bf16.xpose.msra.mxu0 0
  %741 = vmatpush.bf16.xpose.msra.mxu0 0
  %742 = vmatpush.bf16.xpose.msra.mxu0 0
  %743 = vmatpush.bf16.xpose.msra.mxu0 0
  %744 = vmatpush.bf16.xpose.msra.mxu0 %v735
  %745 = vmatmul.bf16.gmra.mxu0 %v732
  %v746 = vpop.f32.mrf.mxu0
  %v747 = vadd.f32 %v685, %v746
  %v748 = vpop.f32.mrf.mxu0
  %749 = vdwg.mxu0
  %v751 = vunpack.c.l.b16 %v243
  %v752 = vpack.c.b16 %v751, %v751
  %753 = vrot.lane.b32.xlu0 %v752, 120
  %v754 = vpop.permute.xlu0 %753
  %v756 = vunpack.c.l.b16 %v251
  %v757 = vpack.c.b16 %v756, %v756
  %758 = vrot.lane.b32.xlu0 %v757, 120
  %v759 = vpop.permute.xlu0 %758
  %v761 = vsel %vm273, %v754, 0
  %v764 = vsel %vm273, %v759, 0
  %766 = vmatpush.bf16.xpose.msra.mxu0 0
  %767 = vmatpush.bf16.xpose.msra.mxu0 0
  %768 = vmatpush.bf16.xpose.msra.mxu0 0
  %769 = vmatpush.bf16.xpose.msra.mxu0 0
  %770 = vmatpush.bf16.xpose.msra.mxu0 0
  %771 = vmatpush.bf16.xpose.msra.mxu0 0
  %772 = vmatpush.bf16.xpose.msra.mxu0 0
  %773 = vmatpush.bf16.xpose.msra.mxu0 %v764
  %774 = vmatmul.bf16.gmra.mxu0 %v761
  %v775 = vpop.f32.mrf.mxu0
  %v776 = vadd.f32 %v686, %v775
  %v777 = vpop.f32.mrf.mxu0
  %778 = vdwg.mxu0
  %v780 = vunpack.c.l.b16 %v244
  %v781 = vpack.c.b16 %v780, %v780
  %782 = vrot.lane.b32.xlu0 %v781, 120
  %v783 = vpop.permute.xlu0 %782
  %v785 = vunpack.c.l.b16 %v252
  %v786 = vpack.c.b16 %v785, %v785
  %787 = vrot.lane.b32.xlu0 %v786, 120
  %v788 = vpop.permute.xlu0 %787
  %v790 = vsel %vm273, %v783, 0
  %v793 = vsel %vm273, %v788, 0
  %795 = vmatpush.bf16.xpose.msra.mxu0 0
  %796 = vmatpush.bf16.xpose.msra.mxu0 0
  %797 = vmatpush.bf16.xpose.msra.mxu0 0
  %798 = vmatpush.bf16.xpose.msra.mxu0 0
  %799 = vmatpush.bf16.xpose.msra.mxu0 0
  %800 = vmatpush.bf16.xpose.msra.mxu0 0
  %801 = vmatpush.bf16.xpose.msra.mxu0 0
  %802 = vmatpush.bf16.xpose.msra.mxu0 %v793
  %803 = vmatmul.bf16.gmra.mxu0 %v790
  %v804 = vpop.f32.mrf.mxu0
  %v805 = vadd.f32 %v687, %v804
  %v806 = vpop.f32.mrf.mxu0
  %807 = vdwg.mxu0
  %v809 = vunpack.c.l.b16 %v245
  %v810 = vpack.c.b16 %v809, %v809
  %811 = vrot.lane.b32.xlu0 %v810, 120
  %v812 = vpop.permute.xlu0 %811
  %v814 = vunpack.c.l.b16 %v253
  %v815 = vpack.c.b16 %v814, %v814
  %816 = vrot.lane.b32.xlu0 %v815, 120
  %v817 = vpop.permute.xlu0 %816
  %v819 = vsel %vm273, %v812, 0
  %v822 = vsel %vm273, %v817, 0
  %824 = vmatpush.bf16.xpose.msra.mxu0 0
  %825 = vmatpush.bf16.xpose.msra.mxu0 0
  %826 = vmatpush.bf16.xpose.msra.mxu0 0
  %827 = vmatpush.bf16.xpose.msra.mxu0 0
  %828 = vmatpush.bf16.xpose.msra.mxu0 0
  %829 = vmatpush.bf16.xpose.msra.mxu0 0
  %830 = vmatpush.bf16.xpose.msra.mxu0 0
  %831 = vmatpush.bf16.xpose.msra.mxu0 %v822
  %832 = vmatmul.bf16.gmra.mxu0 %v819
  %v833 = vpop.f32.mrf.mxu0
  %v834 = vadd.f32 %v688, %v833
  %v835 = vpop.f32.mrf.mxu0
  %836 = vdwg.mxu0
  %v838 = vunpack.c.l.b16 %v246
  %v839 = vpack.c.b16 %v838, %v838
  %840 = vrot.lane.b32.xlu0 %v839, 120
  %v841 = vpop.permute.xlu0 %840
  %v843 = vunpack.c.l.b16 %v254
  %v844 = vpack.c.b16 %v843, %v843
  %845 = vrot.lane.b32.xlu0 %v844, 120
  %v846 = vpop.permute.xlu0 %845
  %v848 = vsel %vm273, %v841, 0
  %v851 = vsel %vm273, %v846, 0
  %853 = vmatpush.bf16.xpose.msra.mxu0 0
  %854 = vmatpush.bf16.xpose.msra.mxu0 0
  %855 = vmatpush.bf16.xpose.msra.mxu0 0
  %856 = vmatpush.bf16.xpose.msra.mxu0 0
  %857 = vmatpush.bf16.xpose.msra.mxu0 0
  %858 = vmatpush.bf16.xpose.msra.mxu0 0
  %859 = vmatpush.bf16.xpose.msra.mxu0 0
  %860 = vmatpush.bf16.xpose.msra.mxu0 %v851
  %861 = vmatmul.bf16.gmra.mxu0 %v848
  %v862 = vpop.f32.mrf.mxu0
  %v863 = vadd.f32 %v689, %v862
  %v864 = vpop.f32.mrf.mxu0
  %865 = vdwg.mxu0
  %v867 = vunpack.c.l.b16 %v247
  %v868 = vpack.c.b16 %v867, %v867
  %869 = vrot.lane.b32.xlu0 %v868, 120
  %v870 = vpop.permute.xlu0 %869
  %v872 = vunpack.c.l.b16 %v255
  %v873 = vpack.c.b16 %v872, %v872
  %874 = vrot.lane.b32.xlu0 %v873, 120
  %v875 = vpop.permute.xlu0 %874
  %v877 = vsel %vm273, %v870, 0
  %v880 = vsel %vm273, %v875, 0
  %882 = vmatpush.bf16.xpose.msra.mxu0 0
  %883 = vmatpush.bf16.xpose.msra.mxu0 0
  %884 = vmatpush.bf16.xpose.msra.mxu0 0
  %885 = vmatpush.bf16.xpose.msra.mxu0 0
  %886 = vmatpush.bf16.xpose.msra.mxu0 0
  %887 = vmatpush.bf16.xpose.msra.mxu0 0
  %888 = vmatpush.bf16.xpose.msra.mxu0 0
  %889 = vmatpush.bf16.xpose.msra.mxu0 %v880
  %890 = vmatmul.bf16.gmra.mxu0 %v877
  %v891 = vpop.f32.mrf.mxu0
  %v892 = vadd.f32 %v690, %v891
  %v893 = vpop.f32.mrf.mxu0
  %894 = vdwg.mxu0
  %v896 = vunpack.c.l.b16 %v248
  %v897 = vpack.c.b16 %v896, %v896
  %898 = vrot.lane.b32.xlu0 %v897, 120
  %v899 = vpop.permute.xlu0 %898
  %v901 = vunpack.c.l.b16 %v256
  %v902 = vpack.c.b16 %v901, %v901
  %903 = vrot.lane.b32.xlu0 %v902, 120
  %v904 = vpop.permute.xlu0 %903
  %v906 = vsel %vm273, %v899, 0
  %v909 = vsel %vm273, %v904, 0
  %911 = vmatpush.bf16.xpose.msra.mxu0 0
  %912 = vmatpush.bf16.xpose.msra.mxu0 0
  %913 = vmatpush.bf16.xpose.msra.mxu0 0
  %914 = vmatpush.bf16.xpose.msra.mxu0 0
  %915 = vmatpush.bf16.xpose.msra.mxu0 0
  %916 = vmatpush.bf16.xpose.msra.mxu0 0
  %917 = vmatpush.bf16.xpose.msra.mxu0 0
  %918 = vmatpush.bf16.xpose.msra.mxu0 %v909
  %919 = vmatmul.bf16.gmra.mxu0 %v906
  %v920 = vpop.f32.mrf.mxu0
  %v921 = vadd.f32 %v691, %v920
  %v922 = vpop.f32.mrf.mxu0
  %923 = vdwg.mxu0
  %s924 = scalar_lea.vmem %s13, 64
  %925 = vst.msk [vmem:[%s924] sm:$0xff] %vm273, %v718
  %926 = vst.msk [vmem:[%s924 + $0x8] sm:$0xff] %vm273, %v747
  %927 = vst.msk [vmem:[%s924 + $0x10] sm:$0xff] %vm273, %v776
  %928 = vst.msk [vmem:[%s924 + $0x18] sm:$0xff] %vm273, %v805
  %929 = vst.msk [vmem:[%s924 + $0x20] sm:$0xff] %vm273, %v834
  %930 = vst.msk [vmem:[%s924 + $0x28] sm:$0xff] %vm273, %v863
  %931 = vst.msk [vmem:[%s924 + $0x30] sm:$0xff] %vm273, %v892
  %932 = vst.msk [vmem:[%s924 + $0x38] sm:$0xff] %vm273, %v921
  %v933 = vsel %vm273, %v718, -inf
  %934 = vmax.xlane.f32.xlu0 %v933
  %v935 = vpop.xlane.xlu0 %934
  %v936 = vsel %vm273, %v747, -inf
  %937 = vmax.xlane.f32.xlu0 %v936
  %v938 = vpop.xlane.xlu0 %937
  %v939 = vsel %vm273, %v776, -inf
  %940 = vmax.xlane.f32.xlu0 %v939
  %v941 = vpop.xlane.xlu0 %940
  %v942 = vsel %vm273, %v805, -inf
  %943 = vmax.xlane.f32.xlu0 %v942
  %v944 = vpop.xlane.xlu0 %943
  %v945 = vsel %vm273, %v834, -inf
  %946 = vmax.xlane.f32.xlu0 %v945
  %v947 = vpop.xlane.xlu0 %946
  %v948 = vsel %vm273, %v863, -inf
  %949 = vmax.xlane.f32.xlu0 %v948
  %v950 = vpop.xlane.xlu0 %949
  %v951 = vsel %vm273, %v892, -inf
  %952 = vmax.xlane.f32.xlu0 %v951
  %v953 = vpop.xlane.xlu0 %952
  %v954 = vsel %vm273, %v921, -inf
  %955 = vmax.xlane.f32.xlu0 %v954
  %v956 = vpop.xlane.xlu0 %955
  %v957 = vsub.f32 %v718, %v935
  %v958 = vsub.f32 %v747, %v938
  %v959 = vsub.f32 %v776, %v941
  %v960 = vsub.f32 %v805, %v944
  %v961 = vsub.f32 %v834, %v947
  %v962 = vsub.f32 %v863, %v950
  %v963 = vsub.f32 %v892, %v953
  %v964 = vsub.f32 %v921, %v956
  %v965 = vmul.f32 %v957, 1.442695
  %v966 = vpow.pop %v965
  %v967 = vmul.f32 %v958, 1.442695
  %v968 = vpow.pop %v967
  %v969 = vmul.f32 %v959, 1.442695
  %v970 = vpow.pop %v969
  %v971 = vmul.f32 %v960, 1.442695
  %v972 = vpow.pop %v971
  %v973 = vmul.f32 %v961, 1.442695
  %v974 = vpow.pop %v973
  %v975 = vmul.f32 %v962, 1.442695
  %v976 = vpow.pop %v975
  %v977 = vmul.f32 %v963, 1.442695
  %v978 = vpow.pop %v977
  %v979 = vmul.f32 %v964, 1.442695
  %v980 = vpow.pop %v979
  %v981 = vsel %vm273, %v966, 0.0
  %982 = vadd.xlane.f32.xlu0 %v981
  %v983 = vpop.xlane.xlu0 %982
  %v984 = vsel %vm273, %v968, 0.0
  %985 = vadd.xlane.f32.xlu0 %v984
  %v986 = vpop.xlane.xlu0 %985
  %v987 = vsel %vm273, %v970, 0.0
  %988 = vadd.xlane.f32.xlu0 %v987
  %v989 = vpop.xlane.xlu0 %988
  %v990 = vsel %vm273, %v972, 0.0
  %991 = vadd.xlane.f32.xlu0 %v990
  %v992 = vpop.xlane.xlu0 %991
  %v993 = vsel %vm273, %v974, 0.0
  %994 = vadd.xlane.f32.xlu0 %v993
  %v995 = vpop.xlane.xlu0 %994
  %v996 = vsel %vm273, %v976, 0.0
  %997 = vadd.xlane.f32.xlu0 %v996
  %v998 = vpop.xlane.xlu0 %997
  %v999 = vsel %vm273, %v978, 0.0
  %1000 = vadd.xlane.f32.xlu0 %v999
  %v1001 = vpop.xlane.xlu0 %1000
  %v1002 = vsel %vm273, %v980, 0.0
  %1003 = vadd.xlane.f32.xlu0 %v1002
  %v1004 = vpop.xlane.xlu0 %1003
  %v1005 = vrcp.pop %v983
  %v1006 = vrcp.pop %v986
  %v1007 = vrcp.pop %v989
  %v1008 = vrcp.pop %v992
  %v1009 = vrcp.pop %v995
  %v1010 = vrcp.pop %v998
  %v1011 = vrcp.pop %v1001
  %v1012 = vrcp.pop %v1004
  %v1013 = vmul.f32 %v966, %v1005
  %v1014 = vmul.f32 %v968, %v1006
  %v1015 = vmul.f32 %v970, %v1007
  %v1016 = vmul.f32 %v972, %v1008
  %v1017 = vmul.f32 %v974, %v1009
  %v1018 = vmul.f32 %v976, %v1010
  %v1019 = vmul.f32 %v978, %v1011
  %v1020 = vmul.f32 %v980, %v1012
  %v1021 = vpack.c.bf16 %v1013, %v1013
  %v1022 = vpack.c.bf16 %v1014, %v1014
  %v1023 = vpack.c.bf16 %v1015, %v1015
  %v1024 = vpack.c.bf16 %v1016, %v1016
  %v1025 = vpack.c.bf16 %v1017, %v1017
  %v1026 = vpack.c.bf16 %v1018, %v1018
  %v1027 = vpack.c.bf16 %v1019, %v1019
  %v1028 = vpack.c.bf16 %v1020, %v1020
  %v1030 = vunpack.c.l.b16 %v257
  %v1031 = vpack.c.b16 %v1030, %v1030
  %1032 = vrot.lane.b32.xlu0 %v1031, 120
  %v1033 = vpop.permute.xlu0 %1032
  %v1035 = vsel %vm273, %v1021, 0
  %v1038 = vsel %vm533, %v1033, 0
  %1040 = vmatpush.bf16.msra.mxu0 0
  %1041 = vmatpush.bf16.msra.mxu0 0
  %1042 = vmatpush.bf16.msra.mxu0 0
  %1043 = vmatpush.bf16.msra.mxu0 0
  %1044 = vmatpush.bf16.msra.mxu0 0
  %1045 = vmatpush.bf16.msra.mxu0 0
  %1046 = vmatpush.bf16.msra.mxu0 0
  %1047 = vmatpush.bf16.msra.mxu0 %v1038
  %1048 = vmatmul.bf16.gmra.mxu0 %v1035
  %v1049 = vpop.f32.mrf.mxu0
  %v1050 = vadd.f32 0.0, %v1049
  %v1051 = vpop.f32.mrf.mxu0
  %1052 = vdwg.mxu0
  %v1054 = vunpack.c.l.b16 %v258
  %v1055 = vpack.c.b16 %v1054, %v1054
  %1056 = vrot.lane.b32.xlu0 %v1055, 120
  %v1057 = vpop.permute.xlu0 %1056
  %v1059 = vsel %vm273, %v1022, 0
  %v1062 = vsel %vm533, %v1057, 0
  %1064 = vmatpush.bf16.msra.mxu0 0
  %1065 = vmatpush.bf16.msra.mxu0 0
  %1066 = vmatpush.bf16.msra.mxu0 0
  %1067 = vmatpush.bf16.msra.mxu0 0
  %1068 = vmatpush.bf16.msra.mxu0 0
  %1069 = vmatpush.bf16.msra.mxu0 0
  %1070 = vmatpush.bf16.msra.mxu0 0
  %1071 = vmatpush.bf16.msra.mxu0 %v1062
  %1072 = vmatmul.bf16.gmra.mxu0 %v1059
  %v1073 = vpop.f32.mrf.mxu0
  %v1074 = vadd.f32 0.0, %v1073
  %v1075 = vpop.f32.mrf.mxu0
  %1076 = vdwg.mxu0
  %v1078 = vunpack.c.l.b16 %v259
  %v1079 = vpack.c.b16 %v1078, %v1078
  %1080 = vrot.lane.b32.xlu0 %v1079, 120
  %v1081 = vpop.permute.xlu0 %1080
  %v1083 = vsel %vm273, %v1023, 0
  %v1086 = vsel %vm533, %v1081, 0
  %1088 = vmatpush.bf16.msra.mxu0 0
  %1089 = vmatpush.bf16.msra.mxu0 0
  %1090 = vmatpush.bf16.msra.mxu0 0
  %1091 = vmatpush.bf16.msra.mxu0 0
  %1092 = vmatpush.bf16.msra.mxu0 0
  %1093 = vmatpush.bf16.msra.mxu0 0
  %1094 = vmatpush.bf16.msra.mxu0 0
  %1095 = vmatpush.bf16.msra.mxu0 %v1086
  %1096 = vmatmul.bf16.gmra.mxu0 %v1083
  %v1097 = vpop.f32.mrf.mxu0
  %v1098 = vadd.f32 0.0, %v1097
  %v1099 = vpop.f32.mrf.mxu0
  %1100 = vdwg.mxu0
  %v1102 = vunpack.c.l.b16 %v260
  %v1103 = vpack.c.b16 %v1102, %v1102
  %1104 = vrot.lane.b32.xlu0 %v1103, 120
  %v1105 = vpop.permute.xlu0 %1104
  %v1107 = vsel %vm273, %v1024, 0
  %v1110 = vsel %vm533, %v1105, 0
  %1112 = vmatpush.bf16.msra.mxu0 0
  %1113 = vmatpush.bf16.msra.mxu0 0
  %1114 = vmatpush.bf16.msra.mxu0 0
  %1115 = vmatpush.bf16.msra.mxu0 0
  %1116 = vmatpush.bf16.msra.mxu0 0
  %1117 = vmatpush.bf16.msra.mxu0 0
  %1118 = vmatpush.bf16.msra.mxu0 0
  %1119 = vmatpush.bf16.msra.mxu0 %v1110
  %1120 = vmatmul.bf16.gmra.mxu0 %v1107
  %v1121 = vpop.f32.mrf.mxu0
  %v1122 = vadd.f32 0.0, %v1121
  %v1123 = vpop.f32.mrf.mxu0
  %1124 = vdwg.mxu0
  %v1126 = vunpack.c.l.b16 %v261
  %v1127 = vpack.c.b16 %v1126, %v1126
  %1128 = vrot.lane.b32.xlu0 %v1127, 120
  %v1129 = vpop.permute.xlu0 %1128
  %v1131 = vsel %vm273, %v1025, 0
  %v1134 = vsel %vm533, %v1129, 0
  %1136 = vmatpush.bf16.msra.mxu0 0
  %1137 = vmatpush.bf16.msra.mxu0 0
  %1138 = vmatpush.bf16.msra.mxu0 0
  %1139 = vmatpush.bf16.msra.mxu0 0
  %1140 = vmatpush.bf16.msra.mxu0 0
  %1141 = vmatpush.bf16.msra.mxu0 0
  %1142 = vmatpush.bf16.msra.mxu0 0
  %1143 = vmatpush.bf16.msra.mxu0 %v1134
  %1144 = vmatmul.bf16.gmra.mxu0 %v1131
  %v1145 = vpop.f32.mrf.mxu0
  %v1146 = vadd.f32 0.0, %v1145
  %v1147 = vpop.f32.mrf.mxu0
  %1148 = vdwg.mxu0
  %v1150 = vunpack.c.l.b16 %v262
  %v1151 = vpack.c.b16 %v1150, %v1150
  %1152 = vrot.lane.b32.xlu0 %v1151, 120
  %v1153 = vpop.permute.xlu0 %1152
  %v1155 = vsel %vm273, %v1026, 0
  %v1158 = vsel %vm533, %v1153, 0
  %1160 = vmatpush.bf16.msra.mxu0 0
  %1161 = vmatpush.bf16.msra.mxu0 0
  %1162 = vmatpush.bf16.msra.mxu0 0
  %1163 = vmatpush.bf16.msra.mxu0 0
  %1164 = vmatpush.bf16.msra.mxu0 0
  %1165 = vmatpush.bf16.msra.mxu0 0
  %1166 = vmatpush.bf16.msra.mxu0 0
  %1167 = vmatpush.bf16.msra.mxu0 %v1158
  %1168 = vmatmul.bf16.gmra.mxu0 %v1155
  %v1169 = vpop.f32.mrf.mxu0
  %v1170 = vadd.f32 0.0, %v1169
  %v1171 = vpop.f32.mrf.mxu0
  %1172 = vdwg.mxu0
  %v1174 = vunpack.c.l.b16 %v263
  %v1175 = vpack.c.b16 %v1174, %v1174
  %1176 = vrot.lane.b32.xlu0 %v1175, 120
  %v1177 = vpop.permute.xlu0 %1176
  %v1179 = vsel %vm273, %v1027, 0
  %v1182 = vsel %vm533, %v1177, 0
  %1184 = vmatpush.bf16.msra.mxu0 0
  %1185 = vmatpush.bf16.msra.mxu0 0
  %1186 = vmatpush.bf16.msra.mxu0 0
  %1187 = vmatpush.bf16.msra.mxu0 0
  %1188 = vmatpush.bf16.msra.mxu0 0
  %1189 = vmatpush.bf16.msra.mxu0 0
  %1190 = vmatpush.bf16.msra.mxu0 0
  %1191 = vmatpush.bf16.msra.mxu0 %v1182
  %1192 = vmatmul.bf16.gmra.mxu0 %v1179
  %v1193 = vpop.f32.mrf.mxu0
  %v1194 = vadd.f32 0.0, %v1193
  %v1195 = vpop.f32.mrf.mxu0
  %1196 = vdwg.mxu0
  %v1198 = vunpack.c.l.b16 %v264
  %v1199 = vpack.c.b16 %v1198, %v1198
  %1200 = vrot.lane.b32.xlu0 %v1199, 120
  %v1201 = vpop.permute.xlu0 %1200
  %v1203 = vsel %vm273, %v1028, 0
  %v1206 = vsel %vm533, %v1201, 0
  %1208 = vmatpush.bf16.msra.mxu0 0
  %1209 = vmatpush.bf16.msra.mxu0 0
  %1210 = vmatpush.bf16.msra.mxu0 0
  %1211 = vmatpush.bf16.msra.mxu0 0
  %1212 = vmatpush.bf16.msra.mxu0 0
  %1213 = vmatpush.bf16.msra.mxu0 0
  %1214 = vmatpush.bf16.msra.mxu0 0
  %1215 = vmatpush.bf16.msra.mxu0 %v1206
  %1216 = vmatmul.bf16.gmra.mxu0 %v1203
  %v1217 = vpop.f32.mrf.mxu0
  %v1218 = vadd.f32 0.0, %v1217
  %v1219 = vpop.f32.mrf.mxu0
  %1220 = vdwg.mxu0
  %s1221 = scalar_lea.vmem %s1, 128
  %v1222 = vld [vmem:[%s1221] sm:$0xff]
  %v1223 = vld [vmem:[%s1221 + $0x8] sm:$0xff]
  %v1224 = vld [vmem:[%s1221 + $0x10] sm:$0xff]
  %v1225 = vld [vmem:[%s1221 + $0x18] sm:$0xff]
  %v1226 = vld [vmem:[%s1221 + $0x20] sm:$0xff]
  %v1227 = vld [vmem:[%s1221 + $0x28] sm:$0xff]
  %v1228 = vld [vmem:[%s1221 + $0x30] sm:$0xff]
  %v1229 = vld [vmem:[%s1221 + $0x38] sm:$0xff]
  %1230 = vrot.lane.b32.xlu0 %v694, 112
  %v1231 = vpop.permute.xlu0 %1230
  %1232 = vrot.lane.b32.xlu0 %v699, 112
  %v1233 = vpop.permute.xlu0 %1232
  %v1235 = vsel %vm273, %v1231, 0
  %v1238 = vsel %vm273, %v1233, 0
  %1240 = vmatpush.bf16.xpose.msra.mxu0 0
  %1241 = vmatpush.bf16.xpose.msra.mxu0 0
  %1242 = vmatpush.bf16.xpose.msra.mxu0 0
  %1243 = vmatpush.bf16.xpose.msra.mxu0 0
  %1244 = vmatpush.bf16.xpose.msra.mxu0 0
  %1245 = vmatpush.bf16.xpose.msra.mxu0 0
  %1246 = vmatpush.bf16.xpose.msra.mxu0 0
  %1247 = vmatpush.bf16.xpose.msra.mxu0 %v1238
  %1248 = vmatmul.bf16.gmra.mxu0 %v1235
  %v1249 = vpop.f32.mrf.mxu0
  %v1250 = vadd.f32 %v1222, %v1249
  %v1251 = vpop.f32.mrf.mxu0
  %1252 = vdwg.mxu0
  %1253 = vrot.lane.b32.xlu0 %v723, 112
  %v1254 = vpop.permute.xlu0 %1253
  %1255 = vrot.lane.b32.xlu0 %v728, 112
  %v1256 = vpop.permute.xlu0 %1255
  %v1258 = vsel %vm273, %v1254, 0
  %v1261 = vsel %vm273, %v1256, 0
  %1263 = vmatpush.bf16.xpose.msra.mxu0 0
  %1264 = vmatpush.bf16.xpose.msra.mxu0 0
  %1265 = vmatpush.bf16.xpose.msra.mxu0 0
  %1266 = vmatpush.bf16.xpose.msra.mxu0 0
  %1267 = vmatpush.bf16.xpose.msra.mxu0 0
  %1268 = vmatpush.bf16.xpose.msra.mxu0 0
  %1269 = vmatpush.bf16.xpose.msra.mxu0 0
  %1270 = vmatpush.bf16.xpose.msra.mxu0 %v1261
  %1271 = vmatmul.bf16.gmra.mxu0 %v1258
  %v1272 = vpop.f32.mrf.mxu0
  %v1273 = vadd.f32 %v1223, %v1272
  %v1274 = vpop.f32.mrf.mxu0
  %1275 = vdwg.mxu0
  %1276 = vrot.lane.b32.xlu0 %v752, 112
  %v1277 = vpop.permute.xlu0 %1276
  %1278 = vrot.lane.b32.xlu0 %v757, 112
  %v1279 = vpop.permute.xlu0 %1278
  %v1281 = vsel %vm273, %v1277, 0
  %v1284 = vsel %vm273, %v1279, 0
  %1286 = vmatpush.bf16.xpose.msra.mxu0 0
  %1287 = vmatpush.bf16.xpose.msra.mxu0 0
  %1288 = vmatpush.bf16.xpose.msra.mxu0 0
  %1289 = vmatpush.bf16.xpose.msra.mxu0 0
  %1290 = vmatpush.bf16.xpose.msra.mxu0 0
  %1291 = vmatpush.bf16.xpose.msra.mxu0 0
  %1292 = vmatpush.bf16.xpose.msra.mxu0 0
  %1293 = vmatpush.bf16.xpose.msra.mxu0 %v1284
  %1294 = vmatmul.bf16.gmra.mxu0 %v1281
  %v1295 = vpop.f32.mrf.mxu0
  %v1296 = vadd.f32 %v1224, %v1295
  %v1297 = vpop.f32.mrf.mxu0
  %1298 = vdwg.mxu0
  %1299 = vrot.lane.b32.xlu0 %v781, 112
  %v1300 = vpop.permute.xlu0 %1299
  %1301 = vrot.lane.b32.xlu0 %v786, 112
  %v1302 = vpop.permute.xlu0 %1301
  %v1304 = vsel %vm273, %v1300, 0
  %v1307 = vsel %vm273, %v1302, 0
  %1309 = vmatpush.bf16.xpose.msra.mxu0 0
  %1310 = vmatpush.bf16.xpose.msra.mxu0 0
  %1311 = vmatpush.bf16.xpose.msra.mxu0 0
  %1312 = vmatpush.bf16.xpose.msra.mxu0 0
  %1313 = vmatpush.bf16.xpose.msra.mxu0 0
  %1314 = vmatpush.bf16.xpose.msra.mxu0 0
  %1315 = vmatpush.bf16.xpose.msra.mxu0 0
  %1316 = vmatpush.bf16.xpose.msra.mxu0 %v1307
  %1317 = vmatmul.bf16.gmra.mxu0 %v1304
  %v1318 = vpop.f32.mrf.mxu0
  %v1319 = vadd.f32 %v1225, %v1318
  %v1320 = vpop.f32.mrf.mxu0
  %1321 = vdwg.mxu0
  %1322 = vrot.lane.b32.xlu0 %v810, 112
  %v1323 = vpop.permute.xlu0 %1322
  %1324 = vrot.lane.b32.xlu0 %v815, 112
  %v1325 = vpop.permute.xlu0 %1324
  %v1327 = vsel %vm273, %v1323, 0
  %v1330 = vsel %vm273, %v1325, 0
  %1332 = vmatpush.bf16.xpose.msra.mxu0 0
  %1333 = vmatpush.bf16.xpose.msra.mxu0 0
  %1334 = vmatpush.bf16.xpose.msra.mxu0 0
  %1335 = vmatpush.bf16.xpose.msra.mxu0 0
  %1336 = vmatpush.bf16.xpose.msra.mxu0 0
  %1337 = vmatpush.bf16.xpose.msra.mxu0 0
  %1338 = vmatpush.bf16.xpose.msra.mxu0 0
  %1339 = vmatpush.bf16.xpose.msra.mxu0 %v1330
  %1340 = vmatmul.bf16.gmra.mxu0 %v1327
  %v1341 = vpop.f32.mrf.mxu0
  %v1342 = vadd.f32 %v1226, %v1341
  %v1343 = vpop.f32.mrf.mxu0
  %1344 = vdwg.mxu0
  %1345 = vrot.lane.b32.xlu0 %v839, 112
  %v1346 = vpop.permute.xlu0 %1345
  %1347 = vrot.lane.b32.xlu0 %v844, 112
  %v1348 = vpop.permute.xlu0 %1347
  %v1350 = vsel %vm273, %v1346, 0
  %v1353 = vsel %vm273, %v1348, 0
  %1355 = vmatpush.bf16.xpose.msra.mxu0 0
  %1356 = vmatpush.bf16.xpose.msra.mxu0 0
  %1357 = vmatpush.bf16.xpose.msra.mxu0 0
  %1358 = vmatpush.bf16.xpose.msra.mxu0 0
  %1359 = vmatpush.bf16.xpose.msra.mxu0 0
  %1360 = vmatpush.bf16.xpose.msra.mxu0 0
  %1361 = vmatpush.bf16.xpose.msra.mxu0 0
  %1362 = vmatpush.bf16.xpose.msra.mxu0 %v1353
  %1363 = vmatmul.bf16.gmra.mxu0 %v1350
  %v1364 = vpop.f32.mrf.mxu0
  %v1365 = vadd.f32 %v1227, %v1364
  %v1366 = vpop.f32.mrf.mxu0
  %1367 = vdwg.mxu0
  %1368 = vrot.lane.b32.xlu0 %v868, 112
  %v1369 = vpop.permute.xlu0 %1368
  %1370 = vrot.lane.b32.xlu0 %v873, 112
  %v1371 = vpop.permute.xlu0 %1370
  %v1373 = vsel %vm273, %v1369, 0
  %v1376 = vsel %vm273, %v1371, 0
  %1378 = vmatpush.bf16.xpose.msra.mxu0 0
  %1379 = vmatpush.bf16.xpose.msra.mxu0 0
  %1380 = vmatpush.bf16.xpose.msra.mxu0 0
  %1381 = vmatpush.bf16.xpose.msra.mxu0 0
  %1382 = vmatpush.bf16.xpose.msra.mxu0 0
  %1383 = vmatpush.bf16.xpose.msra.mxu0 0
  %1384 = vmatpush.bf16.xpose.msra.mxu0 0
  %1385 = vmatpush.bf16.xpose.msra.mxu0 %v1376
  %1386 = vmatmul.bf16.gmra.mxu0 %v1373
  %v1387 = vpop.f32.mrf.mxu0
  %v1388 = vadd.f32 %v1228, %v1387
  %v1389 = vpop.f32.mrf.mxu0
  %1390 = vdwg.mxu0
  %1391 = vrot.lane.b32.xlu0 %v897, 112
  %v1392 = vpop.permute.xlu0 %1391
  %1393 = vrot.lane.b32.xlu0 %v902, 112
  %v1394 = vpop.permute.xlu0 %1393
  %v1396 = vsel %vm273, %v1392, 0
  %v1399 = vsel %vm273, %v1394, 0
  %1401 = vmatpush.bf16.xpose.msra.mxu0 0
  %1402 = vmatpush.bf16.xpose.msra.mxu0 0
  %1403 = vmatpush.bf16.xpose.msra.mxu0 0
  %1404 = vmatpush.bf16.xpose.msra.mxu0 0
  %1405 = vmatpush.bf16.xpose.msra.mxu0 0
  %1406 = vmatpush.bf16.xpose.msra.mxu0 0
  %1407 = vmatpush.bf16.xpose.msra.mxu0 0
  %1408 = vmatpush.bf16.xpose.msra.mxu0 %v1399
  %1409 = vmatmul.bf16.gmra.mxu0 %v1396
  %v1410 = vpop.f32.mrf.mxu0
  %v1411 = vadd.f32 %v1229, %v1410
  %v1412 = vpop.f32.mrf.mxu0
  %1413 = vdwg.mxu0
  %s1414 = scalar_lea.vmem %s13, 128
  %1415 = vst.msk [vmem:[%s1414] sm:$0xff] %vm273, %v1250
  %1416 = vst.msk [vmem:[%s1414 + $0x8] sm:$0xff] %vm273, %v1273
  %1417 = vst.msk [vmem:[%s1414 + $0x10] sm:$0xff] %vm273, %v1296
  %1418 = vst.msk [vmem:[%s1414 + $0x18] sm:$0xff] %vm273, %v1319
  %1419 = vst.msk [vmem:[%s1414 + $0x20] sm:$0xff] %vm273, %v1342
  %1420 = vst.msk [vmem:[%s1414 + $0x28] sm:$0xff] %vm273, %v1365
  %1421 = vst.msk [vmem:[%s1414 + $0x30] sm:$0xff] %vm273, %v1388
  %1422 = vst.msk [vmem:[%s1414 + $0x38] sm:$0xff] %vm273, %v1411
  %v1423 = vsel %vm273, %v1250, -inf
  %1424 = vmax.xlane.f32.xlu0 %v1423
  %v1425 = vpop.xlane.xlu0 %1424
  %v1426 = vsel %vm273, %v1273, -inf
  %1427 = vmax.xlane.f32.xlu0 %v1426
  %v1428 = vpop.xlane.xlu0 %1427
  %v1429 = vsel %vm273, %v1296, -inf
  %1430 = vmax.xlane.f32.xlu0 %v1429
  %v1431 = vpop.xlane.xlu0 %1430
  %v1432 = vsel %vm273, %v1319, -inf
  %1433 = vmax.xlane.f32.xlu0 %v1432
  %v1434 = vpop.xlane.xlu0 %1433
  %v1435 = vsel %vm273, %v1342, -inf
  %1436 = vmax.xlane.f32.xlu0 %v1435
  %v1437 = vpop.xlane.xlu0 %1436
  %v1438 = vsel %vm273, %v1365, -inf
  %1439 = vmax.xlane.f32.xlu0 %v1438
  %v1440 = vpop.xlane.xlu0 %1439
  %v1441 = vsel %vm273, %v1388, -inf
  %1442 = vmax.xlane.f32.xlu0 %v1441
  %v1443 = vpop.xlane.xlu0 %1442
  %v1444 = vsel %vm273, %v1411, -inf
  %1445 = vmax.xlane.f32.xlu0 %v1444
  %v1446 = vpop.xlane.xlu0 %1445
  %v1447 = vsub.f32 %v1250, %v1425
  %v1448 = vsub.f32 %v1273, %v1428
  %v1449 = vsub.f32 %v1296, %v1431
  %v1450 = vsub.f32 %v1319, %v1434
  %v1451 = vsub.f32 %v1342, %v1437
  %v1452 = vsub.f32 %v1365, %v1440
  %v1453 = vsub.f32 %v1388, %v1443
  %v1454 = vsub.f32 %v1411, %v1446
  %v1455 = vmul.f32 %v1447, 1.442695
  %v1456 = vpow.pop %v1455
  %v1457 = vmul.f32 %v1448, 1.442695
  %v1458 = vpow.pop %v1457
  %v1459 = vmul.f32 %v1449, 1.442695
  %v1460 = vpow.pop %v1459
  %v1461 = vmul.f32 %v1450, 1.442695
  %v1462 = vpow.pop %v1461
  %v1463 = vmul.f32 %v1451, 1.442695
  %v1464 = vpow.pop %v1463
  %v1465 = vmul.f32 %v1452, 1.442695
  %v1466 = vpow.pop %v1465
  %v1467 = vmul.f32 %v1453, 1.442695
  %v1468 = vpow.pop %v1467
  %v1469 = vmul.f32 %v1454, 1.442695
  %v1470 = vpow.pop %v1469
  %v1471 = vsel %vm273, %v1456, 0.0
  %1472 = vadd.xlane.f32.xlu0 %v1471
  %v1473 = vpop.xlane.xlu0 %1472
  %v1474 = vsel %vm273, %v1458, 0.0
  %1475 = vadd.xlane.f32.xlu0 %v1474
  %v1476 = vpop.xlane.xlu0 %1475
  %v1477 = vsel %vm273, %v1460, 0.0
  %1478 = vadd.xlane.f32.xlu0 %v1477
  %v1479 = vpop.xlane.xlu0 %1478
  %v1480 = vsel %vm273, %v1462, 0.0
  %1481 = vadd.xlane.f32.xlu0 %v1480
  %v1482 = vpop.xlane.xlu0 %1481
  %v1483 = vsel %vm273, %v1464, 0.0
  %1484 = vadd.xlane.f32.xlu0 %v1483
  %v1485 = vpop.xlane.xlu0 %1484
  %v1486 = vsel %vm273, %v1466, 0.0
  %1487 = vadd.xlane.f32.xlu0 %v1486
  %v1488 = vpop.xlane.xlu0 %1487
  %v1489 = vsel %vm273, %v1468, 0.0
  %1490 = vadd.xlane.f32.xlu0 %v1489
  %v1491 = vpop.xlane.xlu0 %1490
  %v1492 = vsel %vm273, %v1470, 0.0
  %1493 = vadd.xlane.f32.xlu0 %v1492
  %v1494 = vpop.xlane.xlu0 %1493
  %v1495 = vrcp.pop %v1473
  %v1496 = vrcp.pop %v1476
  %v1497 = vrcp.pop %v1479
  %v1498 = vrcp.pop %v1482
  %v1499 = vrcp.pop %v1485
  %v1500 = vrcp.pop %v1488
  %v1501 = vrcp.pop %v1491
  %v1502 = vrcp.pop %v1494
  %v1503 = vmul.f32 %v1456, %v1495
  %v1504 = vmul.f32 %v1458, %v1496
  %v1505 = vmul.f32 %v1460, %v1497
  %v1506 = vmul.f32 %v1462, %v1498
  %v1507 = vmul.f32 %v1464, %v1499
  %v1508 = vmul.f32 %v1466, %v1500
  %v1509 = vmul.f32 %v1468, %v1501
  %v1510 = vmul.f32 %v1470, %v1502
  %v1511 = vpack.c.bf16 %v1503, %v1503
  %v1512 = vpack.c.bf16 %v1504, %v1504
  %v1513 = vpack.c.bf16 %v1505, %v1505
  %v1514 = vpack.c.bf16 %v1506, %v1506
  %v1515 = vpack.c.bf16 %v1507, %v1507
  %v1516 = vpack.c.bf16 %v1508, %v1508
  %v1517 = vpack.c.bf16 %v1509, %v1509
  %v1518 = vpack.c.bf16 %v1510, %v1510
  %1519 = vrot.lane.b32.xlu0 %v1031, 112
  %v1520 = vpop.permute.xlu0 %1519
  %v1522 = vsel %vm273, %v1511, 0
  %v1525 = vsel %vm533, %v1520, 0
  %1527 = vmatpush.bf16.msra.mxu0 0
  %1528 = vmatpush.bf16.msra.mxu0 0
  %1529 = vmatpush.bf16.msra.mxu0 0
  %1530 = vmatpush.bf16.msra.mxu0 0
  %1531 = vmatpush.bf16.msra.mxu0 0
  %1532 = vmatpush.bf16.msra.mxu0 0
  %1533 = vmatpush.bf16.msra.mxu0 0
  %1534 = vmatpush.bf16.msra.mxu0 %v1525
  %1535 = vmatmul.bf16.gmra.mxu0 %v1522
  %v1536 = vpop.f32.mrf.mxu0
  %v1537 = vadd.f32 0.0, %v1536
  %v1538 = vpop.f32.mrf.mxu0
  %1539 = vdwg.mxu0
  %1540 = vrot.lane.b32.xlu0 %v1055, 112
  %v1541 = vpop.permute.xlu0 %1540
  %v1543 = vsel %vm273, %v1512, 0
  %v1546 = vsel %vm533, %v1541, 0
  %1548 = vmatpush.bf16.msra.mxu0 0
  %1549 = vmatpush.bf16.msra.mxu0 0
  %1550 = vmatpush.bf16.msra.mxu0 0
  %1551 = vmatpush.bf16.msra.mxu0 0
  %1552 = vmatpush.bf16.msra.mxu0 0
  %1553 = vmatpush.bf16.msra.mxu0 0
  %1554 = vmatpush.bf16.msra.mxu0 0
  %1555 = vmatpush.bf16.msra.mxu0 %v1546
  %1556 = vmatmul.bf16.gmra.mxu0 %v1543
  %v1557 = vpop.f32.mrf.mxu0
  %v1558 = vadd.f32 0.0, %v1557
  %v1559 = vpop.f32.mrf.mxu0
  %1560 = vdwg.mxu0
  %1561 = vrot.lane.b32.xlu0 %v1079, 112
  %v1562 = vpop.permute.xlu0 %1561
  %v1564 = vsel %vm273, %v1513, 0
  %v1567 = vsel %vm533, %v1562, 0
  %1569 = vmatpush.bf16.msra.mxu0 0
  %1570 = vmatpush.bf16.msra.mxu0 0
  %1571 = vmatpush.bf16.msra.mxu0 0
  %1572 = vmatpush.bf16.msra.mxu0 0
  %1573 = vmatpush.bf16.msra.mxu0 0
  %1574 = vmatpush.bf16.msra.mxu0 0
  %1575 = vmatpush.bf16.msra.mxu0 0
  %1576 = vmatpush.bf16.msra.mxu0 %v1567
  %1577 = vmatmul.bf16.gmra.mxu0 %v1564
  %v1578 = vpop.f32.mrf.mxu0
  %v1579 = vadd.f32 0.0, %v1578
  %v1580 = vpop.f32.mrf.mxu0
  %1581 = vdwg.mxu0
  %1582 = vrot.lane.b32.xlu0 %v1103, 112
  %v1583 = vpop.permute.xlu0 %1582
  %v1585 = vsel %vm273, %v1514, 0
  %v1588 = vsel %vm533, %v1583, 0
  %1590 = vmatpush.bf16.msra.mxu0 0
  %1591 = vmatpush.bf16.msra.mxu0 0
  %1592 = vmatpush.bf16.msra.mxu0 0
  %1593 = vmatpush.bf16.msra.mxu0 0
  %1594 = vmatpush.bf16.msra.mxu0 0
  %1595 = vmatpush.bf16.msra.mxu0 0
  %1596 = vmatpush.bf16.msra.mxu0 0
  %1597 = vmatpush.bf16.msra.mxu0 %v1588
  %1598 = vmatmul.bf16.gmra.mxu0 %v1585
  %v1599 = vpop.f32.mrf.mxu0
  %v1600 = vadd.f32 0.0, %v1599
  %v1601 = vpop.f32.mrf.mxu0
  %1602 = vdwg.mxu0
  %1603 = vrot.lane.b32.xlu0 %v1127, 112
  %v1604 = vpop.permute.xlu0 %1603
  %v1606 = vsel %vm273, %v1515, 0
  %v1609 = vsel %vm533, %v1604, 0
  %1611 = vmatpush.bf16.msra.mxu0 0
  %1612 = vmatpush.bf16.msra.mxu0 0
  %1613 = vmatpush.bf16.msra.mxu0 0
  %1614 = vmatpush.bf16.msra.mxu0 0
  %1615 = vmatpush.bf16.msra.mxu0 0
  %1616 = vmatpush.bf16.msra.mxu0 0
  %1617 = vmatpush.bf16.msra.mxu0 0
  %1618 = vmatpush.bf16.msra.mxu0 %v1609
  %1619 = vmatmul.bf16.gmra.mxu0 %v1606
  %v1620 = vpop.f32.mrf.mxu0
  %v1621 = vadd.f32 0.0, %v1620
  %v1622 = vpop.f32.mrf.mxu0
  %1623 = vdwg.mxu0
  %1624 = vrot.lane.b32.xlu0 %v1151, 112
  %v1625 = vpop.permute.xlu0 %1624
  %v1627 = vsel %vm273, %v1516, 0
  %v1630 = vsel %vm533, %v1625, 0
  %1632 = vmatpush.bf16.msra.mxu0 0
  %1633 = vmatpush.bf16.msra.mxu0 0
  %1634 = vmatpush.bf16.msra.mxu0 0
  %1635 = vmatpush.bf16.msra.mxu0 0
  %1636 = vmatpush.bf16.msra.mxu0 0
  %1637 = vmatpush.bf16.msra.mxu0 0
  %1638 = vmatpush.bf16.msra.mxu0 0
  %1639 = vmatpush.bf16.msra.mxu0 %v1630
  %1640 = vmatmul.bf16.gmra.mxu0 %v1627
  %v1641 = vpop.f32.mrf.mxu0
  %v1642 = vadd.f32 0.0, %v1641
  %v1643 = vpop.f32.mrf.mxu0
  %1644 = vdwg.mxu0
  %1645 = vrot.lane.b32.xlu0 %v1175, 112
  %v1646 = vpop.permute.xlu0 %1645
  %v1648 = vsel %vm273, %v1517, 0
  %v1651 = vsel %vm533, %v1646, 0
  %1653 = vmatpush.bf16.msra.mxu0 0
  %1654 = vmatpush.bf16.msra.mxu0 0
  %1655 = vmatpush.bf16.msra.mxu0 0
  %1656 = vmatpush.bf16.msra.mxu0 0
  %1657 = vmatpush.bf16.msra.mxu0 0
  %1658 = vmatpush.bf16.msra.mxu0 0
  %1659 = vmatpush.bf16.msra.mxu0 0
  %1660 = vmatpush.bf16.msra.mxu0 %v1651
  %1661 = vmatmul.bf16.gmra.mxu0 %v1648
  %v1662 = vpop.f32.mrf.mxu0
  %v1663 = vadd.f32 0.0, %v1662
  %v1664 = vpop.f32.mrf.mxu0
  %1665 = vdwg.mxu0
  %1666 = vrot.lane.b32.xlu0 %v1199, 112
  %v1667 = vpop.permute.xlu0 %1666
  %v1669 = vsel %vm273, %v1518, 0
  %v1672 = vsel %vm533, %v1667, 0
  %1674 = vmatpush.bf16.msra.mxu0 0
  %1675 = vmatpush.bf16.msra.mxu0 0
  %1676 = vmatpush.bf16.msra.mxu0 0
  %1677 = vmatpush.bf16.msra.mxu0 0
  %1678 = vmatpush.bf16.msra.mxu0 0
  %1679 = vmatpush.bf16.msra.mxu0 0
  %1680 = vmatpush.bf16.msra.mxu0 0
  %1681 = vmatpush.bf16.msra.mxu0 %v1672
  %1682 = vmatmul.bf16.gmra.mxu0 %v1669
  %v1683 = vpop.f32.mrf.mxu0
  %v1684 = vadd.f32 0.0, %v1683
  %v1685 = vpop.f32.mrf.mxu0
  %1686 = vdwg.mxu0
  %s1687 = scalar_lea.vmem %s1, 192
  %v1688 = vld [vmem:[%s1687] sm:$0xff]
  %v1689 = vld [vmem:[%s1687 + $0x8] sm:$0xff]
  %v1690 = vld [vmem:[%s1687 + $0x10] sm:$0xff]
  %v1691 = vld [vmem:[%s1687 + $0x18] sm:$0xff]
  %v1692 = vld [vmem:[%s1687 + $0x20] sm:$0xff]
  %v1693 = vld [vmem:[%s1687 + $0x28] sm:$0xff]
  %v1694 = vld [vmem:[%s1687 + $0x30] sm:$0xff]
  %v1695 = vld [vmem:[%s1687 + $0x38] sm:$0xff]
  %1696 = vrot.lane.b32.xlu0 %v694, 104
  %v1697 = vpop.permute.xlu0 %1696
  %1698 = vrot.lane.b32.xlu0 %v699, 104
  %v1699 = vpop.permute.xlu0 %1698
  %v1701 = vsel %vm273, %v1697, 0
  %v1704 = vsel %vm273, %v1699, 0
  %1706 = vmatpush.bf16.xpose.msra.mxu0 0
  %1707 = vmatpush.bf16.xpose.msra.mxu0 0
  %1708 = vmatpush.bf16.xpose.msra.mxu0 0
  %1709 = vmatpush.bf16.xpose.msra.mxu0 0
  %1710 = vmatpush.bf16.xpose.msra.mxu0 0
  %1711 = vmatpush.bf16.xpose.msra.mxu0 0
  %1712 = vmatpush.bf16.xpose.msra.mxu0 0
  %1713 = vmatpush.bf16.xpose.msra.mxu0 %v1704
  %1714 = vmatmul.bf16.gmra.mxu0 %v1701
  %v1715 = vpop.f32.mrf.mxu0
  %v1716 = vadd.f32 %v1688, %v1715
  %v1717 = vpop.f32.mrf.mxu0
  %1718 = vdwg.mxu0
  %1719 = vrot.lane.b32.xlu0 %v723, 104
  %v1720 = vpop.permute.xlu0 %1719
  %1721 = vrot.lane.b32.xlu0 %v728, 104
  %v1722 = vpop.permute.xlu0 %1721
  %v1724 = vsel %vm273, %v1720, 0
  %v1727 = vsel %vm273, %v1722, 0
  %1729 = vmatpush.bf16.xpose.msra.mxu0 0
  %1730 = vmatpush.bf16.xpose.msra.mxu0 0
  %1731 = vmatpush.bf16.xpose.msra.mxu0 0
  %1732 = vmatpush.bf16.xpose.msra.mxu0 0
  %1733 = vmatpush.bf16.xpose.msra.mxu0 0
  %1734 = vmatpush.bf16.xpose.msra.mxu0 0
  %1735 = vmatpush.bf16.xpose.msra.mxu0 0
  %1736 = vmatpush.bf16.xpose.msra.mxu0 %v1727
  %1737 = vmatmul.bf16.gmra.mxu0 %v1724
  %v1738 = vpop.f32.mrf.mxu0
  %v1739 = vadd.f32 %v1689, %v1738
  %v1740 = vpop.f32.mrf.mxu0
  %1741 = vdwg.mxu0
  %1742 = vrot.lane.b32.xlu0 %v752, 104
  %v1743 = vpop.permute.xlu0 %1742
  %1744 = vrot.lane.b32.xlu0 %v757, 104
  %v1745 = vpop.permute.xlu0 %1744
  %v1747 = vsel %vm273, %v1743, 0
  %v1750 = vsel %vm273, %v1745, 0
  %1752 = vmatpush.bf16.xpose.msra.mxu0 0
  %1753 = vmatpush.bf16.xpose.msra.mxu0 0
  %1754 = vmatpush.bf16.xpose.msra.mxu0 0
  %1755 = vmatpush.bf16.xpose.msra.mxu0 0
  %1756 = vmatpush.bf16.xpose.msra.mxu0 0
  %1757 = vmatpush.bf16.xpose.msra.mxu0 0
  %1758 = vmatpush.bf16.xpose.msra.mxu0 0
  %1759 = vmatpush.bf16.xpose.msra.mxu0 %v1750
  %1760 = vmatmul.bf16.gmra.mxu0 %v1747
  %v1761 = vpop.f32.mrf.mxu0
  %v1762 = vadd.f32 %v1690, %v1761
  %v1763 = vpop.f32.mrf.mxu0
  %1764 = vdwg.mxu0
  %1765 = vrot.lane.b32.xlu0 %v781, 104
  %v1766 = vpop.permute.xlu0 %1765
  %1767 = vrot.lane.b32.xlu0 %v786, 104
  %v1768 = vpop.permute.xlu0 %1767
  %v1770 = vsel %vm273, %v1766, 0
  %v1773 = vsel %vm273, %v1768, 0
  %1775 = vmatpush.bf16.xpose.msra.mxu0 0
  %1776 = vmatpush.bf16.xpose.msra.mxu0 0
  %1777 = vmatpush.bf16.xpose.msra.mxu0 0
  %1778 = vmatpush.bf16.xpose.msra.mxu0 0
  %1779 = vmatpush.bf16.xpose.msra.mxu0 0
  %1780 = vmatpush.bf16.xpose.msra.mxu0 0
  %1781 = vmatpush.bf16.xpose.msra.mxu0 0
  %1782 = vmatpush.bf16.xpose.msra.mxu0 %v1773
  %1783 = vmatmul.bf16.gmra.mxu0 %v1770
  %v1784 = vpop.f32.mrf.mxu0
  %v1785 = vadd.f32 %v1691, %v1784
  %v1786 = vpop.f32.mrf.mxu0
  %1787 = vdwg.mxu0
  %1788 = vrot.lane.b32.xlu0 %v810, 104
  %v1789 = vpop.permute.xlu0 %1788
  %1790 = vrot.lane.b32.xlu0 %v815, 104
  %v1791 = vpop.permute.xlu0 %1790
  %v1793 = vsel %vm273, %v1789, 0
  %v1796 = vsel %vm273, %v1791, 0
  %1798 = vmatpush.bf16.xpose.msra.mxu0 0
  %1799 = vmatpush.bf16.xpose.msra.mxu0 0
  %1800 = vmatpush.bf16.xpose.msra.mxu0 0
  %1801 = vmatpush.bf16.xpose.msra.mxu0 0
  %1802 = vmatpush.bf16.xpose.msra.mxu0 0
  %1803 = vmatpush.bf16.xpose.msra.mxu0 0
  %1804 = vmatpush.bf16.xpose.msra.mxu0 0
  %1805 = vmatpush.bf16.xpose.msra.mxu0 %v1796
  %1806 = vmatmul.bf16.gmra.mxu0 %v1793
  %v1807 = vpop.f32.mrf.mxu0
  %v1808 = vadd.f32 %v1692, %v1807
  %v1809 = vpop.f32.mrf.mxu0
  %1810 = vdwg.mxu0
  %1811 = vrot.lane.b32.xlu0 %v839, 104
  %v1812 = vpop.permute.xlu0 %1811
  %1813 = vrot.lane.b32.xlu0 %v844, 104
  %v1814 = vpop.permute.xlu0 %1813
  %v1816 = vsel %vm273, %v1812, 0
  %v1819 = vsel %vm273, %v1814, 0
  %1821 = vmatpush.bf16.xpose.msra.mxu0 0
  %1822 = vmatpush.bf16.xpose.msra.mxu0 0
  %1823 = vmatpush.bf16.xpose.msra.mxu0 0
  %1824 = vmatpush.bf16.xpose.msra.mxu0 0
  %1825 = vmatpush.bf16.xpose.msra.mxu0 0
  %1826 = vmatpush.bf16.xpose.msra.mxu0 0
  %1827 = vmatpush.bf16.xpose.msra.mxu0 0
  %1828 = vmatpush.bf16.xpose.msra.mxu0 %v1819
  %1829 = vmatmul.bf16.gmra.mxu0 %v1816
  %v1830 = vpop.f32.mrf.mxu0
  %v1831 = vadd.f32 %v1693, %v1830
  %v1832 = vpop.f32.mrf.mxu0
  %1833 = vdwg.mxu0
  %1834 = vrot.lane.b32.xlu0 %v868, 104
  %v1835 = vpop.permute.xlu0 %1834
  %1836 = vrot.lane.b32.xlu0 %v873, 104
  %v1837 = vpop.permute.xlu0 %1836
  %v1839 = vsel %vm273, %v1835, 0
  %v1842 = vsel %vm273, %v1837, 0
  %1844 = vmatpush.bf16.xpose.msra.mxu0 0
  %1845 = vmatpush.bf16.xpose.msra.mxu0 0
  %1846 = vmatpush.bf16.xpose.msra.mxu0 0
  %1847 = vmatpush.bf16.xpose.msra.mxu0 0
  %1848 = vmatpush.bf16.xpose.msra.mxu0 0
  %1849 = vmatpush.bf16.xpose.msra.mxu0 0
  %1850 = vmatpush.bf16.xpose.msra.mxu0 0
  %1851 = vmatpush.bf16.xpose.msra.mxu0 %v1842
  %1852 = vmatmul.bf16.gmra.mxu0 %v1839
  %v1853 = vpop.f32.mrf.mxu0
  %v1854 = vadd.f32 %v1694, %v1853
  %v1855 = vpop.f32.mrf.mxu0
  %1856 = vdwg.mxu0
  %1857 = vrot.lane.b32.xlu0 %v897, 104
  %v1858 = vpop.permute.xlu0 %1857
  %1859 = vrot.lane.b32.xlu0 %v902, 104
  %v1860 = vpop.permute.xlu0 %1859
  %v1862 = vsel %vm273, %v1858, 0
  %v1865 = vsel %vm273, %v1860, 0
  %1867 = vmatpush.bf16.xpose.msra.mxu0 0
  %1868 = vmatpush.bf16.xpose.msra.mxu0 0
  %1869 = vmatpush.bf16.xpose.msra.mxu0 0
  %1870 = vmatpush.bf16.xpose.msra.mxu0 0
  %1871 = vmatpush.bf16.xpose.msra.mxu0 0
  %1872 = vmatpush.bf16.xpose.msra.mxu0 0
  %1873 = vmatpush.bf16.xpose.msra.mxu0 0
  %1874 = vmatpush.bf16.xpose.msra.mxu0 %v1865
  %1875 = vmatmul.bf16.gmra.mxu0 %v1862
  %v1876 = vpop.f32.mrf.mxu0
  %v1877 = vadd.f32 %v1695, %v1876
  %v1878 = vpop.f32.mrf.mxu0
  %1879 = vdwg.mxu0
  %s1880 = scalar_lea.vmem %s13, 192
  %1881 = vst.msk [vmem:[%s1880] sm:$0xff] %vm273, %v1716
  %1882 = vst.msk [vmem:[%s1880 + $0x8] sm:$0xff] %vm273, %v1739
  %1883 = vst.msk [vmem:[%s1880 + $0x10] sm:$0xff] %vm273, %v1762
  %1884 = vst.msk [vmem:[%s1880 + $0x18] sm:$0xff] %vm273, %v1785
  %1885 = vst.msk [vmem:[%s1880 + $0x20] sm:$0xff] %vm273, %v1808
  %1886 = vst.msk [vmem:[%s1880 + $0x28] sm:$0xff] %vm273, %v1831
  %1887 = vst.msk [vmem:[%s1880 + $0x30] sm:$0xff] %vm273, %v1854
  %1888 = vst.msk [vmem:[%s1880 + $0x38] sm:$0xff] %vm273, %v1877
  %v1889 = vsel %vm273, %v1716, -inf
  %1890 = vmax.xlane.f32.xlu0 %v1889
  %v1891 = vpop.xlane.xlu0 %1890
  %v1892 = vsel %vm273, %v1739, -inf
  %1893 = vmax.xlane.f32.xlu0 %v1892
  %v1894 = vpop.xlane.xlu0 %1893
  %v1895 = vsel %vm273, %v1762, -inf
  %1896 = vmax.xlane.f32.xlu0 %v1895
  %v1897 = vpop.xlane.xlu0 %1896
  %v1898 = vsel %vm273, %v1785, -inf
  %1899 = vmax.xlane.f32.xlu0 %v1898
  %v1900 = vpop.xlane.xlu0 %1899
  %v1901 = vsel %vm273, %v1808, -inf
  %1902 = vmax.xlane.f32.xlu0 %v1901
  %v1903 = vpop.xlane.xlu0 %1902
  %v1904 = vsel %vm273, %v1831, -inf
  %1905 = vmax.xlane.f32.xlu0 %v1904
  %v1906 = vpop.xlane.xlu0 %1905
  %v1907 = vsel %vm273, %v1854, -inf
  %1908 = vmax.xlane.f32.xlu0 %v1907
  %v1909 = vpop.xlane.xlu0 %1908
  %v1910 = vsel %vm273, %v1877, -inf
  %1911 = vmax.xlane.f32.xlu0 %v1910
  %v1912 = vpop.xlane.xlu0 %1911
  %v1913 = vsub.f32 %v1716, %v1891
  %v1914 = vsub.f32 %v1739, %v1894
  %v1915 = vsub.f32 %v1762, %v1897
  %v1916 = vsub.f32 %v1785, %v1900
  %v1917 = vsub.f32 %v1808, %v1903
  %v1918 = vsub.f32 %v1831, %v1906
  %v1919 = vsub.f32 %v1854, %v1909
  %v1920 = vsub.f32 %v1877, %v1912
  %v1921 = vmul.f32 %v1913, 1.442695
  %v1922 = vpow.pop %v1921
  %v1923 = vmul.f32 %v1914, 1.442695
  %v1924 = vpow.pop %v1923
  %v1925 = vmul.f32 %v1915, 1.442695
  %v1926 = vpow.pop %v1925
  %v1927 = vmul.f32 %v1916, 1.442695
  %v1928 = vpow.pop %v1927
  %v1929 = vmul.f32 %v1917, 1.442695
  %v1930 = vpow.pop %v1929
  %v1931 = vmul.f32 %v1918, 1.442695
  %v1932 = vpow.pop %v1931
  %v1933 = vmul.f32 %v1919, 1.442695
  %v1934 = vpow.pop %v1933
  %v1935 = vmul.f32 %v1920, 1.442695
  %v1936 = vpow.pop %v1935
  %v1937 = vsel %vm273, %v1922, 0.0
  %1938 = vadd.xlane.f32.xlu0 %v1937
  %v1939 = vpop.xlane.xlu0 %1938
  %v1940 = vsel %vm273, %v1924, 0.0
  %1941 = vadd.xlane.f32.xlu0 %v1940
  %v1942 = vpop.xlane.xlu0 %1941
  %v1943 = vsel %vm273, %v1926, 0.0
  %1944 = vadd.xlane.f32.xlu0 %v1943
  %v1945 = vpop.xlane.xlu0 %1944
  %v1946 = vsel %vm273, %v1928, 0.0
  %1947 = vadd.xlane.f32.xlu0 %v1946
  %v1948 = vpop.xlane.xlu0 %1947
  %v1949 = vsel %vm273, %v1930, 0.0
  %1950 = vadd.xlane.f32.xlu0 %v1949
  %v1951 = vpop.xlane.xlu0 %1950
  %v1952 = vsel %vm273, %v1932, 0.0
  %1953 = vadd.xlane.f32.xlu0 %v1952
  %v1954 = vpop.xlane.xlu0 %1953
  %v1955 = vsel %vm273, %v1934, 0.0
  %1956 = vadd.xlane.f32.xlu0 %v1955
  %v1957 = vpop.xlane.xlu0 %1956
  %v1958 = vsel %vm273, %v1936, 0.0
  %1959 = vadd.xlane.f32.xlu0 %v1958
  %v1960 = vpop.xlane.xlu0 %1959
  %v1961 = vrcp.pop %v1939
  %v1962 = vrcp.pop %v1942
  %v1963 = vrcp.pop %v1945
  %v1964 = vrcp.pop %v1948
  %v1965 = vrcp.pop %v1951
  %v1966 = vrcp.pop %v1954
  %v1967 = vrcp.pop %v1957
  %v1968 = vrcp.pop %v1960
  %v1969 = vmul.f32 %v1922, %v1961
  %v1970 = vmul.f32 %v1924, %v1962
  %v1971 = vmul.f32 %v1926, %v1963
  %v1972 = vmul.f32 %v1928, %v1964
  %v1973 = vmul.f32 %v1930, %v1965
  %v1974 = vmul.f32 %v1932, %v1966
  %v1975 = vmul.f32 %v1934, %v1967
  %v1976 = vmul.f32 %v1936, %v1968
  %v1977 = vpack.c.bf16 %v1969, %v1969
  %v1978 = vpack.c.bf16 %v1970, %v1970
  %v1979 = vpack.c.bf16 %v1971, %v1971
  %v1980 = vpack.c.bf16 %v1972, %v1972
  %v1981 = vpack.c.bf16 %v1973, %v1973
  %v1982 = vpack.c.bf16 %v1974, %v1974
  %v1983 = vpack.c.bf16 %v1975, %v1975
  %v1984 = vpack.c.bf16 %v1976, %v1976
  %1985 = vrot.lane.b32.xlu0 %v1031, 104
  %v1986 = vpop.permute.xlu0 %1985
  %v1988 = vsel %vm273, %v1977, 0
  %v1991 = vsel %vm533, %v1986, 0
  %1993 = vmatpush.bf16.msra.mxu0 0
  %1994 = vmatpush.bf16.msra.mxu0 0
  %1995 = vmatpush.bf16.msra.mxu0 0
  %1996 = vmatpush.bf16.msra.mxu0 0
  %1997 = vmatpush.bf16.msra.mxu0 0
  %1998 = vmatpush.bf16.msra.mxu0 0
  %1999 = vmatpush.bf16.msra.mxu0 0
  %2000 = vmatpush.bf16.msra.mxu0 %v1991
  %2001 = vmatmul.bf16.gmra.mxu0 %v1988
  %v2002 = vpop.f32.mrf.mxu0
  %v2003 = vadd.f32 0.0, %v2002
  %v2004 = vpop.f32.mrf.mxu0
  %2005 = vdwg.mxu0
  %2006 = vrot.lane.b32.xlu0 %v1055, 104
  %v2007 = vpop.permute.xlu0 %2006
  %v2009 = vsel %vm273, %v1978, 0
  %v2012 = vsel %vm533, %v2007, 0
  %2014 = vmatpush.bf16.msra.mxu0 0
  %2015 = vmatpush.bf16.msra.mxu0 0
  %2016 = vmatpush.bf16.msra.mxu0 0
  %2017 = vmatpush.bf16.msra.mxu0 0
  %2018 = vmatpush.bf16.msra.mxu0 0
  %2019 = vmatpush.bf16.msra.mxu0 0
  %2020 = vmatpush.bf16.msra.mxu0 0
  %2021 = vmatpush.bf16.msra.mxu0 %v2012
  %2022 = vmatmul.bf16.gmra.mxu0 %v2009
  %v2023 = vpop.f32.mrf.mxu0
  %v2024 = vadd.f32 0.0, %v2023
  %v2025 = vpop.f32.mrf.mxu0
  %2026 = vdwg.mxu0
  %2027 = vrot.lane.b32.xlu0 %v1079, 104
  %v2028 = vpop.permute.xlu0 %2027
  %v2030 = vsel %vm273, %v1979, 0
  %v2033 = vsel %vm533, %v2028, 0
  %2035 = vmatpush.bf16.msra.mxu0 0
  %2036 = vmatpush.bf16.msra.mxu0 0
  %2037 = vmatpush.bf16.msra.mxu0 0
  %2038 = vmatpush.bf16.msra.mxu0 0
  %2039 = vmatpush.bf16.msra.mxu0 0
  %2040 = vmatpush.bf16.msra.mxu0 0
  %2041 = vmatpush.bf16.msra.mxu0 0
  %2042 = vmatpush.bf16.msra.mxu0 %v2033
  %2043 = vmatmul.bf16.gmra.mxu0 %v2030
  %v2044 = vpop.f32.mrf.mxu0
  %v2045 = vadd.f32 0.0, %v2044
  %v2046 = vpop.f32.mrf.mxu0
  %2047 = vdwg.mxu0
  %2048 = vrot.lane.b32.xlu0 %v1103, 104
  %v2049 = vpop.permute.xlu0 %2048
  %v2051 = vsel %vm273, %v1980, 0
  %v2054 = vsel %vm533, %v2049, 0
  %2056 = vmatpush.bf16.msra.mxu0 0
  %2057 = vmatpush.bf16.msra.mxu0 0
  %2058 = vmatpush.bf16.msra.mxu0 0
  %2059 = vmatpush.bf16.msra.mxu0 0
  %2060 = vmatpush.bf16.msra.mxu0 0
  %2061 = vmatpush.bf16.msra.mxu0 0
  %2062 = vmatpush.bf16.msra.mxu0 0
  %2063 = vmatpush.bf16.msra.mxu0 %v2054
  %2064 = vmatmul.bf16.gmra.mxu0 %v2051
  %v2065 = vpop.f32.mrf.mxu0
  %v2066 = vadd.f32 0.0, %v2065
  %v2067 = vpop.f32.mrf.mxu0
  %2068 = vdwg.mxu0
  %2069 = vrot.lane.b32.xlu0 %v1127, 104
  %v2070 = vpop.permute.xlu0 %2069
  %v2072 = vsel %vm273, %v1981, 0
  %v2075 = vsel %vm533, %v2070, 0
  %2077 = vmatpush.bf16.msra.mxu0 0
  %2078 = vmatpush.bf16.msra.mxu0 0
  %2079 = vmatpush.bf16.msra.mxu0 0
  %2080 = vmatpush.bf16.msra.mxu0 0
  %2081 = vmatpush.bf16.msra.mxu0 0
  %2082 = vmatpush.bf16.msra.mxu0 0
  %2083 = vmatpush.bf16.msra.mxu0 0
  %2084 = vmatpush.bf16.msra.mxu0 %v2075
  %2085 = vmatmul.bf16.gmra.mxu0 %v2072
  %v2086 = vpop.f32.mrf.mxu0
  %v2087 = vadd.f32 0.0, %v2086
  %v2088 = vpop.f32.mrf.mxu0
  %2089 = vdwg.mxu0
  %2090 = vrot.lane.b32.xlu0 %v1151, 104
  %v2091 = vpop.permute.xlu0 %2090
  %v2093 = vsel %vm273, %v1982, 0
  %v2096 = vsel %vm533, %v2091, 0
  %2098 = vmatpush.bf16.msra.mxu0 0
  %2099 = vmatpush.bf16.msra.mxu0 0
  %2100 = vmatpush.bf16.msra.mxu0 0
  %2101 = vmatpush.bf16.msra.mxu0 0
  %2102 = vmatpush.bf16.msra.mxu0 0
  %2103 = vmatpush.bf16.msra.mxu0 0
  %2104 = vmatpush.bf16.msra.mxu0 0
  %2105 = vmatpush.bf16.msra.mxu0 %v2096
  %2106 = vmatmul.bf16.gmra.mxu0 %v2093
  %v2107 = vpop.f32.mrf.mxu0
  %v2108 = vadd.f32 0.0, %v2107
  %v2109 = vpop.f32.mrf.mxu0
  %2110 = vdwg.mxu0
  %2111 = vrot.lane.b32.xlu0 %v1175, 104
  %v2112 = vpop.permute.xlu0 %2111
  %v2114 = vsel %vm273, %v1983, 0
  %v2117 = vsel %vm533, %v2112, 0
  %2119 = vmatpush.bf16.msra.mxu0 0
  %2120 = vmatpush.bf16.msra.mxu0 0
  %2121 = vmatpush.bf16.msra.mxu0 0
  %2122 = vmatpush.bf16.msra.mxu0 0
  %2123 = vmatpush.bf16.msra.mxu0 0
  %2124 = vmatpush.bf16.msra.mxu0 0
  %2125 = vmatpush.bf16.msra.mxu0 0
  %2126 = vmatpush.bf16.msra.mxu0 %v2117
  %2127 = vmatmul.bf16.gmra.mxu0 %v2114
  %v2128 = vpop.f32.mrf.mxu0
  %v2129 = vadd.f32 0.0, %v2128
  %v2130 = vpop.f32.mrf.mxu0
  %2131 = vdwg.mxu0
  %2132 = vrot.lane.b32.xlu0 %v1199, 104
  %v2133 = vpop.permute.xlu0 %2132
  %v2135 = vsel %vm273, %v1984, 0
  %v2138 = vsel %vm533, %v2133, 0
  %2140 = vmatpush.bf16.msra.mxu0 0
  %2141 = vmatpush.bf16.msra.mxu0 0
  %2142 = vmatpush.bf16.msra.mxu0 0
  %2143 = vmatpush.bf16.msra.mxu0 0
  %2144 = vmatpush.bf16.msra.mxu0 0
  %2145 = vmatpush.bf16.msra.mxu0 0
  %2146 = vmatpush.bf16.msra.mxu0 0
  %2147 = vmatpush.bf16.msra.mxu0 %v2138
  %2148 = vmatmul.bf16.gmra.mxu0 %v2135
  %v2149 = vpop.f32.mrf.mxu0
  %v2150 = vadd.f32 0.0, %v2149
  %v2151 = vpop.f32.mrf.mxu0
  %2152 = vdwg.mxu0
  %2161 = vrot.lane.b32.xlu0 %v1050, 8
  %v2162 = vpop.permute.xlu0 %2161
  %2163 = vrot.lane.b32.xlu0 %v1074, 8
  %v2164 = vpop.permute.xlu0 %2163
  %2165 = vrot.lane.b32.xlu0 %v1098, 8
  %v2166 = vpop.permute.xlu0 %2165
  %2167 = vrot.lane.b32.xlu0 %v1122, 8
  %v2168 = vpop.permute.xlu0 %2167
  %2169 = vrot.lane.b32.xlu0 %v1146, 8
  %v2170 = vpop.permute.xlu0 %2169
  %2171 = vrot.lane.b32.xlu0 %v1170, 8
  %v2172 = vpop.permute.xlu0 %2171
  %2173 = vrot.lane.b32.xlu0 %v1194, 8
  %v2174 = vpop.permute.xlu0 %2173
  %2175 = vrot.lane.b32.xlu0 %v1218, 8
  %v2176 = vpop.permute.xlu0 %2175
  %2193 = vrot.lane.b32.xlu0 %v1537, 16
  %v2194 = vpop.permute.xlu0 %2193
  %2195 = vrot.lane.b32.xlu0 %v1558, 16
  %v2196 = vpop.permute.xlu0 %2195
  %2197 = vrot.lane.b32.xlu0 %v1579, 16
  %v2198 = vpop.permute.xlu0 %2197
  %2199 = vrot.lane.b32.xlu0 %v1600, 16
  %v2200 = vpop.permute.xlu0 %2199
  %2201 = vrot.lane.b32.xlu0 %v1621, 16
  %v2202 = vpop.permute.xlu0 %2201
  %2203 = vrot.lane.b32.xlu0 %v1642, 16
  %v2204 = vpop.permute.xlu0 %2203
  %2205 = vrot.lane.b32.xlu0 %v1663, 16
  %v2206 = vpop.permute.xlu0 %2205
  %2207 = vrot.lane.b32.xlu0 %v1684, 16
  %v2208 = vpop.permute.xlu0 %2207
  %2225 = vrot.lane.b32.xlu0 %v2003, 24
  %v2226 = vpop.permute.xlu0 %2225
  %2227 = vrot.lane.b32.xlu0 %v2024, 24
  %v2228 = vpop.permute.xlu0 %2227
  %2229 = vrot.lane.b32.xlu0 %v2045, 24
  %v2230 = vpop.permute.xlu0 %2229
  %2231 = vrot.lane.b32.xlu0 %v2066, 24
  %v2232 = vpop.permute.xlu0 %2231
  %2233 = vrot.lane.b32.xlu0 %v2087, 24
  %v2234 = vpop.permute.xlu0 %2233
  %2235 = vrot.lane.b32.xlu0 %v2108, 24
  %v2236 = vpop.permute.xlu0 %2235
  %2237 = vrot.lane.b32.xlu0 %v2129, 24
  %v2238 = vpop.permute.xlu0 %2237
  %2239 = vrot.lane.b32.xlu0 %v2150, 24
  %v2240 = vpop.permute.xlu0 %2239
  %v2249 = vsel %vm273, %v547, %v2162
  %v2250 = vsel %vm273, %v566, %v2164
  %v2251 = vsel %vm273, %v585, %v2166
  %v2252 = vsel %vm273, %v604, %v2168
  %v2253 = vsel %vm273, %v623, %v2170
  %v2254 = vsel %vm273, %v642, %v2172
  %v2255 = vsel %vm273, %v661, %v2174
  %v2256 = vsel %vm273, %v680, %v2176
  %vm2257 = vcmask 130048
  %v2258 = vsel %vm2257, %v2249, %v2194
  %v2259 = vsel %vm2257, %v2250, %v2196
  %v2260 = vsel %vm2257, %v2251, %v2198
  %v2261 = vsel %vm2257, %v2252, %v2200
  %v2262 = vsel %vm2257, %v2253, %v2202
  %v2263 = vsel %vm2257, %v2254, %v2204
  %v2264 = vsel %vm2257, %v2255, %v2206
  %v2265 = vsel %vm2257, %v2256, %v2208
  %vm2266 = vcmask 195584
  %v2267 = vsel %vm2266, %v2258, %v2226
  %v2268 = vsel %vm2266, %v2259, %v2228
  %v2269 = vsel %vm2266, %v2260, %v2230
  %v2270 = vsel %vm2266, %v2261, %v2232
  %v2271 = vsel %vm2266, %v2262, %v2234
  %v2272 = vsel %vm2266, %v2263, %v2236
  %v2273 = vsel %vm2266, %v2264, %v2238
  %v2274 = vsel %vm2266, %v2265, %v2240
  %v2275 = vpack.c.bf16 %v2268, %v2267
  %v2276 = vpack.c.bf16 %v2270, %v2269
  %v2277 = vpack.c.bf16 %v2272, %v2271
  %v2278 = vpack.c.bf16 %v2274, %v2273
  %v2279 = vld [vmem:[%s10] sm:$0xf]
  %v2280 = vld [vmem:[%s10 + $0x4] sm:$0xf]
  %v2281 = vld [vmem:[%s10 + $0x8] sm:$0xf]
  %v2282 = vld [vmem:[%s10 + $0xc] sm:$0xf]
  %v2283 = vld [vmem:[%s11] sm:$0x1]
  %v2285 = vperm.slane %v2283, 0
  %v2291 = vunpack.c.l.b16 %v2279
  %v2292 = vunpack.c.l.b16 %v2280
  %v2293 = vunpack.c.l.b16 %v2281
  %v2294 = vunpack.c.l.b16 %v2282
  %v2295 = vpack.c.b16 %v2292, %v2291
  %v2296 = vpack.c.b16 %v2294, %v2293
  %v2300 = vsel %vm101, %v2275, 0
  %v2303 = vsel %vm101, %v2276, 0
  %v2306 = vsel %vm101, %v2277, 0
  %v2309 = vsel %vm101, %v2278, 0
  %2311 = vmatpush.bf16.msra.mxu0 0
  %2312 = vmatpush.bf16.msra.mxu0 0
  %2313 = vmatpush.bf16.msra.mxu0 0
  %2314 = vmatpush.bf16.msra.mxu0 0
  %2315 = vmatpush.bf16.msra.mxu0 0
  %2316 = vmatpush.bf16.msra.mxu0 0
  %2317 = vmatpush.bf16.msra.mxu0 %v2296
  %2318 = vmatpush.bf16.msra.mxu0 %v2295
  %2319 = vmatmul.bf16.gmra.mxu0 %v2300
  %v2320 = vpop.f32.mrf.mxu0
  %v2321 = vadd.f32 %v2285, %v2320
  %v2322 = vpop.f32.mrf.mxu0
  %v2323 = vadd.f32 %v2285, %v2322
  %2324 = vmatmul.bf16.gmra.mxu0 %v2303
  %v2325 = vpop.f32.mrf.mxu0
  %v2326 = vadd.f32 %v2285, %v2325
  %v2327 = vpop.f32.mrf.mxu0
  %v2328 = vadd.f32 %v2285, %v2327
  %2329 = vmatmul.bf16.gmra.mxu0 %v2306
  %v2330 = vpop.f32.mrf.mxu0
  %v2331 = vadd.f32 %v2285, %v2330
  %v2332 = vpop.f32.mrf.mxu0
  %v2333 = vadd.f32 %v2285, %v2332
  %2334 = vmatmul.bf16.gmra.mxu0 %v2309
  %v2335 = vpop.f32.mrf.mxu0
  %v2336 = vadd.f32 %v2285, %v2335
  %v2337 = vpop.f32.mrf.mxu0
  %v2338 = vadd.f32 %v2285, %v2337
  %2339 = vdwg.mxu0
  %v2340 = vadd.f32 %v69, %v2321
  %v2341 = vadd.f32 %v70, %v2323
  %v2342 = vadd.f32 %v71, %v2326
  %v2343 = vadd.f32 %v72, %v2328
  %v2344 = vadd.f32 %v73, %v2331
  %v2345 = vadd.f32 %v74, %v2333
  %v2346 = vadd.f32 %v75, %v2336
  %v2347 = vadd.f32 %v76, %v2338
  %2348 = vst.msk [vmem:[%s12] sm:$0xff] %vm101, %v2340
  %2349 = vst.msk [vmem:[%s12 + $0x8] sm:$0xff] %vm101, %v2341
  %2350 = vst.msk [vmem:[%s12 + $0x10] sm:$0xff] %vm101, %v2342
  %2351 = vst.msk [vmem:[%s12 + $0x18] sm:$0xff] %vm101, %v2343
  %2352 = vst.msk [vmem:[%s12 + $0x20] sm:$0xff] %vm101, %v2344
  %2353 = vst.msk [vmem:[%s12 + $0x28] sm:$0xff] %vm101, %v2345
  %2354 = vst.msk [vmem:[%s12 + $0x30] sm:$0xff] %vm101, %v2346
  %2355 = vst.msk [vmem:[%s12 + $0x38] sm:$0xff] %vm101, %v2347
  %v2356 = vsel %vm101, %v2340, 0.0
  %v2357 = vsel %vm101, %v2341, 0.0
  %v2358 = vadd.f32 %v2356, %v2357
  %v2359 = vsel %vm101, %v2342, 0.0
  %v2360 = vadd.f32 %v2358, %v2359
  %v2361 = vsel %vm101, %v2343, 0.0
  %v2362 = vadd.f32 %v2360, %v2361
  %v2363 = vsel %vm101, %v2344, 0.0
  %v2364 = vadd.f32 %v2362, %v2363
  %v2365 = vsel %vm101, %v2345, 0.0
  %v2366 = vadd.f32 %v2364, %v2365
  %v2367 = vsel %vm101, %v2346, 0.0
  %v2368 = vadd.f32 %v2366, %v2367
  %v2369 = vsel %vm101, %v2347, 0.0
  %v2370 = vadd.f32 %v2368, %v2369
  %v2371 = vrot.slane %v2370, 4
  %v2372 = vadd.f32 %v2370, %v2371
  %v2373 = vrot.slane %v2372, 2
  %v2374 = vadd.f32 %v2372, %v2373
  %v2375 = vrot.slane %v2374, 1
  %v2376 = vadd.f32 %v2374, %v2375
  %v2377 = vmul.f32 %v2340, %v2340
  %v2378 = vmul.f32 %v2341, %v2341
  %v2379 = vmul.f32 %v2342, %v2342
  %v2380 = vmul.f32 %v2343, %v2343
  %v2381 = vmul.f32 %v2344, %v2344
  %v2382 = vmul.f32 %v2345, %v2345
  %v2383 = vmul.f32 %v2346, %v2346
  %v2384 = vmul.f32 %v2347, %v2347
  %v2385 = vsel %vm101, %v2377, 0.0
  %v2386 = vsel %vm101, %v2378, 0.0
  %v2387 = vadd.f32 %v2385, %v2386
  %v2388 = vsel %vm101, %v2379, 0.0
  %v2389 = vadd.f32 %v2387, %v2388
  %v2390 = vsel %vm101, %v2380, 0.0
  %v2391 = vadd.f32 %v2389, %v2390
  %v2392 = vsel %vm101, %v2381, 0.0
  %v2393 = vadd.f32 %v2391, %v2392
  %v2394 = vsel %vm101, %v2382, 0.0
  %v2395 = vadd.f32 %v2393, %v2394
  %v2396 = vsel %vm101, %v2383, 0.0
  %v2397 = vadd.f32 %v2395, %v2396
  %v2398 = vsel %vm101, %v2384, 0.0
  %v2399 = vadd.f32 %v2397, %v2398
  %v2400 = vrot.slane %v2399, 4
  %v2401 = vadd.f32 %v2399, %v2400
  %v2402 = vrot.slane %v2401, 2
  %v2403 = vadd.f32 %v2401, %v2402
  %v2404 = vrot.slane %v2403, 1
  %v2405 = vadd.f32 %v2403, %v2404
  %vm2406 = vcmask 1040384
  %v2407 = vsel %vm2406, %v2376, %v2405
  %vm2408 = vcmask 254976
  %2409 = vst.msk [vmem:[%s14] sm:$0x3] %vm2408, %v2407
  // Predicated region
  $region50: #{patchtst_forward.7} parent=0 // pred_check
    _
  $region51: #{patchtst_forward.7} parent=0 // pred_check_branch
    %2411 = sbr.rel (0) target = $region53
  $region52: #{patchtst_forward.7} parent=0 // pred_region
    _
  $region53: #{patchtst_forward.7} parent=0 // pred_fallthru
    _
  // Predicated region
  $region54: #{patchtst_forward.7} parent=0 // pred_check
    _
  $region55: #{patchtst_forward.7} parent=0 // pred_check_branch
    %2413 = sbr.rel (0) target = $region57
  $region56: #{patchtst_forward.7} parent=0 // pred_region
    _
  $region57: #{patchtst_forward.7} parent=0 // pred_fallthru
    _
  // Predicated region
  $region58: #{patchtst_forward.7} parent=0 // pred_check
    _
  $region59: #{patchtst_forward.7} parent=0 // pred_check_branch
    %2415 = sbr.rel (0) target = $region61
  $region60: #{patchtst_forward.7} parent=0 // pred_region
    _
  $region61: #{patchtst_forward.7} parent=0 // pred_fallthru
    _
  // Predicated region
  $region62: #{patchtst_forward.7} parent=0 // pred_check
    _
  $region63: #{patchtst_forward.7} parent=0 // pred_check_branch
    %2417 = sbr.rel (0) target = $region65
  $region64: #{patchtst_forward.7} parent=0 // pred_region
    _
  $region65: #{patchtst_forward.7} parent=0 // pred_fallthru
    _
  // Predicated region
  $region66: #{patchtst_forward.7} parent=0 // pred_check
    _
  $region67: #{patchtst_forward.7} parent=0 // pred_check_branch
    %2419 = sbr.rel (0) target = $region69
  $region68: #{patchtst_forward.7} parent=0 // pred_region
    _
  $region69: #{patchtst_forward.7} parent=0 // pred_fallthru
    _
  // Predicated region
  $region70: #{patchtst_forward.7} parent=0 // pred_check
    _
  $region71: #{patchtst_forward.7} parent=0 // pred_check_branch
    %2421 = sbr.rel (0) target = $region73
  $region72: #{patchtst_forward.7} parent=0 // pred_region
    _
  $region73: #{patchtst_forward.7} parent=0 // pred_fallthru
    _

</llo_original>
